<compile_context>
chip_gen: v7x
topology: tpu7x:2x2x1
jax: 0.10.0
libtpu: 0.0.40
codegen_flags: <defaults>
</compile_context>

<pallas_src>
import functools

import numpy as np

import jax
import jax.numpy as jnp
from jax.experimental import pallas as pl
from jax.experimental.pallas import tpu as pltpu


VMEM_LIMIT_BYTES = 32 * 1024 * 1024  # safe on v5e/v6e/v7x; tiles here are tiny


def _round_up(x, m):
    return ((x + m - 1) // m) * m


# ----------------------------------------------------------------------------
# Tiled matmul kernel:  out = relu?(A @ B + bias), bf16 inputs, f32 accumulator
# Bias is folded into the k==last finalize (init is a pure zero store).
# ----------------------------------------------------------------------------
def _mm_kernel(a_ref, b_ref, bias_ref, o_ref, acc_ref, *, relu):
    k = pl.program_id(2)

    @pl.when(k == 0)
    def _():
        acc_ref[...] = jnp.zeros_like(acc_ref)

    acc_ref[...] += jnp.dot(a_ref[...], b_ref[...],
                            preferred_element_type=jnp.float32)

    @pl.when(k == pl.num_programs(2) - 1)
    def _():
        r = acc_ref[...] + bias_ref[...]
        if relu:
            r = jnp.maximum(r, 0.0)
        o_ref[...] = r.astype(o_ref.dtype)


def pallas_matmul(a, b, bias=None, relu=False, out_dtype=jnp.bfloat16):
    """out = relu?(a @ b + bias), bf16 MXU inputs, f32 accumulation."""
    m, k = a.shape
    k2, n = b.shape
    assert k == k2
    a = a.astype(jnp.bfloat16)
    b = b.astype(jnp.bfloat16)
    if bias is None:
        bias = jnp.zeros((1, n), jnp.float32)
    else:
        bias = bias.reshape(1, n).astype(jnp.float32)

    # K: single full block when it fits (no zero-padding of the contraction);
    # only pad+tile for very large K.
    if k <= 2048:
        kp, tk = k, k
    else:
        tk = 512
        kp = _round_up(k, tk)

    # N: single full block when small (keeps consumer layouts unpadded);
    # lane-aligned tiles when large.
    if n <= 512:
        npd, tn = n, n
    else:
        tn = 256
        npd = _round_up(n, tn)

    # M: aim for >=2 tiles so both v7x TensorCores get work.
    if m <= 16:
        mp = _round_up(m, 8)
        tm = mp
    elif m <= 1024:
        mp = _round_up(m, 16)
        tm = mp // 2
    else:
        tm = 256
        mp = _round_up(m, tm)

    if (mp, kp) != (m, k):
        a = jnp.pad(a, ((0, mp - m), (0, kp - k)))
    if (kp, npd) != (k, n):
        b = jnp.pad(b, ((0, kp - k), (0, npd - n)))
    if npd != n:
        bias = jnp.pad(bias, ((0, 0), (0, npd - n)))

    grid = (mp // tm, npd // tn, kp // tk)
    out = pl.pallas_call(
        functools.partial(_mm_kernel, relu=relu),
        out_shape=jax.ShapeDtypeStruct((mp, npd), out_dtype),
        grid=grid,
        in_specs=[pl.BlockSpec((tm, tk), lambda i, j, kk: (i, kk)),
                  pl.BlockSpec((tk, tn), lambda i, j, kk: (kk, j)),
                  pl.BlockSpec((1, tn), lambda i, j, kk: (0, j))],
        out_specs=pl.BlockSpec((tm, tn), lambda i, j, kk: (i, j)),
        scratch_shapes=[pltpu.VMEM((tm, tn), jnp.float32)],
        compiler_params=pltpu.CompilerParams(
            dimension_semantics=("parallel", "parallel", "arbitrary"),
            vmem_limit_bytes=VMEM_LIMIT_BYTES),
    )(a, b, bias)
    if (mp, npd) != (m, n):
        out = out[:m, :n]
    return out


# ----------------------------------------------------------------------------
# Conv2d for the (tiny, stand-in) stem: light im2col glue + tiled Pallas matmul.
# ----------------------------------------------------------------------------
def conv2d_nhwc(x, w, b, stride=1, dilation=1, padding=0, relu=False,
                out_dtype=jnp.bfloat16):
    """x: (N,H,W,Cin) bf16, w: (KH,KW,Cin,Cout), b: (Cout,)."""
    n, h, wd, cin = x.shape
    kh, kw, cin2, cout = w.shape
    assert cin == cin2
    xp = jnp.pad(x, ((0, 0), (padding, padding), (padding, padding), (0, 0)))
    hp, wp = h + 2 * padding, wd + 2 * padding
    hout = (hp - dilation * (kh - 1) - 1) // stride + 1
    wout = (wp - dilation * (kw - 1) - 1) // stride + 1
    # TODO(synk): for large resolutions replace this with a direct conv
    # (kh*kw taps as an extra 'arbitrary' grid axis / halo blocks); the im2col
    # is kept only for the two tiny strided stem convs of the stand-in backbone.
    cols = []
    for i in range(kh):
        for j in range(kw):
            sl = xp[:,
                    i * dilation: i * dilation + (hout - 1) * stride + 1: stride,
                    j * dilation: j * dilation + (wout - 1) * stride + 1: stride,
                    :]
            cols.append(sl)
    patches = cols[0] if len(cols) == 1 else jnp.concatenate(cols, axis=-1)
    a = patches.reshape(n * hout * wout, kh * kw * cin)
    bmat = w.reshape(kh * kw * cin, cout)
    out = pallas_matmul(a, bmat, b, relu=relu, out_dtype=out_dtype)
    return out.reshape(n, hout, wout, cout)


# ----------------------------------------------------------------------------
# Fully fused ASPP head: branch0 (1x1) + two dilated 3x3 branches + global-avg
# pool branch + 1x1 projection + 1x1 classifier, one kernel launch per batch.
# ----------------------------------------------------------------------------
def _aspp_head_kernel(fp_ref, w0_ref, b0_ref, w1_ref, b1_ref, w2_ref, b2_ref,
                      wp_ref, bp_ref, wpr_ref, wpr3_ref, bpr_ref,
                      wc_ref, bc_ref, o_ref, *, hf, wf, pad, d1, d2):
    fpv = fp_ref[0]                                      # (Hp, Wp, cf) bf16

    # flattened center features (hw, cf): per-row sublane concat (no reshape)
    f_rows = [fpv[pad + r, pad:pad + wf, :] for r in range(hf)]
    f2 = jnp.concatenate(f_rows, axis=0)                 # (hw, cf) bf16

    # branch 0: 1x1 conv + ReLU
    br0 = jnp.maximum(
        jnp.dot(f2, w0_ref[...], preferred_element_type=jnp.float32)
        + b0_ref[...], 0.0)                              # (hw, ca)

    # dilated 3x3 branches: per output row, gather the 9 taps by lane concat
    # (in-VMEM im2col) and run a single K=9*cf dot.
    def dil_branch(w_ref, b_ref, d):
        rows = []
        for r in range(hf):
            taps = [fpv[pad + (i - 1) * d + r,
                        pad + (j - 1) * d: pad + (j - 1) * d + wf, :]
                    for i in range(3) for j in range(3)]
            patch = jnp.concatenate(taps, axis=-1)       # (wf, 9*cf) bf16
            rows.append(jnp.dot(patch, w_ref[...],
                                preferred_element_type=jnp.float32))
        acc = jnp.concatenate(rows, axis=0)              # (hw, ca) f32
        return jnp.maximum(acc + b_ref[...], 0.0)

    br1 = dil_branch(w1_ref, b1_ref, d1)
    br2 = dil_branch(w2_ref, b2_ref, d2)

    # image-pool branch: global average + 1x1 conv + ReLU (spatially constant)
    mean_f = jnp.mean(f2.astype(jnp.float32), axis=0, keepdims=True)   # (1, cf)
    pooled = jnp.maximum(
        jnp.dot(mean_f.astype(jnp.bfloat16), wp_ref[...],
                preferred_element_type=jnp.float32) + bp_ref[...], 0.0)

    # projection: single K=3*ca dot for branches 0..2 + rank-1 pooled term
    cat = jnp.concatenate([br0, br1, br2], axis=-1).astype(jnp.bfloat16)
    t = jnp.dot(cat, wpr_ref[...], preferred_element_type=jnp.float32)
    t = t + jnp.dot(pooled.astype(jnp.bfloat16), wpr3_ref[...],
                    preferred_element_type=jnp.float32) + bpr_ref[...]
    t = jnp.maximum(t, 0.0)                              # (hw, cp)

    # classifier (1x1)
    logits = jnp.dot(t.astype(jnp.bfloat16), wc_ref[...],
                     preferred_element_type=jnp.float32) + bc_ref[...]
    o_ref[0] = logits.astype(o_ref.dtype)


def aspp_head_fused(f, params, d1=2, d2=4):
    """f: (N, hf, wf, cf) bf16 -> logits (N, hf*wf, ncls) bf16."""
    n, hf, wf, cf = f.shape
    w0, b0 = params["aspp0"]
    w1, b1 = params["aspp1"]
    w2, b2 = params["aspp2"]
    wp, bp = params["aspp_pool"]
    wpr, bpr = params["proj"]
    wc, bc = params["classifier"]
    ca = w0.shape[-1]
    cp = wpr.shape[-1]
    ncls = wc.shape[-1]
    pad = max(d1, d2)
    hp_, wp_ = hf + 2 * pad, wf + 2 * pad
    hw = hf * wf

    # TODO(synk): tile the spatial dim over the grid for real DeepLab feature
    # maps; at these sizes the whole padded map fits easily in VMEM.
    fp = jnp.pad(f, ((0, 0), (pad, pad), (pad, pad), (0, 0))).astype(jnp.bfloat16)

    w0m = w0.reshape(cf, ca).astype(jnp.bfloat16)
    w1m = w1.reshape(9 * cf, ca).astype(jnp.bfloat16)
    w2m = w2.reshape(9 * cf, ca).astype(jnp.bfloat16)
    wpm = wp.reshape(cf, ca).astype(jnp.bfloat16)
    wpr2 = wpr.reshape(4 * ca, cp)
    wpr012 = wpr2[:3 * ca].astype(jnp.bfloat16)          # branches 0..2
    wpr3 = wpr2[3 * ca:].astype(jnp.bfloat16)            # pooled branch
    wcm = wc.reshape(cp, ncls).astype(jnp.bfloat16)

    def bvec(v, c):
        return v.reshape(1, c).astype(jnp.float32)

    def full2(r, c):
        return pl.BlockSpec((r, c), lambda b: (0, 0))

    return pl.pallas_call(
        functools.partial(_aspp_head_kernel, hf=hf, wf=wf, pad=pad, d1=d1, d2=d2),
        out_shape=jax.ShapeDtypeStruct((n, hw, ncls), jnp.bfloat16),
        grid=(n,),
        in_specs=[pl.BlockSpec((1, hp_, wp_, cf), lambda b: (b, 0, 0, 0)),
                  full2(cf, ca), full2(1, ca),
                  full2(9 * cf, ca), full2(1, ca),
                  full2(9 * cf, ca), full2(1, ca),
                  full2(cf, ca), full2(1, ca),
                  full2(3 * ca, cp), full2(ca, cp), full2(1, cp),
                  full2(cp, ncls), full2(1, ncls)],
        out_specs=pl.BlockSpec((1, hw, ncls), lambda b: (b, 0, 0)),
        compiler_params=pltpu.CompilerParams(
            dimension_semantics=("parallel",),
            vmem_limit_bytes=VMEM_LIMIT_BYTES),
    )(fp, w0m, bvec(b0, ca), w1m, bvec(b1, ca), w2m, bvec(b2, ca),
      wpm, bvec(bp, ca), wpr012, wpr3, bvec(bpr, cp), wcm, bvec(bc, ncls))


# ----------------------------------------------------------------------------
# Bilinear upsample (align_corners=False): two truly separable bf16 matmul
# passes, each tiled over (batch, output-row tiles). No kron'd weight matrix.
# ----------------------------------------------------------------------------
def _bilinear_matrix_np(out_size, in_size):
    if in_size == 1:
        return np.ones((out_size, 1), np.float32)
    dst = np.arange(out_size, dtype=np.float64)
    src = (dst + 0.5) * (in_size / out_size) - 0.5
    src = np.clip(src, 0.0, in_size - 1)
    lo = np.floor(src).astype(np.int64)
    hi = np.minimum(lo + 1, in_size - 1)
    w_hi = (src - lo).astype(np.float32)
    w_lo = 1.0 - w_hi
    m = np.zeros((out_size, in_size), np.float32)
    m[np.arange(out_size), lo] += w_lo
    m[np.arange(out_size), hi] += w_hi
    return m


def _interp_kernel(u_ref, x_ref, o_ref):
    o_ref[0] = jnp.dot(u_ref[...], x_ref[0],
                       preferred_element_type=jnp.float32).astype(o_ref.dtype)


def _interp_pass(u, x, out_dtype, tile_rows=8):
    """out[b] = u @ x[b];  u: (R, K), x: (N, K, C) -> (N, R, C)."""
    r, k = u.shape
    n, _, c = x.shape
    tr = tile_rows if r % tile_rows == 0 else r
    return pl.pallas_call(
        _interp_kernel,
        out_shape=jax.ShapeDtypeStruct((n, r, c), out_dtype),
        grid=(n, r // tr),
        in_specs=[pl.BlockSpec((tr, k), lambda b, i: (i, 0)),
                  pl.BlockSpec((1, k, c), lambda b, i: (b, 0, 0))],
        out_specs=pl.BlockSpec((1, tr, c), lambda b, i: (b, i, 0)),
        compiler_params=pltpu.CompilerParams(
            dimension_semantics=("parallel", "parallel"),
            vmem_limit_bytes=VMEM_LIMIT_BYTES),
    )(u.astype(jnp.bfloat16), x.astype(jnp.bfloat16))


def bilinear_upsample_to_nchw(logits_flat, hf, wf, c, out_h, out_w):
    """logits_flat: (N, hf*wf, c) bf16 -> (N, c, out_h, out_w) f32."""
    n = logits_flat.shape[0]
    u_h = jnp.asarray(_bilinear_matrix_np(out_h, hf))            # (out_h, hf)
    u_w = jnp.asarray(_bilinear_matrix_np(out_w, wf))            # (out_w, wf)

    # Pass 1 (rows): channels stay packed in lanes.
    x3 = logits_flat.reshape(n, hf, wf * c)
    t = _interp_pass(u_h, x3, jnp.bfloat16)                      # (N, out_h, wf*c)

    # Re-layout the small bf16 intermediate so the width contraction sits on
    # the row dim (replaces the C-times-redundant kron'd width matrix).
    t = jnp.transpose(t.reshape(n, out_h, wf, c), (0, 2, 1, 3)).reshape(
        n, wf, out_h * c)

    # Pass 2 (cols).
    o = _interp_pass(u_w, t, jnp.float32)                        # (N, out_w, out_h*c)
    o = o.reshape(n, out_w, out_h, c)
    return jnp.transpose(o, (0, 3, 2, 1))                        # NCHW


# ----------------------------------------------------------------------------
# Deterministic parameter construction (eval-mode BN folded into conv)
# ----------------------------------------------------------------------------
def _fold_bn(w, b, gamma, beta, mean, var, eps=1e-5):
    scale = gamma / jnp.sqrt(var + eps)
    return w * scale, beta + (b - mean) * scale


def _make_conv_bn(key, kh, kw, cin, cout, fold_bn=True):
    k1, k2, k3, k4, k5 = jax.random.split(key, 5)
    # PyTorch weight layout (Cout, Cin, KH, KW) -> (KH, KW, Cin, Cout)
    w = 0.1 * jax.random.normal(k1, (cout, cin, kh, kw), jnp.float32)
    w = jnp.transpose(w, (2, 3, 1, 0))
    b = 0.05 * jax.random.normal(k2, (cout,), jnp.float32)
    if fold_bn:
        gamma = 1.0 + 0.05 * jax.random.normal(k3, (cout,), jnp.float32)
        beta = 0.02 * jax.random.normal(k4, (cout,), jnp.float32)
        mean = 0.01 * jax.random.normal(k5, (cout,), jnp.float32)
        var = jnp.ones((cout,), jnp.float32)
        w, b = _fold_bn(w, b, gamma, beta, mean, var)
    return w, b


def make_params(key, in_ch=3, stem_ch=8, feat_ch=16, aspp_ch=8, num_classes=21):
    keys = jax.random.split(key, 8)
    return {
        "stem1": _make_conv_bn(keys[0], 3, 3, in_ch, stem_ch),
        "stem2": _make_conv_bn(keys[1], 3, 3, stem_ch, feat_ch),
        "aspp0": _make_conv_bn(keys[2], 1, 1, feat_ch, aspp_ch),
        "aspp1": _make_conv_bn(keys[3], 3, 3, feat_ch, aspp_ch),
        "aspp2": _make_conv_bn(keys[4], 3, 3, feat_ch, aspp_ch),
        "aspp_pool": _make_conv_bn(keys[5], 1, 1, feat_ch, aspp_ch),
        "proj": _make_conv_bn(keys[6], 1, 1, 4 * aspp_ch, feat_ch),
        "classifier": _make_conv_bn(keys[7], 1, 1, feat_ch, num_classes,
                                    fold_bn=False),
    }


# ----------------------------------------------------------------------------
# Forward pass: DeepLabv3-style backbone + ASPP head, returns res['out']
# ----------------------------------------------------------------------------
# TODO(synk): the exact Deeplabv3_2 backbone depth is unknown (checkpoint-based
# module); a compact DeepLabv3-style backbone + ASPP head is used instead.
def wrapped_deeplab_forward(x_nchw, params):
    x = jnp.transpose(x_nchw, (0, 2, 3, 1)).astype(jnp.bfloat16)   # NHWC
    n, h, w, _ = x.shape

    # Backbone (stride-2 conv-bn-relu x2 -> 1/4 resolution features), bf16.
    f = conv2d_nhwc(x, *params["stem1"], stride=2, padding=1, relu=True)
    f = conv2d_nhwc(f, *params["stem2"], stride=2, padding=1, relu=True)
    _, hf, wf, _ = f.shape
    ncls = params["classifier"][0].shape[-1]

    # Fully fused ASPP branches + pooling + projection + classifier.
    logits = aspp_head_fused(f, params, d1=2, d2=4)     # (N, hf*wf, ncls) bf16

    # Bilinear upsample back to input resolution; emits NCHW directly.
    out = bilinear_upsample_to_nchw(logits, hf, wf, ncls, h, w)
    return out.astype(jnp.float32)                                # (N, ncls, H, W)


if __name__ == "__main__":
    key = jax.random.PRNGKey(0)
    k_params, k_x = jax.random.split(key)
    params = make_params(k_params)
    x = jax.random.normal(k_x, (2, 3, 16, 16), jnp.float32)   # NCHW, like PyTorch

    fwd = jax.jit(wrapped_deeplab_forward)
    out = fwd(x, params)
    jax.block_until_ready(out)

    assert out.shape == (2, 21, 16, 16), out.shape
    assert out.dtype == jnp.float32
    assert bool(jnp.all(jnp.isfinite(out)))
    print("KERNEL_OK")
</pallas_src>

<mosaic_0001>
module attributes {stable_mosaic.version = 11 : i64} {
  func.func @_mm_kernel(%arg0: i32, %arg1: i32, %arg2: i32, %arg3: memref<64x27xbf16, #tpu.memory_space<vmem>>, %arg4: memref<27x8xbf16, #tpu.memory_space<vmem>>, %arg5: memref<1x8xf32, #tpu.memory_space<vmem>>, %arg6: memref<64x8xbf16, #tpu.memory_space<vmem>>, %arg7: memref<64x8xf32, #tpu.memory_space<vmem>>) attributes {dimension_semantics = [#tpu.dimension_semantics<parallel>, #tpu.dimension_semantics<parallel>, #tpu.dimension_semantics<arbitrary>], iteration_bounds = array<i64: 2, 1, 1>, scalar_prefetch = 0 : i64, scratch_operands = 1 : i64, tpu.core_type = #tpu.core_type<tc>, window_params = [{transform_indices = @transform_0, window_bounds = array<i64: 64, 27>}, {transform_indices = @transform_1, window_bounds = array<i64: 27, 8>}, {transform_indices = @transform_2, window_bounds = array<i64: 1, 8>}, {transform_indices = @transform_3, window_bounds = array<i64: 64, 8>}]} {
    %c0_i32 = arith.constant 0 : i32
    %0 = arith.cmpi eq, %arg2, %c0_i32 : i32
    %1 = arith.extui %0 : i1 to i32
    %c0_i32_0 = arith.constant 0 : i32
    %2 = arith.cmpi ne, %1, %c0_i32_0 : i32
    scf.if %2 {
      %cst_10 = arith.constant 0.000000e+00 : f32
      %12 = vector.broadcast %cst_10 : f32 to vector<64x8xf32>
      %c0_11 = arith.constant 0 : index
      %c0_12 = arith.constant 0 : index
      %13 = vector.load %arg7[%c0_11, %c0_12] : memref<64x8xf32, #tpu.memory_space<vmem>>, vector<64x8xf32>
      tpu.vector_store %arg7[%c0_11, %c0_12], %12 {strides = array<i32>} : memref<64x8xf32, #tpu.memory_space<vmem>>, vector<64x8xf32>,
    } else {
    }
    %c0 = arith.constant 0 : index
    %c0_1 = arith.constant 0 : index
    %3 = vector.load %arg7[%c0, %c0_1] : memref<64x8xf32, #tpu.memory_space<vmem>>, vector<64x8xf32>
    %c0_2 = arith.constant 0 : index
    %c0_3 = arith.constant 0 : index
    %4 = vector.load %arg3[%c0_2, %c0_3] : memref<64x27xbf16, #tpu.memory_space<vmem>>, vector<64x27xbf16>
    %c0_4 = arith.constant 0 : index
    %c0_5 = arith.constant 0 : index
    %5 = vector.load %arg4[%c0_4, %c0_5] : memref<27x8xbf16, #tpu.memory_space<vmem>>, vector<27x8xbf16>
    %cst = arith.constant dense<0.000000e+00> : vector<64x8xf32>
    %6 = tpu.matmul %4, %5, %cst {dimension_numbers = #tpu.dot_dimension_numbers<[1], [0], [0], [1], [0, 0, 1, 1], [], []>} : vector<64x27xbf16>, vector<27x8xbf16>, vector<64x8xf32> -> vector<64x8xf32>
    %7 = arith.addf %3, %6 : vector<64x8xf32>
    %c0_6 = arith.constant 0 : index
    %c0_7 = arith.constant 0 : index
    %8 = vector.load %arg7[%c0_6, %c0_7] : memref<64x8xf32, #tpu.memory_space<vmem>>, vector<64x8xf32>
    tpu.vector_store %arg7[%c0_6, %c0_7], %7 {strides = array<i32>} : memref<64x8xf32, #tpu.memory_space<vmem>>, vector<64x8xf32>,
    %c0_i32_8 = arith.constant 0 : i32
    %9 = arith.cmpi eq, %arg2, %c0_i32_8 : i32
    %10 = arith.extui %9 : i1 to i32
    %c0_i32_9 = arith.constant 0 : i32
    %11 = arith.cmpi ne, %10, %c0_i32_9 : i32
    scf.if %11 {
      %c0_10 = arith.constant 0 : index
      %c0_11 = arith.constant 0 : index
      %12 = vector.load %arg7[%c0_10, %c0_11] : memref<64x8xf32, #tpu.memory_space<vmem>>, vector<64x8xf32>
      %c0_12 = arith.constant 0 : index
      %c0_13 = arith.constant 0 : index
      %13 = vector.load %arg5[%c0_12, %c0_13] : memref<1x8xf32, #tpu.memory_space<vmem>>, vector<1x8xf32>
      %14 = vector.broadcast %13 : vector<1x8xf32> to vector<64x8xf32>
      %15 = arith.addf %12, %14 : vector<64x8xf32>
      %cst_14 = arith.constant 0.000000e+00 : f32
      %16 = vector.broadcast %cst_14 : f32 to vector<64x8xf32>
      %17 = arith.maximumf %15, %16 : vector<64x8xf32>
      %18 = arith.truncf %17 : vector<64x8xf32> to vector<64x8xbf16>
      %c0_15 = arith.constant 0 : index
      %c0_16 = arith.constant 0 : index
      %19 = vector.load %arg6[%c0_15, %c0_16] : memref<64x8xbf16, #tpu.memory_space<vmem>>, vector<64x8xbf16>
      tpu.vector_store %arg6[%c0_15, %c0_16], %18 {strides = array<i32>} : memref<64x8xbf16, #tpu.memory_space<vmem>>, vector<64x8xbf16>,
    } else {
    }
    return
  }
  func.func @transform_0(%arg0: i32, %arg1: i32, %arg2: i32) -> (i32, i32) {
    %c0_i32 = arith.constant 0 : i32
    return %arg0, %arg2 : i32, i32
  }
  func.func @transform_1(%arg0: i32, %arg1: i32, %arg2: i32) -> (i32, i32) {
    %c0_i32 = arith.constant 0 : i32
    return %arg2, %arg1 : i32, i32
  }
  func.func @transform_2(%arg0: i32, %arg1: i32, %arg2: i32) -> (i32, i32) {
    %c0_i32 = arith.constant 0 : i32
    %c0_i32_0 = arith.constant 0 : i32
    return %c0_i32, %arg1 : i32, i32
  }
  func.func @transform_3(%arg0: i32, %arg1: i32, %arg2: i32) -> (i32, i32) {
    %c0_i32 = arith.constant 0 : i32
    return %arg0, %arg1 : i32, i32
  }
}

module attributes {stable_mosaic.version = 11 : i64} {
  func.func @_mm_kernel(%arg0: i32, %arg1: i32, %arg2: i32, %arg3: memref<16x72xbf16, #tpu.memory_space<vmem>>, %arg4: memref<72x16xbf16, #tpu.memory_space<vmem>>, %arg5: memref<1x16xf32, #tpu.memory_space<vmem>>, %arg6: memref<16x16xbf16, #tpu.memory_space<vmem>>, %arg7: memref<16x16xf32, #tpu.memory_space<vmem>>) attributes {dimension_semantics = [#tpu.dimension_semantics<parallel>, #tpu.dimension_semantics<parallel>, #tpu.dimension_semantics<arbitrary>], iteration_bounds = array<i64: 2, 1, 1>, scalar_prefetch = 0 : i64, scratch_operands = 1 : i64, tpu.core_type = #tpu.core_type<tc>, window_params = [{transform_indices = @transform_0, window_bounds = array<i64: 16, 72>}, {transform_indices = @transform_1, window_bounds = array<i64: 72, 16>}, {transform_indices = @transform_2, window_bounds = array<i64: 1, 16>}, {transform_indices = @transform_3, window_bounds = array<i64: 16, 16>}]} {
    %c0_i32 = arith.constant 0 : i32
    %0 = arith.cmpi eq, %arg2, %c0_i32 : i32
    %1 = arith.extui %0 : i1 to i32
    %c0_i32_0 = arith.constant 0 : i32
    %2 = arith.cmpi ne, %1, %c0_i32_0 : i32
    scf.if %2 {
      %cst_10 = arith.constant 0.000000e+00 : f32
      %12 = vector.broadcast %cst_10 : f32 to vector<16x16xf32>
      %c0_11 = arith.constant 0 : index
      %c0_12 = arith.constant 0 : index
      %13 = vector.load %arg7[%c0_11, %c0_12] : memref<16x16xf32, #tpu.memory_space<vmem>>, vector<16x16xf32>
      tpu.vector_store %arg7[%c0_11, %c0_12], %12 {strides = array<i32>} : memref<16x16xf32, #tpu.memory_space<vmem>>, vector<16x16xf32>,
    } else {
    }
    %c0 = arith.constant 0 : index
    %c0_1 = arith.constant 0 : index
    %3 = vector.load %arg7[%c0, %c0_1] : memref<16x16xf32, #tpu.memory_space<vmem>>, vector<16x16xf32>
    %c0_2 = arith.constant 0 : index
    %c0_3 = arith.constant 0 : index
    %4 = vector.load %arg3[%c0_2, %c0_3] : memref<16x72xbf16, #tpu.memory_space<vmem>>, vector<16x72xbf16>
    %c0_4 = arith.constant 0 : index
    %c0_5 = arith.constant 0 : index
    %5 = vector.load %arg4[%c0_4, %c0_5] : memref<72x16xbf16, #tpu.memory_space<vmem>>, vector<72x16xbf16>
    %cst = arith.constant dense<0.000000e+00> : vector<16x16xf32>
    %6 = tpu.matmul %4, %5, %cst {dimension_numbers = #tpu.dot_dimension_numbers<[1], [0], [0], [1], [0, 0, 1, 1], [], []>} : vector<16x72xbf16>, vector<72x16xbf16>, vector<16x16xf32> -> vector<16x16xf32>
    %7 = arith.addf %3, %6 : vector<16x16xf32>
    %c0_6 = arith.constant 0 : index
    %c0_7 = arith.constant 0 : index
    %8 = vector.load %arg7[%c0_6, %c0_7] : memref<16x16xf32, #tpu.memory_space<vmem>>, vector<16x16xf32>
    tpu.vector_store %arg7[%c0_6, %c0_7], %7 {strides = array<i32>} : memref<16x16xf32, #tpu.memory_space<vmem>>, vector<16x16xf32>,
    %c0_i32_8 = arith.constant 0 : i32
    %9 = arith.cmpi eq, %arg2, %c0_i32_8 : i32
    %10 = arith.extui %9 : i1 to i32
    %c0_i32_9 = arith.constant 0 : i32
    %11 = arith.cmpi ne, %10, %c0_i32_9 : i32
    scf.if %11 {
      %c0_10 = arith.constant 0 : index
      %c0_11 = arith.constant 0 : index
      %12 = vector.load %arg7[%c0_10, %c0_11] : memref<16x16xf32, #tpu.memory_space<vmem>>, vector<16x16xf32>
      %c0_12 = arith.constant 0 : index
      %c0_13 = arith.constant 0 : index
      %13 = vector.load %arg5[%c0_12, %c0_13] : memref<1x16xf32, #tpu.memory_space<vmem>>, vector<1x16xf32>
      %14 = vector.broadcast %13 : vector<1x16xf32> to vector<16x16xf32>
      %15 = arith.addf %12, %14 : vector<16x16xf32>
      %cst_14 = arith.constant 0.000000e+00 : f32
      %16 = vector.broadcast %cst_14 : f32 to vector<16x16xf32>
      %17 = arith.maximumf %15, %16 : vector<16x16xf32>
      %18 = arith.truncf %17 : vector<16x16xf32> to vector<16x16xbf16>
      %c0_15 = arith.constant 0 : index
      %c0_16 = arith.constant 0 : index
      %19 = vector.load %arg6[%c0_15, %c0_16] : memref<16x16xbf16, #tpu.memory_space<vmem>>, vector<16x16xbf16>
      tpu.vector_store %arg6[%c0_15, %c0_16], %18 {strides = array<i32>} : memref<16x16xbf16, #tpu.memory_space<vmem>>, vector<16x16xbf16>,
    } else {
    }
    return
  }
  func.func @transform_0(%arg0: i32, %arg1: i32, %arg2: i32) -> (i32, i32) {
    %c0_i32 = arith.constant 0 : i32
    return %arg0, %arg2 : i32, i32
  }
  func.func @transform_1(%arg0: i32, %arg1: i32, %arg2: i32) -> (i32, i32) {
    %c0_i32 = arith.constant 0 : i32
    return %arg2, %arg1 : i32, i32
  }
  func.func @transform_2(%arg0: i32, %arg1: i32, %arg2: i32) -> (i32, i32) {
    %c0_i32 = arith.constant 0 : i32
    %c0_i32_0 = arith.constant 0 : i32
    return %c0_i32, %arg1 : i32, i32
  }
  func.func @transform_3(%arg0: i32, %arg1: i32, %arg2: i32) -> (i32, i32) {
    %c0_i32 = arith.constant 0 : i32
    return %arg0, %arg1 : i32, i32
  }
}

module attributes {stable_mosaic.version = 11 : i64} {
  func.func @_aspp_head_kernel(%arg0: i32, %arg1: memref<1x12x12x16xbf16, #tpu.memory_space<vmem>>, %arg2: memref<16x8xbf16, #tpu.memory_space<vmem>>, %arg3: memref<1x8xf32, #tpu.memory_space<vmem>>, %arg4: memref<144x8xbf16, #tpu.memory_space<vmem>>, %arg5: memref<1x8xf32, #tpu.memory_space<vmem>>, %arg6: memref<144x8xbf16, #tpu.memory_space<vmem>>, %arg7: memref<1x8xf32, #tpu.memory_space<vmem>>, %arg8: memref<16x8xbf16, #tpu.memory_space<vmem>>, %arg9: memref<1x8xf32, #tpu.memory_space<vmem>>, %arg10: memref<24x16xbf16, #tpu.memory_space<vmem>>, %arg11: memref<8x16xbf16, #tpu.memory_space<vmem>>, %arg12: memref<1x16xf32, #tpu.memory_space<vmem>>, %arg13: memref<16x21xbf16, #tpu.memory_space<vmem>>, %arg14: memref<1x21xf32, #tpu.memory_space<vmem>>, %arg15: memref<1x16x21xbf16, #tpu.memory_space<vmem>>) attributes {dimension_semantics = [#tpu.dimension_semantics<parallel>], iteration_bounds = array<i64: 2>, scalar_prefetch = 0 : i64, scratch_operands = 0 : i64, tpu.core_type = #tpu.core_type<tc>, window_params = [{transform_indices = @transform_0, window_bounds = array<i64: 1, 12, 12, 16>}, {pipeline_mode = #tpu.pipeline_mode<synchronous>, transform_indices = @transform_1, window_bounds = array<i64: 16, 8>}, {pipeline_mode = #tpu.pipeline_mode<synchronous>, transform_indices = @transform_2, window_bounds = array<i64: 1, 8>}, {pipeline_mode = #tpu.pipeline_mode<synchronous>, transform_indices = @transform_3, window_bounds = array<i64: 144, 8>}, {pipeline_mode = #tpu.pipeline_mode<synchronous>, transform_indices = @transform_4, window_bounds = array<i64: 1, 8>}, {pipeline_mode = #tpu.pipeline_mode<synchronous>, transform_indices = @transform_5, window_bounds = array<i64: 144, 8>}, {pipeline_mode = #tpu.pipeline_mode<synchronous>, transform_indices = @transform_6, window_bounds = array<i64: 1, 8>}, {pipeline_mode = #tpu.pipeline_mode<synchronous>, transform_indices = @transform_7, window_bounds = array<i64: 16, 8>}, {pipeline_mode = #tpu.pipeline_mode<synchronous>, transform_indices = @transform_8, window_bounds = array<i64: 1, 8>}, {pipeline_mode = #tpu.pipeline_mode<synchronous>, transform_indices = @transform_9, window_bounds = array<i64: 24, 16>}, {pipeline_mode = #tpu.pipeline_mode<synchronous>, transform_indices = @transform_10, window_bounds = array<i64: 8, 16>}, {pipeline_mode = #tpu.pipeline_mode<synchronous>, transform_indices = @transform_11, window_bounds = array<i64: 1, 16>}, {pipeline_mode = #tpu.pipeline_mode<synchronous>, transform_indices = @transform_12, window_bounds = array<i64: 16, 21>}, {pipeline_mode = #tpu.pipeline_mode<synchronous>, transform_indices = @transform_13, window_bounds = array<i64: 1, 21>}, {transform_indices = @transform_14, window_bounds = array<i64: 1, 16, 21>}]} {
    %c0 = arith.constant 0 : index
    %c0_0 = arith.constant 0 : index
    %c0_1 = arith.constant 0 : index
    %c0_2 = arith.constant 0 : index
    %0 = vector.load %arg1[%c0, %c0_0, %c0_1, %c0_2] : memref<1x12x12x16xbf16, #tpu.memory_space<vmem>>, vector<1x12x12x16xbf16>
    %1 = vector.shape_cast %0 : vector<1x12x12x16xbf16> to vector<12x12x16xbf16>
    %2 = vector.extract_strided_slice %1 {offsets = [4, 4, 0], sizes = [1, 4, 16], strides = [1, 1, 1]} : vector<12x12x16xbf16> to vector<1x4x16xbf16>
    %3 = vector.shape_cast %2 : vector<1x4x16xbf16> to vector<4x16xbf16>
    %4 = vector.extract_strided_slice %1 {offsets = [5, 4, 0], sizes = [1, 4, 16], strides = [1, 1, 1]} : vector<12x12x16xbf16> to vector<1x4x16xbf16>
    %5 = vector.shape_cast %4 : vector<1x4x16xbf16> to vector<4x16xbf16>
    %6 = vector.extract_strided_slice %1 {offsets = [6, 4, 0], sizes = [1, 4, 16], strides = [1, 1, 1]} : vector<12x12x16xbf16> to vector<1x4x16xbf16>
    %7 = vector.shape_cast %6 : vector<1x4x16xbf16> to vector<4x16xbf16>
    %8 = vector.extract_strided_slice %1 {offsets = [7, 4, 0], sizes = [1, 4, 16], strides = [1, 1, 1]} : vector<12x12x16xbf16> to vector<1x4x16xbf16>
    %9 = vector.shape_cast %8 : vector<1x4x16xbf16> to vector<4x16xbf16>
    %10 = tpu.concatenate %3, %5, %7, %9 in 0 : vector<4x16xbf16>, vector<4x16xbf16>, vector<4x16xbf16>, vector<4x16xbf16> -> vector<16x16xbf16>
    %c0_3 = arith.constant 0 : index
    %c0_4 = arith.constant 0 : index
    %11 = vector.load %arg2[%c0_3, %c0_4] : memref<16x8xbf16, #tpu.memory_space<vmem>>, vector<16x8xbf16>
    %cst = arith.constant dense<0.000000e+00> : vector<16x8xf32>
    %12 = tpu.matmul %10, %11, %cst {dimension_numbers = #tpu.dot_dimension_numbers<[1], [0], [0], [1], [0, 0, 1, 1], [], []>} : vector<16x16xbf16>, vector<16x8xbf16>, vector<16x8xf32> -> vector<16x8xf32>
    %c0_5 = arith.constant 0 : index
    %c0_6 = arith.constant 0 : index
    %13 = vector.load %arg3[%c0_5, %c0_6] : memref<1x8xf32, #tpu.memory_space<vmem>>, vector<1x8xf32>
    %14 = vector.broadcast %13 : vector<1x8xf32> to vector<16x8xf32>
    %15 = arith.addf %12, %14 : vector<16x8xf32>
    %cst_7 = arith.constant 0.000000e+00 : f32
    %16 = vector.broadcast %cst_7 : f32 to vector<16x8xf32>
    %17 = arith.maximumf %15, %16 : vector<16x8xf32>
    %18 = vector.extract_strided_slice %1 {offsets = [2, 2, 0], sizes = [1, 4, 16], strides = [1, 1, 1]} : vector<12x12x16xbf16> to vector<1x4x16xbf16>
    %19 = vector.shape_cast %18 : vector<1x4x16xbf16> to vector<4x16xbf16>
    %20 = vector.extract_strided_slice %1 {offsets = [2, 4, 0], sizes = [1, 4, 16], strides = [1, 1, 1]} : vector<12x12x16xbf16> to vector<1x4x16xbf16>
    %21 = vector.shape_cast %20 : vector<1x4x16xbf16> to vector<4x16xbf16>
    %22 = vector.extract_strided_slice %1 {offsets = [2, 6, 0], sizes = [1, 4, 16], strides = [1, 1, 1]} : vector<12x12x16xbf16> to vector<1x4x16xbf16>
    %23 = vector.shape_cast %22 : vector<1x4x16xbf16> to vector<4x16xbf16>
    %24 = vector.extract_strided_slice %1 {offsets = [4, 2, 0], sizes = [1, 4, 16], strides = [1, 1, 1]} : vector<12x12x16xbf16> to vector<1x4x16xbf16>
    %25 = vector.shape_cast %24 : vector<1x4x16xbf16> to vector<4x16xbf16>
    %26 = vector.extract_strided_slice %1 {offsets = [4, 4, 0], sizes = [1, 4, 16], strides = [1, 1, 1]} : vector<12x12x16xbf16> to vector<1x4x16xbf16>
    %27 = vector.shape_cast %26 : vector<1x4x16xbf16> to vector<4x16xbf16>
    %28 = vector.extract_strided_slice %1 {offsets = [4, 6, 0], sizes = [1, 4, 16], strides = [1, 1, 1]} : vector<12x12x16xbf16> to vector<1x4x16xbf16>
    %29 = vector.shape_cast %28 : vector<1x4x16xbf16> to vector<4x16xbf16>
    %30 = vector.extract_strided_slice %1 {offsets = [6, 2, 0], sizes = [1, 4, 16], strides = [1, 1, 1]} : vector<12x12x16xbf16> to vector<1x4x16xbf16>
    %31 = vector.shape_cast %30 : vector<1x4x16xbf16> to vector<4x16xbf16>
    %32 = vector.extract_strided_slice %1 {offsets = [6, 4, 0], sizes = [1, 4, 16], strides = [1, 1, 1]} : vector<12x12x16xbf16> to vector<1x4x16xbf16>
    %33 = vector.shape_cast %32 : vector<1x4x16xbf16> to vector<4x16xbf16>
    %34 = vector.extract_strided_slice %1 {offsets = [6, 6, 0], sizes = [1, 4, 16], strides = [1, 1, 1]} : vector<12x12x16xbf16> to vector<1x4x16xbf16>
    %35 = vector.shape_cast %34 : vector<1x4x16xbf16> to vector<4x16xbf16>
    %36 = tpu.concatenate %19, %21, %23, %25, %27, %29, %31, %33, %35 in 1 : vector<4x16xbf16>, vector<4x16xbf16>, vector<4x16xbf16>, vector<4x16xbf16>, vector<4x16xbf16>, vector<4x16xbf16>, vector<4x16xbf16>, vector<4x16xbf16>, vector<4x16xbf16> -> vector<4x144xbf16>
    %c0_8 = arith.constant 0 : index
    %c0_9 = arith.constant 0 : index
    %37 = vector.load %arg4[%c0_8, %c0_9] : memref<144x8xbf16, #tpu.memory_space<vmem>>, vector<144x8xbf16>
    %cst_10 = arith.constant dense<0.000000e+00> : vector<4x8xf32>
    %38 = tpu.matmul %36, %37, %cst_10 {dimension_numbers = #tpu.dot_dimension_numbers<[1], [0], [0], [1], [0, 0, 1, 1], [], []>} : vector<4x144xbf16>, vector<144x8xbf16>, vector<4x8xf32> -> vector<4x8xf32>
    %39 = vector.extract_strided_slice %1 {offsets = [3, 2, 0], sizes = [1, 4, 16], strides = [1, 1, 1]} : vector<12x12x16xbf16> to vector<1x4x16xbf16>
    %40 = vector.shape_cast %39 : vector<1x4x16xbf16> to vector<4x16xbf16>
    %41 = vector.extract_strided_slice %1 {offsets = [3, 4, 0], sizes = [1, 4, 16], strides = [1, 1, 1]} : vector<12x12x16xbf16> to vector<1x4x16xbf16>
    %42 = vector.shape_cast %41 : vector<1x4x16xbf16> to vector<4x16xbf16>
    %43 = vector.extract_strided_slice %1 {offsets = [3, 6, 0], sizes = [1, 4, 16], strides = [1, 1, 1]} : vector<12x12x16xbf16> to vector<1x4x16xbf16>
    %44 = vector.shape_cast %43 : vector<1x4x16xbf16> to vector<4x16xbf16>
    %45 = vector.extract_strided_slice %1 {offsets = [5, 2, 0], sizes = [1, 4, 16], strides = [1, 1, 1]} : vector<12x12x16xbf16> to vector<1x4x16xbf16>
    %46 = vector.shape_cast %45 : vector<1x4x16xbf16> to vector<4x16xbf16>
    %47 = vector.extract_strided_slice %1 {offsets = [5, 4, 0], sizes = [1, 4, 16], strides = [1, 1, 1]} : vector<12x12x16xbf16> to vector<1x4x16xbf16>
    %48 = vector.shape_cast %47 : vector<1x4x16xbf16> to vector<4x16xbf16>
    %49 = vector.extract_strided_slice %1 {offsets = [5, 6, 0], sizes = [1, 4, 16], strides = [1, 1, 1]} : vector<12x12x16xbf16> to vector<1x4x16xbf16>
    %50 = vector.shape_cast %49 : vector<1x4x16xbf16> to vector<4x16xbf16>
    %51 = vector.extract_strided_slice %1 {offsets = [7, 2, 0], sizes = [1, 4, 16], strides = [1, 1, 1]} : vector<12x12x16xbf16> to vector<1x4x16xbf16>
    %52 = vector.shape_cast %51 : vector<1x4x16xbf16> to vector<4x16xbf16>
    %53 = vector.extract_strided_slice %1 {offsets = [7, 4, 0], sizes = [1, 4, 16], strides = [1, 1, 1]} : vector<12x12x16xbf16> to vector<1x4x16xbf16>
    %54 = vector.shape_cast %53 : vector<1x4x16xbf16> to vector<4x16xbf16>
    %55 = vector.extract_strided_slice %1 {offsets = [7, 6, 0], sizes = [1, 4, 16], strides = [1, 1, 1]} : vector<12x12x16xbf16> to vector<1x4x16xbf16>
    %56 = vector.shape_cast %55 : vector<1x4x16xbf16> to vector<4x16xbf16>
    %57 = tpu.concatenate %40, %42, %44, %46, %48, %50, %52, %54, %56 in 1 : vector<4x16xbf16>, vector<4x16xbf16>, vector<4x16xbf16>, vector<4x16xbf16>, vector<4x16xbf16>, vector<4x16xbf16>, vector<4x16xbf16>, vector<4x16xbf16>, vector<4x16xbf16> -> vector<4x144xbf16>
    %c0_11 = arith.constant 0 : index
    %c0_12 = arith.constant 0 : index
    %58 = vector.load %arg4[%c0_11, %c0_12] : memref<144x8xbf16, #tpu.memory_space<vmem>>, vector<144x8xbf16>
    %cst_13 = arith.constant dense<0.000000e+00> : vector<4x8xf32>
    %59 = tpu.matmul %57, %58, %cst_13 {dimension_numbers = #tpu.dot_dimension_numbers<[1], [0], [0], [1], [0, 0, 1, 1], [], []>} : vector<4x144xbf16>, vector<144x8xbf16>, vector<4x8xf32> -> vector<4x8xf32>
    %60 = vector.extract_strided_slice %1 {offsets = [4, 2, 0], sizes = [1, 4, 16], strides = [1, 1, 1]} : vector<12x12x16xbf16> to vector<1x4x16xbf16>
    %61 = vector.shape_cast %60 : vector<1x4x16xbf16> to vector<4x16xbf16>
    %62 = vector.extract_strided_slice %1 {offsets = [4, 4, 0], sizes = [1, 4, 16], strides = [1, 1, 1]} : vector<12x12x16xbf16> to vector<1x4x16xbf16>
    %63 = vector.shape_cast %62 : vector<1x4x16xbf16> to vector<4x16xbf16>
    %64 = vector.extract_strided_slice %1 {offsets = [4, 6, 0], sizes = [1, 4, 16], strides = [1, 1, 1]} : vector<12x12x16xbf16> to vector<1x4x16xbf16>
    %65 = vector.shape_cast %64 : vector<1x4x16xbf16> to vector<4x16xbf16>
    %66 = vector.extract_strided_slice %1 {offsets = [6, 2, 0], sizes = [1, 4, 16], strides = [1, 1, 1]} : vector<12x12x16xbf16> to vector<1x4x16xbf16>
    %67 = vector.shape_cast %66 : vector<1x4x16xbf16> to vector<4x16xbf16>
    %68 = vector.extract_strided_slice %1 {offsets = [6, 4, 0], sizes = [1, 4, 16], strides = [1, 1, 1]} : vector<12x12x16xbf16> to vector<1x4x16xbf16>
    %69 = vector.shape_cast %68 : vector<1x4x16xbf16> to vector<4x16xbf16>
    %70 = vector.extract_strided_slice %1 {offsets = [6, 6, 0], sizes = [1, 4, 16], strides = [1, 1, 1]} : vector<12x12x16xbf16> to vector<1x4x16xbf16>
    %71 = vector.shape_cast %70 : vector<1x4x16xbf16> to vector<4x16xbf16>
    %72 = vector.extract_strided_slice %1 {offsets = [8, 2, 0], sizes = [1, 4, 16], strides = [1, 1, 1]} : vector<12x12x16xbf16> to vector<1x4x16xbf16>
    %73 = vector.shape_cast %72 : vector<1x4x16xbf16> to vector<4x16xbf16>
    %74 = vector.extract_strided_slice %1 {offsets = [8, 4, 0], sizes = [1, 4, 16], strides = [1, 1, 1]} : vector<12x12x16xbf16> to vector<1x4x16xbf16>
    %75 = vector.shape_cast %74 : vector<1x4x16xbf16> to vector<4x16xbf16>
    %76 = vector.extract_strided_slice %1 {offsets = [8, 6, 0], sizes = [1, 4, 16], strides = [1, 1, 1]} : vector<12x12x16xbf16> to vector<1x4x16xbf16>
    %77 = vector.shape_cast %76 : vector<1x4x16xbf16> to vector<4x16xbf16>
    %78 = tpu.concatenate %61, %63, %65, %67, %69, %71, %73, %75, %77 in 1 : vector<4x16xbf16>, vector<4x16xbf16>, vector<4x16xbf16>, vector<4x16xbf16>, vector<4x16xbf16>, vector<4x16xbf16>, vector<4x16xbf16>, vector<4x16xbf16>, vector<4x16xbf16> -> vector<4x144xbf16>
    %c0_14 = arith.constant 0 : index
    %c0_15 = arith.constant 0 : index
    %79 = vector.load %arg4[%c0_14, %c0_15] : memref<144x8xbf16, #tpu.memory_space<vmem>>, vector<144x8xbf16>
    %cst_16 = arith.constant dense<0.000000e+00> : vector<4x8xf32>
    %80 = tpu.matmul %78, %79, %cst_16 {dimension_numbers = #tpu.dot_dimension_numbers<[1], [0], [0], [1], [0, 0, 1, 1], [], []>} : vector<4x144xbf16>, vector<144x8xbf16>, vector<4x8xf32> -> vector<4x8xf32>
    %81 = vector.extract_strided_slice %1 {offsets = [5, 2, 0], sizes = [1, 4, 16], strides = [1, 1, 1]} : vector<12x12x16xbf16> to vector<1x4x16xbf16>
    %82 = vector.shape_cast %81 : vector<1x4x16xbf16> to vector<4x16xbf16>
    %83 = vector.extract_strided_slice %1 {offsets = [5, 4, 0], sizes = [1, 4, 16], strides = [1, 1, 1]} : vector<12x12x16xbf16> to vector<1x4x16xbf16>
    %84 = vector.shape_cast %83 : vector<1x4x16xbf16> to vector<4x16xbf16>
    %85 = vector.extract_strided_slice %1 {offsets = [5, 6, 0], sizes = [1, 4, 16], strides = [1, 1, 1]} : vector<12x12x16xbf16> to vector<1x4x16xbf16>
    %86 = vector.shape_cast %85 : vector<1x4x16xbf16> to vector<4x16xbf16>
    %87 = vector.extract_strided_slice %1 {offsets = [7, 2, 0], sizes = [1, 4, 16], strides = [1, 1, 1]} : vector<12x12x16xbf16> to vector<1x4x16xbf16>
    %88 = vector.shape_cast %87 : vector<1x4x16xbf16> to vector<4x16xbf16>
    %89 = vector.extract_strided_slice %1 {offsets = [7, 4, 0], sizes = [1, 4, 16], strides = [1, 1, 1]} : vector<12x12x16xbf16> to vector<1x4x16xbf16>
    %90 = vector.shape_cast %89 : vector<1x4x16xbf16> to vector<4x16xbf16>
    %91 = vector.extract_strided_slice %1 {offsets = [7, 6, 0], sizes = [1, 4, 16], strides = [1, 1, 1]} : vector<12x12x16xbf16> to vector<1x4x16xbf16>
    %92 = vector.shape_cast %91 : vector<1x4x16xbf16> to vector<4x16xbf16>
    %93 = vector.extract_strided_slice %1 {offsets = [9, 2, 0], sizes = [1, 4, 16], strides = [1, 1, 1]} : vector<12x12x16xbf16> to vector<1x4x16xbf16>
    %94 = vector.shape_cast %93 : vector<1x4x16xbf16> to vector<4x16xbf16>
    %95 = vector.extract_strided_slice %1 {offsets = [9, 4, 0], sizes = [1, 4, 16], strides = [1, 1, 1]} : vector<12x12x16xbf16> to vector<1x4x16xbf16>
    %96 = vector.shape_cast %95 : vector<1x4x16xbf16> to vector<4x16xbf16>
    %97 = vector.extract_strided_slice %1 {offsets = [9, 6, 0], sizes = [1, 4, 16], strides = [1, 1, 1]} : vector<12x12x16xbf16> to vector<1x4x16xbf16>
    %98 = vector.shape_cast %97 : vector<1x4x16xbf16> to vector<4x16xbf16>
    %99 = tpu.concatenate %82, %84, %86, %88, %90, %92, %94, %96, %98 in 1 : vector<4x16xbf16>, vector<4x16xbf16>, vector<4x16xbf16>, vector<4x16xbf16>, vector<4x16xbf16>, vector<4x16xbf16>, vector<4x16xbf16>, vector<4x16xbf16>, vector<4x16xbf16> -> vector<4x144xbf16>
    %c0_17 = arith.constant 0 : index
    %c0_18 = arith.constant 0 : index
    %100 = vector.load %arg4[%c0_17, %c0_18] : memref<144x8xbf16, #tpu.memory_space<vmem>>, vector<144x8xbf16>
    %cst_19 = arith.constant dense<0.000000e+00> : vector<4x8xf32>
    %101 = tpu.matmul %99, %100, %cst_19 {dimension_numbers = #tpu.dot_dimension_numbers<[1], [0], [0], [1], [0, 0, 1, 1], [], []>} : vector<4x144xbf16>, vector<144x8xbf16>, vector<4x8xf32> -> vector<4x8xf32>
    %102 = tpu.concatenate %38, %59, %80, %101 in 0 : vector<4x8xf32>, vector<4x8xf32>, vector<4x8xf32>, vector<4x8xf32> -> vector<16x8xf32>
    %c0_20 = arith.constant 0 : index
    %c0_21 = arith.constant 0 : index
    %103 = vector.load %arg5[%c0_20, %c0_21] : memref<1x8xf32, #tpu.memory_space<vmem>>, vector<1x8xf32>
    %104 = vector.broadcast %103 : vector<1x8xf32> to vector<16x8xf32>
    %105 = arith.addf %102, %104 : vector<16x8xf32>
    %cst_22 = arith.constant 0.000000e+00 : f32
    %106 = vector.broadcast %cst_22 : f32 to vector<16x8xf32>
    %107 = arith.maximumf %105, %106 : vector<16x8xf32>
    %108 = vector.extract_strided_slice %1 {offsets = [0, 0, 0], sizes = [1, 4, 16], strides = [1, 1, 1]} : vector<12x12x16xbf16> to vector<1x4x16xbf16>
    %109 = vector.shape_cast %108 : vector<1x4x16xbf16> to vector<4x16xbf16>
    %110 = vector.extract_strided_slice %1 {offsets = [0, 4, 0], sizes = [1, 4, 16], strides = [1, 1, 1]} : vector<12x12x16xbf16> to vector<1x4x16xbf16>
    %111 = vector.shape_cast %110 : vector<1x4x16xbf16> to vector<4x16xbf16>
    %112 = vector.extract_strided_slice %1 {offsets = [0, 8, 0], sizes = [1, 4, 16], strides = [1, 1, 1]} : vector<12x12x16xbf16> to vector<1x4x16xbf16>
    %113 = vector.shape_cast %112 : vector<1x4x16xbf16> to vector<4x16xbf16>
    %114 = vector.extract_strided_slice %1 {offsets = [4, 0, 0], sizes = [1, 4, 16], strides = [1, 1, 1]} : vector<12x12x16xbf16> to vector<1x4x16xbf16>
    %115 = vector.shape_cast %114 : vector<1x4x16xbf16> to vector<4x16xbf16>
    %116 = vector.extract_strided_slice %1 {offsets = [4, 4, 0], sizes = [1, 4, 16], strides = [1, 1, 1]} : vector<12x12x16xbf16> to vector<1x4x16xbf16>
    %117 = vector.shape_cast %116 : vector<1x4x16xbf16> to vector<4x16xbf16>
    %118 = vector.extract_strided_slice %1 {offsets = [4, 8, 0], sizes = [1, 4, 16], strides = [1, 1, 1]} : vector<12x12x16xbf16> to vector<1x4x16xbf16>
    %119 = vector.shape_cast %118 : vector<1x4x16xbf16> to vector<4x16xbf16>
    %120 = vector.extract_strided_slice %1 {offsets = [8, 0, 0], sizes = [1, 4, 16], strides = [1, 1, 1]} : vector<12x12x16xbf16> to vector<1x4x16xbf16>
    %121 = vector.shape_cast %120 : vector<1x4x16xbf16> to vector<4x16xbf16>
    %122 = vector.extract_strided_slice %1 {offsets = [8, 4, 0], sizes = [1, 4, 16], strides = [1, 1, 1]} : vector<12x12x16xbf16> to vector<1x4x16xbf16>
    %123 = vector.shape_cast %122 : vector<1x4x16xbf16> to vector<4x16xbf16>
    %124 = vector.extract_strided_slice %1 {offsets = [8, 8, 0], sizes = [1, 4, 16], strides = [1, 1, 1]} : vector<12x12x16xbf16> to vector<1x4x16xbf16>
    %125 = vector.shape_cast %124 : vector<1x4x16xbf16> to vector<4x16xbf16>
    %126 = tpu.concatenate %109, %111, %113, %115, %117, %119, %121, %123, %125 in 1 : vector<4x16xbf16>, vector<4x16xbf16>, vector<4x16xbf16>, vector<4x16xbf16>, vector<4x16xbf16>, vector<4x16xbf16>, vector<4x16xbf16>, vector<4x16xbf16>, vector<4x16xbf16> -> vector<4x144xbf16>
    %c0_23 = arith.constant 0 : index
    %c0_24 = arith.constant 0 : index
    %127 = vector.load %arg6[%c0_23, %c0_24] : memref<144x8xbf16, #tpu.memory_space<vmem>>, vector<144x8xbf16>
    %cst_25 = arith.constant dense<0.000000e+00> : vector<4x8xf32>
    %128 = tpu.matmul %126, %127, %cst_25 {dimension_numbers = #tpu.dot_dimension_numbers<[1], [0], [0], [1], [0, 0, 1, 1], [], []>} : vector<4x144xbf16>, vector<144x8xbf16>, vector<4x8xf32> -> vector<4x8xf32>
    %129 = vector.extract_strided_slice %1 {offsets = [1, 0, 0], sizes = [1, 4, 16], strides = [1, 1, 1]} : vector<12x12x16xbf16> to vector<1x4x16xbf16>
    %130 = vector.shape_cast %129 : vector<1x4x16xbf16> to vector<4x16xbf16>
    %131 = vector.extract_strided_slice %1 {offsets = [1, 4, 0], sizes = [1, 4, 16], strides = [1, 1, 1]} : vector<12x12x16xbf16> to vector<1x4x16xbf16>
    %132 = vector.shape_cast %131 : vector<1x4x16xbf16> to vector<4x16xbf16>
    %133 = vector.extract_strided_slice %1 {offsets = [1, 8, 0], sizes = [1, 4, 16], strides = [1, 1, 1]} : vector<12x12x16xbf16> to vector<1x4x16xbf16>
    %134 = vector.shape_cast %133 : vector<1x4x16xbf16> to vector<4x16xbf16>
    %135 = vector.extract_strided_slice %1 {offsets = [5, 0, 0], sizes = [1, 4, 16], strides = [1, 1, 1]} : vector<12x12x16xbf16> to vector<1x4x16xbf16>
    %136 = vector.shape_cast %135 : vector<1x4x16xbf16> to vector<4x16xbf16>
    %137 = vector.extract_strided_slice %1 {offsets = [5, 4, 0], sizes = [1, 4, 16], strides = [1, 1, 1]} : vector<12x12x16xbf16> to vector<1x4x16xbf16>
    %138 = vector.shape_cast %137 : vector<1x4x16xbf16> to vector<4x16xbf16>
    %139 = vector.extract_strided_slice %1 {offsets = [5, 8, 0], sizes = [1, 4, 16], strides = [1, 1, 1]} : vector<12x12x16xbf16> to vector<1x4x16xbf16>
    %140 = vector.shape_cast %139 : vector<1x4x16xbf16> to vector<4x16xbf16>
    %141 = vector.extract_strided_slice %1 {offsets = [9, 0, 0], sizes = [1, 4, 16], strides = [1, 1, 1]} : vector<12x12x16xbf16> to vector<1x4x16xbf16>
    %142 = vector.shape_cast %141 : vector<1x4x16xbf16> to vector<4x16xbf16>
    %143 = vector.extract_strided_slice %1 {offsets = [9, 4, 0], sizes = [1, 4, 16], strides = [1, 1, 1]} : vector<12x12x16xbf16> to vector<1x4x16xbf16>
    %144 = vector.shape_cast %143 : vector<1x4x16xbf16> to vector<4x16xbf16>
    %145 = vector.extract_strided_slice %1 {offsets = [9, 8, 0], sizes = [1, 4, 16], strides = [1, 1, 1]} : vector<12x12x16xbf16> to vector<1x4x16xbf16>
    %146 = vector.shape_cast %145 : vector<1x4x16xbf16> to vector<4x16xbf16>
    %147 = tpu.concatenate %130, %132, %134, %136, %138, %140, %142, %144, %146 in 1 : vector<4x16xbf16>, vector<4x16xbf16>, vector<4x16xbf16>, vector<4x16xbf16>, vector<4x16xbf16>, vector<4x16xbf16>, vector<4x16xbf16>, vector<4x16xbf16>, vector<4x16xbf16> -> vector<4x144xbf16>
    %c0_26 = arith.constant 0 : index
    %c0_27 = arith.constant 0 : index
    %148 = vector.load %arg6[%c0_26, %c0_27] : memref<144x8xbf16, #tpu.memory_space<vmem>>, vector<144x8xbf16>
    %cst_28 = arith.constant dense<0.000000e+00> : vector<4x8xf32>
    %149 = tpu.matmul %147, %148, %cst_28 {dimension_numbers = #tpu.dot_dimension_numbers<[1], [0], [0], [1], [0, 0, 1, 1], [], []>} : vector<4x144xbf16>, vector<144x8xbf16>, vector<4x8xf32> -> vector<4x8xf32>
    %150 = vector.extract_strided_slice %1 {offsets = [2, 0, 0], sizes = [1, 4, 16], strides = [1, 1, 1]} : vector<12x12x16xbf16> to vector<1x4x16xbf16>
    %151 = vector.shape_cast %150 : vector<1x4x16xbf16> to vector<4x16xbf16>
    %152 = vector.extract_strided_slice %1 {offsets = [2, 4, 0], sizes = [1, 4, 16], strides = [1, 1, 1]} : vector<12x12x16xbf16> to vector<1x4x16xbf16>
    %153 = vector.shape_cast %152 : vector<1x4x16xbf16> to vector<4x16xbf16>
    %154 = vector.extract_strided_slice %1 {offsets = [2, 8, 0], sizes = [1, 4, 16], strides = [1, 1, 1]} : vector<12x12x16xbf16> to vector<1x4x16xbf16>
    %155 = vector.shape_cast %154 : vector<1x4x16xbf16> to vector<4x16xbf16>
    %156 = vector.extract_strided_slice %1 {offsets = [6, 0, 0], sizes = [1, 4, 16], strides = [1, 1, 1]} : vector<12x12x16xbf16> to vector<1x4x16xbf16>
    %157 = vector.shape_cast %156 : vector<1x4x16xbf16> to vector<4x16xbf16>
    %158 = vector.extract_strided_slice %1 {offsets = [6, 4, 0], sizes = [1, 4, 16], strides = [1, 1, 1]} : vector<12x12x16xbf16> to vector<1x4x16xbf16>
    %159 = vector.shape_cast %158 : vector<1x4x16xbf16> to vector<4x16xbf16>
    %160 = vector.extract_strided_slice %1 {offsets = [6, 8, 0], sizes = [1, 4, 16], strides = [1, 1, 1]} : vector<12x12x16xbf16> to vector<1x4x16xbf16>
    %161 = vector.shape_cast %160 : vector<1x4x16xbf16> to vector<4x16xbf16>
    %162 = vector.extract_strided_slice %1 {offsets = [10, 0, 0], sizes = [1, 4, 16], strides = [1, 1, 1]} : vector<12x12x16xbf16> to vector<1x4x16xbf16>
    %163 = vector.shape_cast %162 : vector<1x4x16xbf16> to vector<4x16xbf16>
    %164 = vector.extract_strided_slice %1 {offsets = [10, 4, 0], sizes = [1, 4, 16], strides = [1, 1, 1]} : vector<12x12x16xbf16> to vector<1x4x16xbf16>
    %165 = vector.shape_cast %164 : vector<1x4x16xbf16> to vector<4x16xbf16>
    %166 = vector.extract_strided_slice %1 {offsets = [10, 8, 0], sizes = [1, 4, 16], strides = [1, 1, 1]} : vector<12x12x16xbf16> to vector<1x4x16xbf16>
    %167 = vector.shape_cast %166 : vector<1x4x16xbf16> to vector<4x16xbf16>
    %168 = tpu.concatenate %151, %153, %155, %157, %159, %161, %163, %165, %167 in 1 : vector<4x16xbf16>, vector<4x16xbf16>, vector<4x16xbf16>, vector<4x16xbf16>, vector<4x16xbf16>, vector<4x16xbf16>, vector<4x16xbf16>, vector<4x16xbf16>, vector<4x16xbf16> -> vector<4x144xbf16>
    %c0_29 = arith.constant 0 : index
    %c0_30 = arith.constant 0 : index
    %169 = vector.load %arg6[%c0_29, %c0_30] : memref<144x8xbf16, #tpu.memory_space<vmem>>, vector<144x8xbf16>
    %cst_31 = arith.constant dense<0.000000e+00> : vector<4x8xf32>
    %170 = tpu.matmul %168, %169, %cst_31 {dimension_numbers = #tpu.dot_dimension_numbers<[1], [0], [0], [1], [0, 0, 1, 1], [], []>} : vector<4x144xbf16>, vector<144x8xbf16>, vector<4x8xf32> -> vector<4x8xf32>
    %171 = vector.extract_strided_slice %1 {offsets = [3, 0, 0], sizes = [1, 4, 16], strides = [1, 1, 1]} : vector<12x12x16xbf16> to vector<1x4x16xbf16>
    %172 = vector.shape_cast %171 : vector<1x4x16xbf16> to vector<4x16xbf16>
    %173 = vector.extract_strided_slice %1 {offsets = [3, 4, 0], sizes = [1, 4, 16], strides = [1, 1, 1]} : vector<12x12x16xbf16> to vector<1x4x16xbf16>
    %174 = vector.shape_cast %173 : vector<1x4x16xbf16> to vector<4x16xbf16>
    %175 = vector.extract_strided_slice %1 {offsets = [3, 8, 0], sizes = [1, 4, 16], strides = [1, 1, 1]} : vector<12x12x16xbf16> to vector<1x4x16xbf16>
    %176 = vector.shape_cast %175 : vector<1x4x16xbf16> to vector<4x16xbf16>
    %177 = vector.extract_strided_slice %1 {offsets = [7, 0, 0], sizes = [1, 4, 16], strides = [1, 1, 1]} : vector<12x12x16xbf16> to vector<1x4x16xbf16>
    %178 = vector.shape_cast %177 : vector<1x4x16xbf16> to vector<4x16xbf16>
    %179 = vector.extract_strided_slice %1 {offsets = [7, 4, 0], sizes = [1, 4, 16], strides = [1, 1, 1]} : vector<12x12x16xbf16> to vector<1x4x16xbf16>
    %180 = vector.shape_cast %179 : vector<1x4x16xbf16> to vector<4x16xbf16>
    %181 = vector.extract_strided_slice %1 {offsets = [7, 8, 0], sizes = [1, 4, 16], strides = [1, 1, 1]} : vector<12x12x16xbf16> to vector<1x4x16xbf16>
    %182 = vector.shape_cast %181 : vector<1x4x16xbf16> to vector<4x16xbf16>
    %183 = vector.extract_strided_slice %1 {offsets = [11, 0, 0], sizes = [1, 4, 16], strides = [1, 1, 1]} : vector<12x12x16xbf16> to vector<1x4x16xbf16>
    %184 = vector.shape_cast %183 : vector<1x4x16xbf16> to vector<4x16xbf16>
    %185 = vector.extract_strided_slice %1 {offsets = [11, 4, 0], sizes = [1, 4, 16], strides = [1, 1, 1]} : vector<12x12x16xbf16> to vector<1x4x16xbf16>
    %186 = vector.shape_cast %185 : vector<1x4x16xbf16> to vector<4x16xbf16>
    %187 = vector.extract_strided_slice %1 {offsets = [11, 8, 0], sizes = [1, 4, 16], strides = [1, 1, 1]} : vector<12x12x16xbf16> to vector<1x4x16xbf16>
    %188 = vector.shape_cast %187 : vector<1x4x16xbf16> to vector<4x16xbf16>
    %189 = tpu.concatenate %172, %174, %176, %178, %180, %182, %184, %186, %188 in 1 : vector<4x16xbf16>, vector<4x16xbf16>, vector<4x16xbf16>, vector<4x16xbf16>, vector<4x16xbf16>, vector<4x16xbf16>, vector<4x16xbf16>, vector<4x16xbf16>, vector<4x16xbf16> -> vector<4x144xbf16>
    %c0_32 = arith.constant 0 : index
    %c0_33 = arith.constant 0 : index
    %190 = vector.load %arg6[%c0_32, %c0_33] : memref<144x8xbf16, #tpu.memory_space<vmem>>, vector<144x8xbf16>
    %cst_34 = arith.constant dense<0.000000e+00> : vector<4x8xf32>
    %191 = tpu.matmul %189, %190, %cst_34 {dimension_numbers = #tpu.dot_dimension_numbers<[1], [0], [0], [1], [0, 0, 1, 1], [], []>} : vector<4x144xbf16>, vector<144x8xbf16>, vector<4x8xf32> -> vector<4x8xf32>
    %192 = tpu.concatenate %128, %149, %170, %191 in 0 : vector<4x8xf32>, vector<4x8xf32>, vector<4x8xf32>, vector<4x8xf32> -> vector<16x8xf32>
    %c0_35 = arith.constant 0 : index
    %c0_36 = arith.constant 0 : index
    %193 = vector.load %arg7[%c0_35, %c0_36] : memref<1x8xf32, #tpu.memory_space<vmem>>, vector<1x8xf32>
    %194 = vector.broadcast %193 : vector<1x8xf32> to vector<16x8xf32>
    %195 = arith.addf %192, %194 : vector<16x8xf32>
    %cst_37 = arith.constant 0.000000e+00 : f32
    %196 = vector.broadcast %cst_37 : f32 to vector<16x8xf32>
    %197 = arith.maximumf %195, %196 : vector<16x8xf32>
    %198 = arith.extf %10 : vector<16x16xbf16> to vector<16x16xf32>
    %cst_38 = arith.constant dense<0.000000e+00> : vector<16xf32>
    %199 = vector.multi_reduction <add>, %198, %cst_38 [0] : vector<16x16xf32> to vector<16xf32>
    %200 = vector.shape_cast %199 : vector<16xf32> to vector<1x16xf32>
    %cst_39 = arith.constant 1.600000e+01 : f32
    %201 = vector.broadcast %cst_39 : f32 to vector<1x16xf32>
    %202 = arith.divf %200, %201 : vector<1x16xf32>
    %203 = arith.truncf %202 : vector<1x16xf32> to vector<1x16xbf16>
    %c0_40 = arith.constant 0 : index
    %c0_41 = arith.constant 0 : index
    %204 = vector.load %arg8[%c0_40, %c0_41] : memref<16x8xbf16, #tpu.memory_space<vmem>>, vector<16x8xbf16>
    %cst_42 = arith.constant dense<0.000000e+00> : vector<1x8xf32>
    %205 = tpu.matmul %203, %204, %cst_42 {dimension_numbers = #tpu.dot_dimension_numbers<[1], [0], [0], [1], [0, 0, 1, 1], [], []>} : vector<1x16xbf16>, vector<16x8xbf16>, vector<1x8xf32> -> vector<1x8xf32>
    %c0_43 = arith.constant 0 : index
    %c0_44 = arith.constant 0 : index
    %206 = vector.load %arg9[%c0_43, %c0_44] : memref<1x8xf32, #tpu.memory_space<vmem>>, vector<1x8xf32>
    %207 = arith.addf %205, %206 : vector<1x8xf32>
    %cst_45 = arith.constant 0.000000e+00 : f32
    %208 = vector.broadcast %cst_45 : f32 to vector<1x8xf32>
    %209 = arith.maximumf %207, %208 : vector<1x8xf32>
    %210 = tpu.concatenate %17, %107, %197 in 1 : vector<16x8xf32>, vector<16x8xf32>, vector<16x8xf32> -> vector<16x24xf32>
    %211 = arith.truncf %210 : vector<16x24xf32> to vector<16x24xbf16>
    %c0_46 = arith.constant 0 : index
    %c0_47 = arith.constant 0 : index
    %212 = vector.load %arg10[%c0_46, %c0_47] : memref<24x16xbf16, #tpu.memory_space<vmem>>, vector<24x16xbf16>
    %cst_48 = arith.constant dense<0.000000e+00> : vector<16x16xf32>
    %213 = tpu.matmul %211, %212, %cst_48 {dimension_numbers = #tpu.dot_dimension_numbers<[1], [0], [0], [1], [0, 0, 1, 1], [], []>} : vector<16x24xbf16>, vector<24x16xbf16>, vector<16x16xf32> -> vector<16x16xf32>
    %214 = arith.truncf %209 : vector<1x8xf32> to vector<1x8xbf16>
    %c0_49 = arith.constant 0 : index
    %c0_50 = arith.constant 0 : index
    %215 = vector.load %arg11[%c0_49, %c0_50] : memref<8x16xbf16, #tpu.memory_space<vmem>>, vector<8x16xbf16>
    %cst_51 = arith.constant dense<0.000000e+00> : vector<1x16xf32>
    %216 = tpu.matmul %214, %215, %cst_51 {dimension_numbers = #tpu.dot_dimension_numbers<[1], [0], [0], [1], [0, 0, 1, 1], [], []>} : vector<1x8xbf16>, vector<8x16xbf16>, vector<1x16xf32> -> vector<1x16xf32>
    %217 = vector.broadcast %216 : vector<1x16xf32> to vector<16x16xf32>
    %218 = arith.addf %213, %217 : vector<16x16xf32>
    %c0_52 = arith.constant 0 : index
    %c0_53 = arith.constant 0 : index
    %219 = vector.load %arg12[%c0_52, %c0_53] : memref<1x16xf32, #tpu.memory_space<vmem>>, vector<1x16xf32>
    %220 = vector.broadcast %219 : vector<1x16xf32> to vector<16x16xf32>
    %221 = arith.addf %218, %220 : vector<16x16xf32>
    %cst_54 = arith.constant 0.000000e+00 : f32
    %222 = vector.broadcast %cst_54 : f32 to vector<16x16xf32>
    %223 = arith.maximumf %221, %222 : vector<16x16xf32>
    %224 = arith.truncf %223 : vector<16x16xf32> to vector<16x16xbf16>
    %c0_55 = arith.constant 0 : index
    %c0_56 = arith.constant 0 : index
    %225 = vector.load %arg13[%c0_55, %c0_56] : memref<16x21xbf16, #tpu.memory_space<vmem>>, vector<16x21xbf16>
    %cst_57 = arith.constant dense<0.000000e+00> : vector<16x21xf32>
    %226 = tpu.matmul %224, %225, %cst_57 {dimension_numbers = #tpu.dot_dimension_numbers<[1], [0], [0], [1], [0, 0, 1, 1], [], []>} : vector<16x16xbf16>, vector<16x21xbf16>, vector<16x21xf32> -> vector<16x21xf32>
    %c0_58 = arith.constant 0 : index
    %c0_59 = arith.constant 0 : index
    %227 = vector.load %arg14[%c0_58, %c0_59] : memref<1x21xf32, #tpu.memory_space<vmem>>, vector<1x21xf32>
    %228 = vector.broadcast %227 : vector<1x21xf32> to vector<16x21xf32>
    %229 = arith.addf %226, %228 : vector<16x21xf32>
    %230 = arith.truncf %229 : vector<16x21xf32> to vector<16x21xbf16>
    %c0_60 = arith.constant 0 : index
    %c0_61 = arith.constant 0 : index
    %c0_62 = arith.constant 0 : index
    %231 = vector.load %arg15[%c0_60, %c0_61, %c0_62] : memref<1x16x21xbf16, #tpu.memory_space<vmem>>, vector<1x16x21xbf16>
    %232 = vector.shape_cast %231 : vector<1x16x21xbf16> to vector<16x21xbf16>
    %233 = vector.shape_cast %230 : vector<16x21xbf16> to vector<1x16x21xbf16>
    tpu.vector_store %arg15[%c0_60, %c0_61, %c0_62], %233 {strides = array<i32>} : memref<1x16x21xbf16, #tpu.memory_space<vmem>>, vector<1x16x21xbf16>,
    return
  }
  func.func @transform_0(%arg0: i32) -> (i32, i32, i32, i32) {
    %c0_i32 = arith.constant 0 : i32
    %c0_i32_0 = arith.constant 0 : i32
    %c0_i32_1 = arith.constant 0 : i32
    %c0_i32_2 = arith.constant 0 : i32
    return %arg0, %c0_i32, %c0_i32_0, %c0_i32_1 : i32, i32, i32, i32
  }
  func.func @transform_1(%arg0: i32) -> (i32, i32) {
    %c0_i32 = arith.constant 0 : i32
    %c0_i32_0 = arith.constant 0 : i32
    %c0_i32_1 = arith.constant 0 : i32
    return %c0_i32, %c0_i32_0 : i32, i32
  }
  func.func @transform_2(%arg0: i32) -> (i32, i32) {
    %c0_i32 = arith.constant 0 : i32
    %c0_i32_0 = arith.constant 0 : i32
    %c0_i32_1 = arith.constant 0 : i32
    return %c0_i32, %c0_i32_0 : i32, i32
  }
  func.func @transform_3(%arg0: i32) -> (i32, i32) {
    %c0_i32 = arith.constant 0 : i32
    %c0_i32_0 = arith.constant 0 : i32
    %c0_i32_1 = arith.constant 0 : i32
    return %c0_i32, %c0_i32_0 : i32, i32
  }
  func.func @transform_4(%arg0: i32) -> (i32, i32) {
    %c0_i32 = arith.constant 0 : i32
    %c0_i32_0 = arith.constant 0 : i32
    %c0_i32_1 = arith.constant 0 : i32
    return %c0_i32, %c0_i32_0 : i32, i32
  }
  func.func @transform_5(%arg0: i32) -> (i32, i32) {
    %c0_i32 = arith.constant 0 : i32
    %c0_i32_0 = arith.constant 0 : i32
    %c0_i32_1 = arith.constant 0 : i32
    return %c0_i32, %c0_i32_0 : i32, i32
  }
  func.func @transform_6(%arg0: i32) -> (i32, i32) {
    %c0_i32 = arith.constant 0 : i32
    %c0_i32_0 = arith.constant 0 : i32
    %c0_i32_1 = arith.constant 0 : i32
    return %c0_i32, %c0_i32_0 : i32, i32
  }
  func.func @transform_7(%arg0: i32) -> (i32, i32) {
    %c0_i32 = arith.constant 0 : i32
    %c0_i32_0 = arith.constant 0 : i32
    %c0_i32_1 = arith.constant 0 : i32
    return %c0_i32, %c0_i32_0 : i32, i32
  }
  func.func @transform_8(%arg0: i32) -> (i32, i32) {
    %c0_i32 = arith.constant 0 : i32
    %c0_i32_0 = arith.constant 0 : i32
    %c0_i32_1 = arith.constant 0 : i32
    return %c0_i32, %c0_i32_0 : i32, i32
  }
  func.func @transform_9(%arg0: i32) -> (i32, i32) {
    %c0_i32 = arith.constant 0 : i32
    %c0_i32_0 = arith.constant 0 : i32
    %c0_i32_1 = arith.constant 0 : i32
    return %c0_i32, %c0_i32_0 : i32, i32
  }
  func.func @transform_10(%arg0: i32) -> (i32, i32) {
    %c0_i32 = arith.constant 0 : i32
    %c0_i32_0 = arith.constant 0 : i32
    %c0_i32_1 = arith.constant 0 : i32
    return %c0_i32, %c0_i32_0 : i32, i32
  }
  func.func @transform_11(%arg0: i32) -> (i32, i32) {
    %c0_i32 = arith.constant 0 : i32
    %c0_i32_0 = arith.constant 0 : i32
    %c0_i32_1 = arith.constant 0 : i32
    return %c0_i32, %c0_i32_0 : i32, i32
  }
  func.func @transform_12(%arg0: i32) -> (i32, i32) {
    %c0_i32 = arith.constant 0 : i32
    %c0_i32_0 = arith.constant 0 : i32
    %c0_i32_1 = arith.constant 0 : i32
    return %c0_i32, %c0_i32_0 : i32, i32
  }
  func.func @transform_13(%arg0: i32) -> (i32, i32) {
    %c0_i32 = arith.constant 0 : i32
    %c0_i32_0 = arith.constant 0 : i32
    %c0_i32_1 = arith.constant 0 : i32
    return %c0_i32, %c0_i32_0 : i32, i32
  }
  func.func @transform_14(%arg0: i32) -> (i32, i32, i32) {
    %c0_i32 = arith.constant 0 : i32
    %c0_i32_0 = arith.constant 0 : i32
    %c0_i32_1 = arith.constant 0 : i32
    return %arg0, %c0_i32, %c0_i32_0 : i32, i32, i32
  }
}

module attributes {stable_mosaic.version = 11 : i64} {
  func.func @_interp_kernel(%arg0: i32, %arg1: i32, %arg2: memref<8x4xbf16, #tpu.memory_space<vmem>>, %arg3: memref<1x4x84xbf16, #tpu.memory_space<vmem>>, %arg4: memref<1x8x84xbf16, #tpu.memory_space<vmem>>) attributes {dimension_semantics = [#tpu.dimension_semantics<parallel>, #tpu.dimension_semantics<parallel>], iteration_bounds = array<i64: 2, 2>, scalar_prefetch = 0 : i64, scratch_operands = 0 : i64, tpu.core_type = #tpu.core_type<tc>, window_params = [{transform_indices = @transform_0, window_bounds = array<i64: 8, 4>}, {transform_indices = @transform_1, window_bounds = array<i64: 1, 4, 84>}, {transform_indices = @transform_2, window_bounds = array<i64: 1, 8, 84>}]} {
    %c0 = arith.constant 0 : index
    %c0_0 = arith.constant 0 : index
    %0 = vector.load %arg2[%c0, %c0_0] : memref<8x4xbf16, #tpu.memory_space<vmem>>, vector<8x4xbf16>
    %c0_1 = arith.constant 0 : index
    %c0_2 = arith.constant 0 : index
    %c0_3 = arith.constant 0 : index
    %1 = vector.load %arg3[%c0_1, %c0_2, %c0_3] : memref<1x4x84xbf16, #tpu.memory_space<vmem>>, vector<1x4x84xbf16>
    %2 = vector.shape_cast %1 : vector<1x4x84xbf16> to vector<4x84xbf16>
    %cst = arith.constant dense<0.000000e+00> : vector<8x84xf32>
    %3 = tpu.matmul %0, %2, %cst {dimension_numbers = #tpu.dot_dimension_numbers<[1], [0], [0], [1], [0, 0, 1, 1], [], []>} : vector<8x4xbf16>, vector<4x84xbf16>, vector<8x84xf32> -> vector<8x84xf32>
    %4 = arith.truncf %3 : vector<8x84xf32> to vector<8x84xbf16>
    %c0_4 = arith.constant 0 : index
    %c0_5 = arith.constant 0 : index
    %c0_6 = arith.constant 0 : index
    %5 = vector.load %arg4[%c0_4, %c0_5, %c0_6] : memref<1x8x84xbf16, #tpu.memory_space<vmem>>, vector<1x8x84xbf16>
    %6 = vector.shape_cast %5 : vector<1x8x84xbf16> to vector<8x84xbf16>
    %7 = vector.shape_cast %4 : vector<8x84xbf16> to vector<1x8x84xbf16>
    tpu.vector_store %arg4[%c0_4, %c0_5, %c0_6], %7 {strides = array<i32>} : memref<1x8x84xbf16, #tpu.memory_space<vmem>>, vector<1x8x84xbf16>,
    return
  }
  func.func @transform_0(%arg0: i32, %arg1: i32) -> (i32, i32) {
    %c0_i32 = arith.constant 0 : i32
    %c0_i32_0 = arith.constant 0 : i32
    return %arg1, %c0_i32 : i32, i32
  }
  func.func @transform_1(%arg0: i32, %arg1: i32) -> (i32, i32, i32) {
    %c0_i32 = arith.constant 0 : i32
    %c0_i32_0 = arith.constant 0 : i32
    %c0_i32_1 = arith.constant 0 : i32
    return %arg0, %c0_i32, %c0_i32_0 : i32, i32, i32
  }
  func.func @transform_2(%arg0: i32, %arg1: i32) -> (i32, i32, i32) {
    %c0_i32 = arith.constant 0 : i32
    %c0_i32_0 = arith.constant 0 : i32
    return %arg0, %arg1, %c0_i32 : i32, i32, i32
  }
}

module attributes {stable_mosaic.version = 11 : i64} {
  func.func @_interp_kernel(%arg0: i32, %arg1: i32, %arg2: memref<8x4xbf16, #tpu.memory_space<vmem>>, %arg3: memref<1x4x336xbf16, #tpu.memory_space<vmem>>, %arg4: memref<1x8x336xf32, #tpu.memory_space<vmem>>) attributes {dimension_semantics = [#tpu.dimension_semantics<parallel>, #tpu.dimension_semantics<parallel>], iteration_bounds = array<i64: 2, 2>, scalar_prefetch = 0 : i64, scratch_operands = 0 : i64, tpu.core_type = #tpu.core_type<tc>, window_params = [{transform_indices = @transform_0, window_bounds = array<i64: 8, 4>}, {transform_indices = @transform_1, window_bounds = array<i64: 1, 4, 336>}, {transform_indices = @transform_2, window_bounds = array<i64: 1, 8, 336>}]} {
    %c0 = arith.constant 0 : index
    %c0_0 = arith.constant 0 : index
    %0 = vector.load %arg2[%c0, %c0_0] : memref<8x4xbf16, #tpu.memory_space<vmem>>, vector<8x4xbf16>
    %c0_1 = arith.constant 0 : index
    %c0_2 = arith.constant 0 : index
    %c0_3 = arith.constant 0 : index
    %1 = vector.load %arg3[%c0_1, %c0_2, %c0_3] : memref<1x4x336xbf16, #tpu.memory_space<vmem>>, vector<1x4x336xbf16>
    %2 = vector.shape_cast %1 : vector<1x4x336xbf16> to vector<4x336xbf16>
    %cst = arith.constant dense<0.000000e+00> : vector<8x336xf32>
    %3 = tpu.matmul %0, %2, %cst {dimension_numbers = #tpu.dot_dimension_numbers<[1], [0], [0], [1], [0, 0, 1, 1], [], []>} : vector<8x4xbf16>, vector<4x336xbf16>, vector<8x336xf32> -> vector<8x336xf32>
    %c0_4 = arith.constant 0 : index
    %c0_5 = arith.constant 0 : index
    %c0_6 = arith.constant 0 : index
    %4 = vector.load %arg4[%c0_4, %c0_5, %c0_6] : memref<1x8x336xf32, #tpu.memory_space<vmem>>, vector<1x8x336xf32>
    %5 = vector.shape_cast %4 : vector<1x8x336xf32> to vector<8x336xf32>
    %6 = vector.shape_cast %3 : vector<8x336xf32> to vector<1x8x336xf32>
    tpu.vector_store %arg4[%c0_4, %c0_5, %c0_6], %6 {strides = array<i32>} : memref<1x8x336xf32, #tpu.memory_space<vmem>>, vector<1x8x336xf32>,
    return
  }
  func.func @transform_0(%arg0: i32, %arg1: i32) -> (i32, i32) {
    %c0_i32 = arith.constant 0 : i32
    %c0_i32_0 = arith.constant 0 : i32
    return %arg1, %c0_i32 : i32, i32
  }
  func.func @transform_1(%arg0: i32, %arg1: i32) -> (i32, i32, i32) {
    %c0_i32 = arith.constant 0 : i32
    %c0_i32_0 = arith.constant 0 : i32
    %c0_i32_1 = arith.constant 0 : i32
    return %arg0, %c0_i32, %c0_i32_0 : i32, i32, i32
  }
  func.func @transform_2(%arg0: i32, %arg1: i32) -> (i32, i32, i32) {
    %c0_i32 = arith.constant 0 : i32
    %c0_i32_0 = arith.constant 0 : i32
    return %arg0, %arg1, %c0_i32 : i32, i32, i32
  }
}

</mosaic_0001>

<llo_original>
// kernel: wrapped_deeplab_forward.5
$region0: #{wrapped_deeplab_forward.5}
  #allocation0 [shape = 'u32[]', space=smem, size = 0x4, offset = 0x4, fixed_abs, tag = 'smem constant byte address 0x4 - core index']
  #allocation1 [shape = 'u32[144,128]{1,0:T(1,128)}', space=vmem, size = 0x12000, scoped, tag = 'internal scratch']
  #allocation2 [shape = 'f32[64,8]{1,0:T(8,128)}', space=vmem, size = 0x8000, scoped, tag = 'scratch operand']
  %s0 = inlined_call_operand.vmem [shape: bf16[128,27], index: 0, kind: input, shape index: {}]
  %s1 = inlined_call_operand.vmem [shape: bf16[27,8], index: 1, kind: input, shape index: {}]
  %s2 = inlined_call_operand.vmem [shape: f32[1,8], index: 2, kind: input, shape index: {}]
  %s3 = inlined_call_operand.vmem [shape: bf16[128,8], index: 3, kind: output, shape index: {}]
  %s4 = sld [smem:[#allocation0]]
  $region53: #{wrapped_deeplab_forward.5} parent=0
    _
  %s6 = ssub.s32 1, %s4
  %s7 = scalar_select 0, %s6, %s4
  loop: start=0, step=1, limit=4
  $region2: #{wrapped_deeplab_forward.5} parent=0 // loop_pre_header
    _
  $region3: #{wrapped_deeplab_forward.5} parent=0 // loop_header
    %s9 = sphi 0, %s13
    %p10 = scmp.ge.s32.totalorder %s9, 4
    %s16 = sphi 0, %s35
    %s17 = sphi 0, %s31
    %s18 = sphi 0, %s27
    %s19 = sphi 0, %s16
    %s20 = sphi 0, %s17
    %s21 = sphi 0, %s18
    %s22 = sphi 0, %s19
    %s23 = sphi 0, %s20
    %s24 = sphi 0, %s21
    %s40 = sphi 0, %s42
    %s43 = sphi 0, %s40
    %s44 = sphi 0, %s43
    %s60 = sphi 0, %s44
    %s68 = sphi 0, %s70
    %s71 = sphi 0, %s68
    %s72 = sphi 0, %s71
    %s88 = sphi 0, %s72
    %s94 = sphi 0, %s96
    %s97 = sphi 0, %s94
    %s98 = sphi 0, %s97
    %s114 = sphi 0, %s98
    %s122 = sphi 0, %s124
    %s125 = sphi 0, %s122
    %s126 = sphi 0, %s125
    %s142 = sphi 0, %s126
  $region4: #{wrapped_deeplab_forward.5} parent=0 // loop_header_branch
    %12 = sbr.rel (%p10) target = $region8
  $region5: #{wrapped_deeplab_forward.5} parent=0 // loop_body
    %s14 = ssub.s32 %s9, 1
    %s15 = ssub.s32 %s9, 2
    %s25 = sadd.s32 1, %s18
    %p26 = scmp.ge.s32.totalorder %s25, 1
    %s27 = scalar_select %p26, 0, %s25
    %s28 = sadd.s32 1, %s17
    %s29 = scalar_select %p26, %s28, %s17
    %p30 = scmp.ge.s32.totalorder %s29, 1
    %s31 = scalar_select %p30, 0, %s29
    %s32 = sadd.s32 1, %s16
    %s33 = scalar_select %p30, %s32, %s16
    %p34 = scmp.ge.s32.totalorder %s33, 2
    %s35 = scalar_select %p34, 0, %s33
    %s36 = ssub.s32 %s16, %s35
    %s37 = ssub.s32 %s18, %s27
    %s38 = sor.u32 %s36, %s37
    %p39 = scmp.eq.s32.totalorder %s38, 0
    %s41 = sadd.s32 %s40, 1
    %s42 = scalar_select %p39, %s40, %s41
    %p45 = pneg %p39
    %p46 = scmp.eq.s32.totalorder %s9, 1
    %p47 = por %p45, %p46
    %p48 = scmp.ne.s32.totalorder %s40, %s43
    %p49 = scmp.eq.s32.totalorder %s9, 0
    %p50 = por %p48, %p49
    %p51 = scmp.ne.s32.totalorder %s40, %s43
    %p52 = scmp.eq.s32.totalorder %s14, 1
    %p53 = por %p51, %p52
    %p54 = scmp.ne.s32.totalorder %s43, %s44
    %p55 = scmp.eq.s32.totalorder %s14, 0
    %p56 = por %p54, %p55
    %p57 = scmp.ne.s32.totalorder %s43, %s44
    %p58 = scmp.eq.s32.totalorder %s15, 1
    %p59 = por %p57, %p58
    %p61 = scmp.ne.s32.totalorder %s44, %s60
    %p62 = scmp.eq.s32.totalorder %s15, 0
    %p63 = por %p61, %p62
    %s64 = ssub.s32 %s18, %s27
    %s65 = ssub.s32 %s17, %s31
    %s66 = sor.u32 %s64, %s65
    %p67 = scmp.eq.s32.totalorder %s66, 0
    %s69 = sadd.s32 %s68, 1
    %s70 = scalar_select %p67, %s68, %s69
    %p73 = pneg %p67
    %p74 = scmp.eq.s32.totalorder %s9, 1
    %p75 = por %p73, %p74
    %p76 = scmp.ne.s32.totalorder %s68, %s71
    %p77 = scmp.eq.s32.totalorder %s9, 0
    %p78 = por %p76, %p77
    %p79 = scmp.ne.s32.totalorder %s68, %s71
    %p80 = scmp.eq.s32.totalorder %s14, 1
    %p81 = por %p79, %p80
    %p82 = scmp.ne.s32.totalorder %s71, %s72
    %p83 = scmp.eq.s32.totalorder %s14, 0
    %p84 = por %p82, %p83
    %p85 = scmp.ne.s32.totalorder %s71, %s72
    %p86 = scmp.eq.s32.totalorder %s15, 1
    %p87 = por %p85, %p86
    %p89 = scmp.ne.s32.totalorder %s72, %s88
    %p90 = scmp.eq.s32.totalorder %s15, 0
    %p91 = por %p89, %p90
    %s92 = ssub.s32 %s17, %s31
    %p93 = scmp.eq.s32.totalorder %s92, 0
    %s95 = sadd.s32 %s94, 1
    %s96 = scalar_select %p93, %s94, %s95
    %p99 = pneg %p93
    %p100 = scmp.eq.s32.totalorder %s9, 1
    %p101 = por %p99, %p100
    %p102 = scmp.ne.s32.totalorder %s94, %s97
    %p103 = scmp.eq.s32.totalorder %s9, 0
    %p104 = por %p102, %p103
    %p105 = scmp.ne.s32.totalorder %s94, %s97
    %p106 = scmp.eq.s32.totalorder %s14, 1
    %p107 = por %p105, %p106
    %p108 = scmp.ne.s32.totalorder %s97, %s98
    %p109 = scmp.eq.s32.totalorder %s14, 0
    %p110 = por %p108, %p109
    %p111 = scmp.ne.s32.totalorder %s97, %s98
    %p112 = scmp.eq.s32.totalorder %s15, 1
    %p113 = por %p111, %p112
    %p115 = scmp.ne.s32.totalorder %s98, %s114
    %p116 = scmp.eq.s32.totalorder %s15, 0
    %p117 = por %p115, %p116
    %s118 = ssub.s32 %s16, %s35
    %s119 = ssub.s32 %s17, %s31
    %s120 = sor.u32 %s118, %s119
    %p121 = scmp.eq.s32.totalorder %s120, 0
    %s123 = sadd.s32 %s122, 1
    %s124 = scalar_select %p121, %s122, %s123
    %p127 = pneg %p121
    %p128 = scmp.eq.s32.totalorder %s9, 1
    %p129 = por %p127, %p128
    %p130 = scmp.ne.s32.totalorder %s122, %s125
    %p131 = scmp.eq.s32.totalorder %s9, 0
    %p132 = por %p130, %p131
    %p133 = scmp.ne.s32.totalorder %s122, %s125
    %p134 = scmp.eq.s32.totalorder %s14, 1
    %p135 = por %p133, %p134
    %p136 = scmp.ne.s32.totalorder %s125, %s126
    %p137 = scmp.eq.s32.totalorder %s14, 0
    %p138 = por %p136, %p137
    %p139 = scmp.ne.s32.totalorder %s125, %s126
    %p140 = scmp.eq.s32.totalorder %s15, 1
    %p141 = por %p139, %p140
    %p143 = scmp.ne.s32.totalorder %s126, %s142
    %p144 = scmp.eq.s32.totalorder %s15, 0
    %p145 = por %p143, %p144
    %p146 = scmp.le.s32.totalorder 1, %s9
    %p147 = scmp.lt.s32.totalorder %s9, 3
    %p148 = pnand %p146, %p147
    %p149 = pneg %p148
    // Predicated region
    $region9: #{wrapped_deeplab_forward.5} parent=5 // pred_check
      _
    $region10: #{wrapped_deeplab_forward.5} parent=5 // pred_check_branch
      %151 = sbr.rel (%p148) target = $region12
    $region11: #{wrapped_deeplab_forward.5} parent=5 // pred_region
      %s152 = ssub.s32 %s9, 1
      // Predicated region
      $region13: #{wrapped_deeplab_forward.5} parent=11 // pred_check
        %p153 = pneg %p84
      $region14: #{wrapped_deeplab_forward.5} parent=11 // pred_check_branch
        %155 = sbr.rel (%p153) target = $region16
      $region15: #{wrapped_deeplab_forward.5} parent=11 // pred_region
        %s156 = smul.u32 4, %s21
        %p157 = scmp.lt.s32.totalorder %s156, 3
        %s158 = scalar_select %p157, %s156, 3
        %p159 = scmp.lt.s32.totalorder %s20, 0
        %s160 = scalar_select %p159, %s20, 0
        %s161 = sadd.s32 %s160, %s158
        %s162 = smul.addr %s161, 4
        %s163 = scalar_lea.vmem %s1, %s162
        %s164 = smul.u32 4, %s21
      $region16: #{wrapped_deeplab_forward.5} parent=11 // pred_fallthru
        _
      // Predicated region
      $region17: #{wrapped_deeplab_forward.5} parent=11 // pred_check
        %p165 = pneg %p110
      $region18: #{wrapped_deeplab_forward.5} parent=11 // pred_check_branch
        %167 = sbr.rel (%p165) target = $region20
      $region19: #{wrapped_deeplab_forward.5} parent=11 // pred_region
        %p168 = scmp.lt.s32.totalorder %s20, 0
        %s169 = scalar_select %p168, %s20, 0
        %s170 = scalar_lea.vmem %s2, %s169
      $region20: #{wrapped_deeplab_forward.5} parent=11 // pred_fallthru
        _
    $region12: #{wrapped_deeplab_forward.5} parent=5 // pred_fallthru
      _
    %p171 = scmp.lt.s32.totalorder %s9, 2
    // Predicated region
    $region21: #{wrapped_deeplab_forward.5} parent=5 // pred_check
      %p172 = pneg %p171
    $region22: #{wrapped_deeplab_forward.5} parent=5 // pred_check_branch
      %174 = sbr.rel (%p172) target = $region24
    $region23: #{wrapped_deeplab_forward.5} parent=5 // pred_region
      // Predicated region
      $region25: #{wrapped_deeplab_forward.5} parent=23 // pred_check
        %p175 = pneg %p50
      $region26: #{wrapped_deeplab_forward.5} parent=23 // pred_check_branch
        %177 = sbr.rel (%p175) target = $region28
      $region27: #{wrapped_deeplab_forward.5} parent=23 // pred_region
        %s178 = smul.u32 8, %s16
        %p179 = scmp.lt.s32.totalorder %s178, 15
        %s180 = scalar_select %p179, %s178, 15
        %p181 = scmp.lt.s32.totalorder %s18, 0
        %s182 = scalar_select %p181, %s18, 0
        %s183 = sadd.s32 %s182, %s180
        %s184 = smul.addr %s183, 4
        %s185 = scalar_lea.vmem %s0, %s184
        %s186 = smul.u32 8, %s16
      $region28: #{wrapped_deeplab_forward.5} parent=23 // pred_fallthru
        _
    $region24: #{wrapped_deeplab_forward.5} parent=5 // pred_fallthru
      _
    %p187 = scmp.le.s32.totalorder 1, %s9
    %p188 = scmp.lt.s32.totalorder %s9, 3
    %p189 = pnand %p187, %p188
    %p190 = pneg %p189
    // Predicated region
    $region29: #{wrapped_deeplab_forward.5} parent=5 // pred_check
      _
    $region30: #{wrapped_deeplab_forward.5} parent=5 // pred_check_branch
      %192 = sbr.rel (%p189) target = $region32
    $region31: #{wrapped_deeplab_forward.5} parent=5 // pred_region
      %s193 = ssub.s32 %s9, 1
      %s194 = smul.u32 8, %s19
      %p195 = scmp.lt.s32.totalorder %s194, 15
      %s196 = scalar_select %p195, %s194, 15
      %p197 = scmp.lt.s32.totalorder %s21, 0
      %s198 = scalar_select %p197, %s21, 0
      %s199 = sadd.s32 %s198, %s196
      %s200 = smul.addr %s199, 4
      %s201 = scalar_lea.vmem %s0, %s200
      %p202 = pneg %p56
      %p203 = pneg %p53
      %s204 = smul.u32 4, %s21
      %p205 = scmp.lt.s32.totalorder %s204, 3
      %s206 = scalar_select %p205, %s204, 3
      %p207 = scmp.lt.s32.totalorder %s20, 0
      %s208 = scalar_select %p207, %s20, 0
      %s209 = sadd.s32 %s208, %s206
      %s210 = smul.addr %s209, 4
      %s211 = scalar_lea.vmem %s1, %s210
      %p212 = pneg %p84
      %p213 = pneg %p81
      %p214 = scmp.lt.s32.totalorder %s20, 0
      %s215 = scalar_select %p214, %s20, 0
      %s216 = scalar_lea.vmem %s2, %s215
      %p217 = pneg %p110
      %p218 = pneg %p107
      %p219 = pneg %p138
      %p220 = pneg %p135
      %s221 = smul.u32 8, %s19
      %p222 = scmp.lt.s32.totalorder %s221, 15
      %s223 = scalar_select %p222, %s221, 15
      %p224 = scmp.lt.s32.totalorder %s20, 0
      %s225 = scalar_select %p224, %s20, 0
      %s226 = sadd.s32 %s225, %s223
      %s227 = smul.addr %s226, 4
      %s228 = scalar_lea.vmem %s3, %s227
      %s229 = smul.u32 8, %s19
      %p230 = scmp.lt.s32.totalorder %s229, 15
      %s231 = scalar_select %p230, %s229, 15
      %p232 = scmp.lt.s32.totalorder %s21, 0
      %s233 = scalar_select %p232, %s21, 0
      %s234 = sadd.s32 %s233, %s231
      %s235 = smul.addr %s234, 4
      %s236 = scalar_lea.vmem %s0, %s235
      %s237 = smul.u32 8, %s19
      %s238 = smul.u32 4, %s21
      %p239 = scmp.lt.s32.totalorder %s238, 3
      %s240 = scalar_select %p239, %s238, 3
      %p241 = scmp.lt.s32.totalorder %s20, 0
      %s242 = scalar_select %p241, %s20, 0
      %s243 = sadd.s32 %s242, %s240
      %s244 = smul.addr %s243, 4
      %s245 = scalar_lea.vmem %s1, %s244
      %s246 = smul.u32 4, %s21
      %p247 = scmp.lt.s32.totalorder %s20, 0
      %s248 = scalar_select %p247, %s20, 0
      %s249 = scalar_lea.vmem %s2, %s248
      %s250 = smul.u32 8, %s19
      %p251 = scmp.lt.s32.totalorder %s250, 15
      %s252 = scalar_select %p251, %s250, 15
      %p253 = scmp.lt.s32.totalorder %s20, 0
      %s254 = scalar_select %p253, %s20, 0
      %s255 = sadd.s32 %s254, %s252
      %s256 = smul.addr %s255, 4
      %s257 = scalar_lea.vmem %s3, %s256
      %s258 = smul.u32 8, %s19
      %p260 = scmp.eq.s32.totalorder %s21, 0
      // Predicated region
      $region33: #{wrapped_deeplab_forward.5} parent=31 // pred_check
        %p261 = pneg %p260
      $region34: #{wrapped_deeplab_forward.5} parent=31 // pred_check_branch
        %263 = sbr.rel (%p261) target = $region36
      $region35: #{wrapped_deeplab_forward.5} parent=31 // pred_region
        %vm264 = vcmask 64512
        %265 = vst.msk [vmem:[#allocation2] sm:$0xff] %vm264, 0.0
        %266 = vst.msk [vmem:[#allocation2 + $0x8] sm:$0xff] %vm264, 0.0
        %267 = vst.msk [vmem:[#allocation2 + $0x10] sm:$0xff] %vm264, 0.0
        %268 = vst.msk [vmem:[#allocation2 + $0x18] sm:$0xff] %vm264, 0.0
        %269 = vst.msk [vmem:[#allocation2 + $0x20] sm:$0xff] %vm264, 0.0
        %270 = vst.msk [vmem:[#allocation2 + $0x28] sm:$0xff] %vm264, 0.0
        %271 = vst.msk [vmem:[#allocation2 + $0x30] sm:$0xff] %vm264, 0.0
        %272 = vst.msk [vmem:[#allocation2 + $0x38] sm:$0xff] %vm264, 0.0
      $region36: #{wrapped_deeplab_forward.5} parent=31 // pred_fallthru
        _
      %v273 = vld [vmem:[#allocation2] sm:$0xff]
      %v274 = vld [vmem:[#allocation2 + $0x8] sm:$0xff]
      %v275 = vld [vmem:[#allocation2 + $0x10] sm:$0xff]
      %v276 = vld [vmem:[#allocation2 + $0x18] sm:$0xff]
      %v277 = vld [vmem:[#allocation2 + $0x20] sm:$0xff]
      %v278 = vld [vmem:[#allocation2 + $0x28] sm:$0xff]
      %v279 = vld [vmem:[#allocation2 + $0x30] sm:$0xff]
      %v280 = vld [vmem:[#allocation2 + $0x38] sm:$0xff]
      %v281 = vld [vmem:[%s236] sm:$0xf]
      %v282 = vld [vmem:[%s236 + $0x4] sm:$0xf]
      %v283 = vld [vmem:[%s236 + $0x8] sm:$0xf]
      %v284 = vld [vmem:[%s236 + $0xc] sm:$0xf]
      %v285 = vld [vmem:[%s236 + $0x10] sm:$0xf]
      %v286 = vld [vmem:[%s236 + $0x14] sm:$0xf]
      %v287 = vld [vmem:[%s236 + $0x18] sm:$0xf]
      %v288 = vld [vmem:[%s236 + $0x1c] sm:$0xf]
      %v289 = vld [vmem:[%s245] sm:$0xf]
      %v290 = vld [vmem:[%s245 + $0x4] sm:$0xf]
      %v291 = vld [vmem:[%s245 + $0x8] sm:$0xf]
      %v292 = vld [vmem:[%s245 + $0xc] sm:$0x3]
      %v301 = vunpack.c.l.b16 %v281
      %v302 = vunpack.c.l.b16 %v282
      %v303 = vunpack.c.l.b16 %v283
      %v304 = vunpack.c.l.b16 %v284
      %v305 = vunpack.c.l.b16 %v285
      %v306 = vunpack.c.l.b16 %v286
      %v307 = vunpack.c.l.b16 %v287
      %v308 = vunpack.c.l.b16 %v288
      %v309 = vpack.c.b16 %v302, %v301
      %v310 = vpack.c.b16 %v304, %v303
      %v311 = vpack.c.b16 %v306, %v305
      %v312 = vpack.c.b16 %v308, %v307
      %v317 = vunpack.c.l.b16 %v289
      %v318 = vunpack.c.l.b16 %v290
      %v319 = vunpack.c.l.b16 %v291
      %v320 = vunpack.c.l.b16 %v292
      %v321 = vpack.c.b16 %v318, %v317
      %v322 = vpack.c.b16 %v320, %v319
      %vm324 = vcmask 220160
      %v326 = vsel %vm324, %v309, 0
      %v329 = vsel %vm324, %v310, 0
      %v332 = vsel %vm324, %v311, 0
      %v335 = vsel %vm324, %v312, 0
      %vm337 = vcmask 1044480
      %vm338 = vcmask 1045504
      %v339 = vsel %vm337, 4294967295, 65535
      %v340 = vsel %vm338, %v339, 0
      %v342 = vand.u32 %v322, %v340
      %344 = vmatprep.subr.bf16.mxu0 0
      %345 = vmatpush1.bf16.msra.mxu0 %v321
      %346 = vmatprep.subr.bf16.mxu0 0
      %347 = vmatpush1.bf16.msra.mxu0 %v342
      %348 = vmatprep.subr.bf16.mxu0 0
      %349 = vmatpush1.bf16.msra.mxu0 0
      %350 = vmatprep.subr.bf16.mxu0 0
      %351 = vmatpush1.bf16.msra.mxu0 0
      %352 = vmatprep.subr.bf16.mxu0 0
      %353 = vmatpush1.bf16.msra.mxu0 0
      %354 = vmatprep.subr.bf16.mxu0 0
      %355 = vmatpush1.bf16.msra.mxu0 0
      %356 = vmatprep.subr.bf16.mxu0 0
      %357 = vmatpush1.bf16.msra.mxu0 0
      %358 = vmatprep.subr.bf16.mxu0 0
      %359 = vmatpush1.bf16.msra.mxu0 0
      %360 = vmatprep.subr.bf16.mxu0 0
      %361 = vmatpush1.bf16.msra.mxu0 0
      %362 = vmatprep.subr.bf16.mxu0 0
      %363 = vmatpush1.bf16.msra.mxu0 0
      %364 = vmatprep.subr.bf16.mxu0 0
      %365 = vmatpush1.bf16.msra.mxu0 0
      %366 = vmatprep.subr.bf16.mxu0 0
      %367 = vmatpush1.bf16.msra.mxu0 0
      %368 = vmatprep.subr.bf16.mxu0 0
      %369 = vmatpush1.bf16.msra.mxu0 0
      %370 = vmatprep.subr.bf16.mxu0 0
      %371 = vmatpush1.bf16.msra.mxu0 0
      %372 = vmatprep.subr.bf16.mxu0 0
      %373 = vmatpush1.bf16.msra.mxu0 0
      %374 = vmatprep.subr.bf16.mxu0 0
      %375 = vmatpush1.bf16.msra.mxu0 0
      %376 = vmatprep.mubr.bf16.mxu0 0
      %377 = vmatmul.mubr.bf16.gmra.mrb[0].mxu0 %v326
      %v378 = vpop.f32.mrb[0].mxu0
      %v379 = vadd.f32 0.0, %v378
      %v380 = vpop.f32.mrb[0].mxu0
      %v381 = vpop.f32.mrb[0].mxu0
      %v382 = vadd.f32 0.0, %v381
      %v383 = vpop.f32.mrb[0].mxu0
      %384 = vmatprep.mubr.bf16.mxu0 0
      %385 = vmatmul.mubr.bf16.gmra.mrb[0].mxu0 %v329
      %v386 = vpop.f32.mrb[0].mxu0
      %v387 = vadd.f32 0.0, %v386
      %v388 = vpop.f32.mrb[0].mxu0
      %v389 = vpop.f32.mrb[0].mxu0
      %v390 = vadd.f32 0.0, %v389
      %v391 = vpop.f32.mrb[0].mxu0
      %392 = vmatprep.mubr.bf16.mxu0 0
      %393 = vmatmul.mubr.bf16.gmra.mrb[0].mxu0 %v332
      %v394 = vpop.f32.mrb[0].mxu0
      %v395 = vadd.f32 0.0, %v394
      %v396 = vpop.f32.mrb[0].mxu0
      %v397 = vpop.f32.mrb[0].mxu0
      %v398 = vadd.f32 0.0, %v397
      %v399 = vpop.f32.mrb[0].mxu0
      %400 = vmatprep.mubr.bf16.mxu0 0
      %401 = vmatmul.mubr.bf16.gmra.mrb[0].mxu0 %v335
      %v402 = vpop.f32.mrb[0].mxu0
      %v403 = vadd.f32 0.0, %v402
      %v404 = vpop.f32.mrb[0].mxu0
      %v405 = vpop.f32.mrb[0].mxu0
      %v406 = vadd.f32 0.0, %v405
      %v407 = vpop.f32.mrb[0].mxu0
      %408 = vdwg.mxu0
      %v409 = vadd.f32 %v273, %v379
      %v410 = vadd.f32 %v274, %v382
      %v411 = vadd.f32 %v275, %v387
      %v412 = vadd.f32 %v276, %v390
      %v413 = vadd.f32 %v277, %v395
      %v414 = vadd.f32 %v278, %v398
      %v415 = vadd.f32 %v279, %v403
      %v416 = vadd.f32 %v280, %v406
      %vm417 = vcmask 64512
      %418 = vst.msk [vmem:[#allocation2] sm:$0xff] %vm417, %v409
      %419 = vst.msk [vmem:[#allocation2 + $0x8] sm:$0xff] %vm417, %v410
      %420 = vst.msk [vmem:[#allocation2 + $0x10] sm:$0xff] %vm417, %v411
      %421 = vst.msk [vmem:[#allocation2 + $0x18] sm:$0xff] %vm417, %v412
      %422 = vst.msk [vmem:[#allocation2 + $0x20] sm:$0xff] %vm417, %v413
      %423 = vst.msk [vmem:[#allocation2 + $0x28] sm:$0xff] %vm417, %v414
      %424 = vst.msk [vmem:[#allocation2 + $0x30] sm:$0xff] %vm417, %v415
      %425 = vst.msk [vmem:[#allocation2 + $0x38] sm:$0xff] %vm417, %v416
      // Predicated region
      $region37: #{wrapped_deeplab_forward.5} parent=31 // pred_check
        %p426 = pneg %p260
      $region38: #{wrapped_deeplab_forward.5} parent=31 // pred_check_branch
        %428 = sbr.rel (%p426) target = $region40
      $region39: #{wrapped_deeplab_forward.5} parent=31 // pred_region
        %v429 = vld [vmem:[#allocation2] sm:$0xff]
        %v430 = vld [vmem:[#allocation2 + $0x8] sm:$0xff]
        %v431 = vld [vmem:[#allocation2 + $0x10] sm:$0xff]
        %v432 = vld [vmem:[#allocation2 + $0x18] sm:$0xff]
        %v433 = vld [vmem:[#allocation2 + $0x20] sm:$0xff]
        %v434 = vld [vmem:[#allocation2 + $0x28] sm:$0xff]
        %v435 = vld [vmem:[#allocation2 + $0x30] sm:$0xff]
        %v436 = vld [vmem:[#allocation2 + $0x38] sm:$0xff]
        %v437 = vld [vmem:[%s249] sm:$0x1]
        %v439 = vlaneseq
        %v440 = vshrl.u32 %v439, 7
        %v441 = vsub.s32 0, %v440
        %v442 = vrot.slane %v437, %v441
        %v444 = vadd.f32 %v429, %v442
        %v445 = vadd.f32 %v430, %v442
        %v446 = vadd.f32 %v431, %v442
        %v447 = vadd.f32 %v432, %v442
        %v448 = vadd.f32 %v433, %v442
        %v449 = vadd.f32 %v434, %v442
        %v450 = vadd.f32 %v435, %v442
        %v451 = vadd.f32 %v436, %v442
        %v452 = vmax.f32 %v444, 0.0
        %v453 = vmax.f32 %v445, 0.0
        %v454 = vmax.f32 %v446, 0.0
        %v455 = vmax.f32 %v447, 0.0
        %v456 = vmax.f32 %v448, 0.0
        %v457 = vmax.f32 %v449, 0.0
        %v458 = vmax.f32 %v450, 0.0
        %v459 = vmax.f32 %v451, 0.0
        %v460 = vpack.c.bf16 %v453, %v452
        %v461 = vpack.c.bf16 %v455, %v454
        %v462 = vpack.c.bf16 %v457, %v456
        %v463 = vpack.c.bf16 %v459, %v458
        %v468 = vunpack.c.l.b16 %v460
        %v469 = vunpack.c.h.b16 %v460
        %v470 = vunpack.c.l.b16 %v461
        %v471 = vunpack.c.h.b16 %v461
        %v472 = vunpack.c.l.b16 %v462
        %v473 = vunpack.c.h.b16 %v462
        %v474 = vunpack.c.l.b16 %v463
        %v475 = vunpack.c.h.b16 %v463
        %v476 = vpack.c.b16 %v468, %v468
        %v477 = vpack.c.b16 %v469, %v469
        %v478 = vpack.c.b16 %v470, %v470
        %v479 = vpack.c.b16 %v471, %v471
        %v480 = vpack.c.b16 %v472, %v472
        %v481 = vpack.c.b16 %v473, %v473
        %v482 = vpack.c.b16 %v474, %v474
        %v483 = vpack.c.b16 %v475, %v475
        %vm492 = vcmask 60416
        %493 = vst.msk [vmem:[%s257] sm:$0xf] %vm492, %v476
        %494 = vst.msk [vmem:[%s257 + $0x4] sm:$0xf] %vm492, %v477
        %495 = vst.msk [vmem:[%s257 + $0x8] sm:$0xf] %vm492, %v478
        %496 = vst.msk [vmem:[%s257 + $0xc] sm:$0xf] %vm492, %v479
        %497 = vst.msk [vmem:[%s257 + $0x10] sm:$0xf] %vm492, %v480
        %498 = vst.msk [vmem:[%s257 + $0x14] sm:$0xf] %vm492, %v481
        %499 = vst.msk [vmem:[%s257 + $0x18] sm:$0xf] %vm492, %v482
        %500 = vst.msk [vmem:[%s257 + $0x1c] sm:$0xf] %vm492, %v483
      $region40: #{wrapped_deeplab_forward.5} parent=31 // pred_fallthru
        _
      %s501 = smul.u32 8, %s19
      %p502 = scmp.lt.s32.totalorder %s501, 15
      %s503 = scalar_select %p502, %s501, 15
      %p504 = scmp.lt.s32.totalorder %s20, 0
      %s505 = scalar_select %p504, %s20, 0
      %s506 = sadd.s32 %s505, %s503
      %s507 = smul.addr %s506, 4
      %s508 = scalar_lea.vmem %s3, %s507
      // Predicated region
      $region41: #{wrapped_deeplab_forward.5} parent=31 // pred_check
        %p509 = pneg %p135
      $region42: #{wrapped_deeplab_forward.5} parent=31 // pred_check_branch
        %511 = sbr.rel (%p509) target = $region44
      $region43: #{wrapped_deeplab_forward.5} parent=31 // pred_region
        %s512 = smul.u32 8, %s19
      $region44: #{wrapped_deeplab_forward.5} parent=31 // pred_fallthru
        _
    $region32: #{wrapped_deeplab_forward.5} parent=5 // pred_fallthru
      _
    %p513 = scmp.le.s32.totalorder 2, %s9
    // Predicated region
    $region45: #{wrapped_deeplab_forward.5} parent=5 // pred_check
      %p514 = pneg %p513
    $region46: #{wrapped_deeplab_forward.5} parent=5 // pred_check_branch
      %516 = sbr.rel (%p514) target = $region48
    $region47: #{wrapped_deeplab_forward.5} parent=5 // pred_region
      %s517 = ssub.s32 %s9, 2
      // Predicated region
      $region49: #{wrapped_deeplab_forward.5} parent=47 // pred_check
        %p518 = pneg %p141
      $region50: #{wrapped_deeplab_forward.5} parent=47 // pred_check_branch
        %520 = sbr.rel (%p518) target = $region52
      $region51: #{wrapped_deeplab_forward.5} parent=47 // pred_region
        %s521 = smul.u32 8, %s22
        %p522 = scmp.lt.s32.totalorder %s521, 15
        %s523 = scalar_select %p522, %s521, 15
        %p524 = scmp.lt.s32.totalorder %s23, 0
        %s525 = scalar_select %p524, %s23, 0
        %s526 = sadd.s32 %s525, %s523
        %s527 = smul.addr %s526, 4
        %s528 = scalar_lea.vmem %s3, %s527
      $region52: #{wrapped_deeplab_forward.5} parent=47 // pred_fallthru
        _
    $region48: #{wrapped_deeplab_forward.5} parent=5 // pred_fallthru
      _
  $region6: #{wrapped_deeplab_forward.5} parent=0 // loop_footer
    %s13 = sadd.s32 1, %s9
  $region7: #{wrapped_deeplab_forward.5} parent=0 // loop_footer_branch
    %8 = sbr.rel target = $region3
  $region8: #{wrapped_deeplab_forward.5} parent=0 // loop_exit
    _

// kernel: wrapped_deeplab_forward.6
$region0: #{wrapped_deeplab_forward.6}
  #allocation0 [shape = 'u32[]', space=smem, size = 0x4, offset = 0x4, fixed_abs, tag = 'smem constant byte address 0x4 - core index']
  #allocation1 [shape = 'u32[144,128]{1,0:T(1,128)}', space=vmem, size = 0x12000, scoped, tag = 'internal scratch']
  #allocation2 [shape = 'f32[16,16]{1,0:T(8,128)}', space=vmem, size = 0x2000, scoped, tag = 'scratch operand']
  %s0 = inlined_call_operand.vmem [shape: bf16[32,72], index: 0, kind: input, shape index: {}]
  %s1 = inlined_call_operand.vmem [shape: bf16[72,16], index: 1, kind: input, shape index: {}]
  %s2 = inlined_call_operand.vmem [shape: f32[1,16], index: 2, kind: input, shape index: {}]
  %s3 = inlined_call_operand.vmem [shape: bf16[32,16], index: 3, kind: output, shape index: {}]
  %s4 = sld [smem:[#allocation0]]
  $region53: #{wrapped_deeplab_forward.6} parent=0
    _
  %s6 = ssub.s32 1, %s4
  %s7 = scalar_select 0, %s6, %s4
  loop: start=0, step=1, limit=4
  $region2: #{wrapped_deeplab_forward.6} parent=0 // loop_pre_header
    _
  $region3: #{wrapped_deeplab_forward.6} parent=0 // loop_header
    %s9 = sphi 0, %s13
    %p10 = scmp.ge.s32.totalorder %s9, 4
    %s16 = sphi 0, %s35
    %s17 = sphi 0, %s31
    %s18 = sphi 0, %s27
    %s19 = sphi 0, %s16
    %s20 = sphi 0, %s17
    %s21 = sphi 0, %s18
    %s22 = sphi 0, %s19
    %s23 = sphi 0, %s20
    %s24 = sphi 0, %s21
    %s40 = sphi 0, %s42
    %s43 = sphi 0, %s40
    %s44 = sphi 0, %s43
    %s60 = sphi 0, %s44
    %s68 = sphi 0, %s70
    %s71 = sphi 0, %s68
    %s72 = sphi 0, %s71
    %s88 = sphi 0, %s72
    %s94 = sphi 0, %s96
    %s97 = sphi 0, %s94
    %s98 = sphi 0, %s97
    %s114 = sphi 0, %s98
    %s122 = sphi 0, %s124
    %s125 = sphi 0, %s122
    %s126 = sphi 0, %s125
    %s142 = sphi 0, %s126
  $region4: #{wrapped_deeplab_forward.6} parent=0 // loop_header_branch
    %12 = sbr.rel (%p10) target = $region8
  $region5: #{wrapped_deeplab_forward.6} parent=0 // loop_body
    %s14 = ssub.s32 %s9, 1
    %s15 = ssub.s32 %s9, 2
    %s25 = sadd.s32 1, %s18
    %p26 = scmp.ge.s32.totalorder %s25, 1
    %s27 = scalar_select %p26, 0, %s25
    %s28 = sadd.s32 1, %s17
    %s29 = scalar_select %p26, %s28, %s17
    %p30 = scmp.ge.s32.totalorder %s29, 1
    %s31 = scalar_select %p30, 0, %s29
    %s32 = sadd.s32 1, %s16
    %s33 = scalar_select %p30, %s32, %s16
    %p34 = scmp.ge.s32.totalorder %s33, 2
    %s35 = scalar_select %p34, 0, %s33
    %s36 = ssub.s32 %s16, %s35
    %s37 = ssub.s32 %s18, %s27
    %s38 = sor.u32 %s36, %s37
    %p39 = scmp.eq.s32.totalorder %s38, 0
    %s41 = sadd.s32 %s40, 1
    %s42 = scalar_select %p39, %s40, %s41
    %p45 = pneg %p39
    %p46 = scmp.eq.s32.totalorder %s9, 1
    %p47 = por %p45, %p46
    %p48 = scmp.ne.s32.totalorder %s40, %s43
    %p49 = scmp.eq.s32.totalorder %s9, 0
    %p50 = por %p48, %p49
    %p51 = scmp.ne.s32.totalorder %s40, %s43
    %p52 = scmp.eq.s32.totalorder %s14, 1
    %p53 = por %p51, %p52
    %p54 = scmp.ne.s32.totalorder %s43, %s44
    %p55 = scmp.eq.s32.totalorder %s14, 0
    %p56 = por %p54, %p55
    %p57 = scmp.ne.s32.totalorder %s43, %s44
    %p58 = scmp.eq.s32.totalorder %s15, 1
    %p59 = por %p57, %p58
    %p61 = scmp.ne.s32.totalorder %s44, %s60
    %p62 = scmp.eq.s32.totalorder %s15, 0
    %p63 = por %p61, %p62
    %s64 = ssub.s32 %s18, %s27
    %s65 = ssub.s32 %s17, %s31
    %s66 = sor.u32 %s64, %s65
    %p67 = scmp.eq.s32.totalorder %s66, 0
    %s69 = sadd.s32 %s68, 1
    %s70 = scalar_select %p67, %s68, %s69
    %p73 = pneg %p67
    %p74 = scmp.eq.s32.totalorder %s9, 1
    %p75 = por %p73, %p74
    %p76 = scmp.ne.s32.totalorder %s68, %s71
    %p77 = scmp.eq.s32.totalorder %s9, 0
    %p78 = por %p76, %p77
    %p79 = scmp.ne.s32.totalorder %s68, %s71
    %p80 = scmp.eq.s32.totalorder %s14, 1
    %p81 = por %p79, %p80
    %p82 = scmp.ne.s32.totalorder %s71, %s72
    %p83 = scmp.eq.s32.totalorder %s14, 0
    %p84 = por %p82, %p83
    %p85 = scmp.ne.s32.totalorder %s71, %s72
    %p86 = scmp.eq.s32.totalorder %s15, 1
    %p87 = por %p85, %p86
    %p89 = scmp.ne.s32.totalorder %s72, %s88
    %p90 = scmp.eq.s32.totalorder %s15, 0
    %p91 = por %p89, %p90
    %s92 = ssub.s32 %s17, %s31
    %p93 = scmp.eq.s32.totalorder %s92, 0
    %s95 = sadd.s32 %s94, 1
    %s96 = scalar_select %p93, %s94, %s95
    %p99 = pneg %p93
    %p100 = scmp.eq.s32.totalorder %s9, 1
    %p101 = por %p99, %p100
    %p102 = scmp.ne.s32.totalorder %s94, %s97
    %p103 = scmp.eq.s32.totalorder %s9, 0
    %p104 = por %p102, %p103
    %p105 = scmp.ne.s32.totalorder %s94, %s97
    %p106 = scmp.eq.s32.totalorder %s14, 1
    %p107 = por %p105, %p106
    %p108 = scmp.ne.s32.totalorder %s97, %s98
    %p109 = scmp.eq.s32.totalorder %s14, 0
    %p110 = por %p108, %p109
    %p111 = scmp.ne.s32.totalorder %s97, %s98
    %p112 = scmp.eq.s32.totalorder %s15, 1
    %p113 = por %p111, %p112
    %p115 = scmp.ne.s32.totalorder %s98, %s114
    %p116 = scmp.eq.s32.totalorder %s15, 0
    %p117 = por %p115, %p116
    %s118 = ssub.s32 %s16, %s35
    %s119 = ssub.s32 %s17, %s31
    %s120 = sor.u32 %s118, %s119
    %p121 = scmp.eq.s32.totalorder %s120, 0
    %s123 = sadd.s32 %s122, 1
    %s124 = scalar_select %p121, %s122, %s123
    %p127 = pneg %p121
    %p128 = scmp.eq.s32.totalorder %s9, 1
    %p129 = por %p127, %p128
    %p130 = scmp.ne.s32.totalorder %s122, %s125
    %p131 = scmp.eq.s32.totalorder %s9, 0
    %p132 = por %p130, %p131
    %p133 = scmp.ne.s32.totalorder %s122, %s125
    %p134 = scmp.eq.s32.totalorder %s14, 1
    %p135 = por %p133, %p134
    %p136 = scmp.ne.s32.totalorder %s125, %s126
    %p137 = scmp.eq.s32.totalorder %s14, 0
    %p138 = por %p136, %p137
    %p139 = scmp.ne.s32.totalorder %s125, %s126
    %p140 = scmp.eq.s32.totalorder %s15, 1
    %p141 = por %p139, %p140
    %p143 = scmp.ne.s32.totalorder %s126, %s142
    %p144 = scmp.eq.s32.totalorder %s15, 0
    %p145 = por %p143, %p144
    %p146 = scmp.le.s32.totalorder 1, %s9
    %p147 = scmp.lt.s32.totalorder %s9, 3
    %p148 = pnand %p146, %p147
    %p149 = pneg %p148
    // Predicated region
    $region9: #{wrapped_deeplab_forward.6} parent=5 // pred_check
      _
    $region10: #{wrapped_deeplab_forward.6} parent=5 // pred_check_branch
      %151 = sbr.rel (%p148) target = $region12
    $region11: #{wrapped_deeplab_forward.6} parent=5 // pred_region
      %s152 = ssub.s32 %s9, 1
      // Predicated region
      $region13: #{wrapped_deeplab_forward.6} parent=11 // pred_check
        %p153 = pneg %p84
      $region14: #{wrapped_deeplab_forward.6} parent=11 // pred_check_branch
        %155 = sbr.rel (%p153) target = $region16
      $region15: #{wrapped_deeplab_forward.6} parent=11 // pred_region
        %s156 = smul.u32 9, %s21
        %p157 = scmp.lt.s32.totalorder %s156, 8
        %s158 = scalar_select %p157, %s156, 8
        %p159 = scmp.lt.s32.totalorder %s20, 0
        %s160 = scalar_select %p159, %s20, 0
        %s161 = sadd.s32 %s160, %s158
        %s162 = smul.addr %s161, 4
        %s163 = scalar_lea.vmem %s1, %s162
        %s164 = smul.u32 9, %s21
      $region16: #{wrapped_deeplab_forward.6} parent=11 // pred_fallthru
        _
      // Predicated region
      $region17: #{wrapped_deeplab_forward.6} parent=11 // pred_check
        %p165 = pneg %p110
      $region18: #{wrapped_deeplab_forward.6} parent=11 // pred_check_branch
        %167 = sbr.rel (%p165) target = $region20
      $region19: #{wrapped_deeplab_forward.6} parent=11 // pred_region
        %p168 = scmp.lt.s32.totalorder %s20, 0
        %s169 = scalar_select %p168, %s20, 0
        %s170 = scalar_lea.vmem %s2, %s169
      $region20: #{wrapped_deeplab_forward.6} parent=11 // pred_fallthru
        _
    $region12: #{wrapped_deeplab_forward.6} parent=5 // pred_fallthru
      _
    %p171 = scmp.lt.s32.totalorder %s9, 2
    // Predicated region
    $region21: #{wrapped_deeplab_forward.6} parent=5 // pred_check
      %p172 = pneg %p171
    $region22: #{wrapped_deeplab_forward.6} parent=5 // pred_check_branch
      %174 = sbr.rel (%p172) target = $region24
    $region23: #{wrapped_deeplab_forward.6} parent=5 // pred_region
      // Predicated region
      $region25: #{wrapped_deeplab_forward.6} parent=23 // pred_check
        %p175 = pneg %p50
      $region26: #{wrapped_deeplab_forward.6} parent=23 // pred_check_branch
        %177 = sbr.rel (%p175) target = $region28
      $region27: #{wrapped_deeplab_forward.6} parent=23 // pred_region
        %s178 = smul.u32 2, %s16
        %p179 = scmp.lt.s32.totalorder %s178, 3
        %s180 = scalar_select %p179, %s178, 3
        %p181 = scmp.lt.s32.totalorder %s18, 0
        %s182 = scalar_select %p181, %s18, 0
        %s183 = sadd.s32 %s182, %s180
        %s184 = smul.addr %s183, 4
        %s185 = scalar_lea.vmem %s0, %s184
        %s186 = smul.u32 2, %s16
      $region28: #{wrapped_deeplab_forward.6} parent=23 // pred_fallthru
        _
    $region24: #{wrapped_deeplab_forward.6} parent=5 // pred_fallthru
      _
    %p187 = scmp.le.s32.totalorder 1, %s9
    %p188 = scmp.lt.s32.totalorder %s9, 3
    %p189 = pnand %p187, %p188
    %p190 = pneg %p189
    // Predicated region
    $region29: #{wrapped_deeplab_forward.6} parent=5 // pred_check
      _
    $region30: #{wrapped_deeplab_forward.6} parent=5 // pred_check_branch
      %192 = sbr.rel (%p189) target = $region32
    $region31: #{wrapped_deeplab_forward.6} parent=5 // pred_region
      %s193 = ssub.s32 %s9, 1
      %s194 = smul.u32 2, %s19
      %p195 = scmp.lt.s32.totalorder %s194, 3
      %s196 = scalar_select %p195, %s194, 3
      %p197 = scmp.lt.s32.totalorder %s21, 0
      %s198 = scalar_select %p197, %s21, 0
      %s199 = sadd.s32 %s198, %s196
      %s200 = smul.addr %s199, 4
      %s201 = scalar_lea.vmem %s0, %s200
      %p202 = pneg %p56
      %p203 = pneg %p53
      %s204 = smul.u32 9, %s21
      %p205 = scmp.lt.s32.totalorder %s204, 8
      %s206 = scalar_select %p205, %s204, 8
      %p207 = scmp.lt.s32.totalorder %s20, 0
      %s208 = scalar_select %p207, %s20, 0
      %s209 = sadd.s32 %s208, %s206
      %s210 = smul.addr %s209, 4
      %s211 = scalar_lea.vmem %s1, %s210
      %p212 = pneg %p84
      %p213 = pneg %p81
      %p214 = scmp.lt.s32.totalorder %s20, 0
      %s215 = scalar_select %p214, %s20, 0
      %s216 = scalar_lea.vmem %s2, %s215
      %p217 = pneg %p110
      %p218 = pneg %p107
      %p219 = pneg %p138
      %p220 = pneg %p135
      %s221 = smul.u32 2, %s19
      %p222 = scmp.lt.s32.totalorder %s221, 3
      %s223 = scalar_select %p222, %s221, 3
      %p224 = scmp.lt.s32.totalorder %s20, 0
      %s225 = scalar_select %p224, %s20, 0
      %s226 = sadd.s32 %s225, %s223
      %s227 = smul.addr %s226, 4
      %s228 = scalar_lea.vmem %s3, %s227
      %s229 = smul.u32 2, %s19
      %p230 = scmp.lt.s32.totalorder %s229, 3
      %s231 = scalar_select %p230, %s229, 3
      %p232 = scmp.lt.s32.totalorder %s21, 0
      %s233 = scalar_select %p232, %s21, 0
      %s234 = sadd.s32 %s233, %s231
      %s235 = smul.addr %s234, 4
      %s236 = scalar_lea.vmem %s0, %s235
      %s237 = smul.u32 2, %s19
      %s238 = smul.u32 9, %s21
      %p239 = scmp.lt.s32.totalorder %s238, 8
      %s240 = scalar_select %p239, %s238, 8
      %p241 = scmp.lt.s32.totalorder %s20, 0
      %s242 = scalar_select %p241, %s20, 0
      %s243 = sadd.s32 %s242, %s240
      %s244 = smul.addr %s243, 4
      %s245 = scalar_lea.vmem %s1, %s244
      %s246 = smul.u32 9, %s21
      %p247 = scmp.lt.s32.totalorder %s20, 0
      %s248 = scalar_select %p247, %s20, 0
      %s249 = scalar_lea.vmem %s2, %s248
      %s250 = smul.u32 2, %s19
      %p251 = scmp.lt.s32.totalorder %s250, 3
      %s252 = scalar_select %p251, %s250, 3
      %p253 = scmp.lt.s32.totalorder %s20, 0
      %s254 = scalar_select %p253, %s20, 0
      %s255 = sadd.s32 %s254, %s252
      %s256 = smul.addr %s255, 4
      %s257 = scalar_lea.vmem %s3, %s256
      %s258 = smul.u32 2, %s19
      %p260 = scmp.eq.s32.totalorder %s21, 0
      // Predicated region
      $region33: #{wrapped_deeplab_forward.6} parent=31 // pred_check
        %p261 = pneg %p260
      $region34: #{wrapped_deeplab_forward.6} parent=31 // pred_check_branch
        %263 = sbr.rel (%p261) target = $region36
      $region35: #{wrapped_deeplab_forward.6} parent=31 // pred_region
        %vm264 = vcmask 130048
        %265 = vst.msk [vmem:[#allocation2] sm:$0xff] %vm264, 0.0
        %266 = vst.msk [vmem:[#allocation2 + $0x8] sm:$0xff] %vm264, 0.0
      $region36: #{wrapped_deeplab_forward.6} parent=31 // pred_fallthru
        _
      %v267 = vld [vmem:[#allocation2] sm:$0xff]
      %v268 = vld [vmem:[#allocation2 + $0x8] sm:$0xff]
      %v269 = vld [vmem:[%s236] sm:$0xf]
      %v270 = vld [vmem:[%s236 + $0x4] sm:$0xf]
      %v271 = vld [vmem:[%s245] sm:$0xf]
      %v272 = vld [vmem:[%s245 + $0x4] sm:$0xf]
      %v273 = vld [vmem:[%s245 + $0x8] sm:$0xf]
      %v274 = vld [vmem:[%s245 + $0xc] sm:$0xf]
      %v275 = vld [vmem:[%s245 + $0x10] sm:$0xf]
      %v276 = vld [vmem:[%s245 + $0x14] sm:$0xf]
      %v277 = vld [vmem:[%s245 + $0x18] sm:$0xf]
      %v278 = vld [vmem:[%s245 + $0x1c] sm:$0xf]
      %v279 = vld [vmem:[%s245 + $0x20] sm:$0xf]
      %v282 = vunpack.c.l.b16 %v269
      %v283 = vunpack.c.l.b16 %v270
      %v284 = vpack.c.b16 %v283, %v282
      %v294 = vunpack.c.l.b16 %v271
      %v295 = vunpack.c.l.b16 %v272
      %v296 = vunpack.c.l.b16 %v273
      %v297 = vunpack.c.l.b16 %v274
      %v298 = vunpack.c.l.b16 %v275
      %v299 = vunpack.c.l.b16 %v276
      %v300 = vunpack.c.l.b16 %v277
      %v301 = vunpack.c.l.b16 %v278
      %v302 = vunpack.c.l.b16 %v279
      %v303 = vpack.c.b16 %v295, %v294
      %v304 = vpack.c.b16 %v297, %v296
      %v305 = vpack.c.b16 %v299, %v298
      %v306 = vpack.c.b16 %v301, %v300
      %v307 = vpack.c.b16 %v302, %v302
      %vm312 = vcmask 588800
      %v314 = vsel %vm312, %v284, 0
      %vm316 = vcmask 1043456
      %v318 = vsel %vm316, %v307, 0
      %320 = vmatprep.subr.bf16.mxu0 0
      %321 = vmatpush1.bf16.msra.mxu0 %v303
      %322 = vmatprep.subr.bf16.mxu0 0
      %323 = vmatpush1.bf16.msra.mxu0 %v304
      %324 = vmatprep.subr.bf16.mxu0 0
      %325 = vmatpush1.bf16.msra.mxu0 %v305
      %326 = vmatprep.subr.bf16.mxu0 0
      %327 = vmatpush1.bf16.msra.mxu0 %v306
      %328 = vmatprep.subr.bf16.mxu0 0
      %329 = vmatpush1.bf16.msra.mxu0 %v318
      %330 = vmatprep.subr.bf16.mxu0 0
      %331 = vmatpush1.bf16.msra.mxu0 0
      %332 = vmatprep.subr.bf16.mxu0 0
      %333 = vmatpush1.bf16.msra.mxu0 0
      %334 = vmatprep.subr.bf16.mxu0 0
      %335 = vmatpush1.bf16.msra.mxu0 0
      %336 = vmatprep.subr.bf16.mxu0 0
      %337 = vmatpush1.bf16.msra.mxu0 0
      %338 = vmatprep.subr.bf16.mxu0 0
      %339 = vmatpush1.bf16.msra.mxu0 0
      %340 = vmatprep.subr.bf16.mxu0 0
      %341 = vmatpush1.bf16.msra.mxu0 0
      %342 = vmatprep.subr.bf16.mxu0 0
      %343 = vmatpush1.bf16.msra.mxu0 0
      %344 = vmatprep.subr.bf16.mxu0 0
      %345 = vmatpush1.bf16.msra.mxu0 0
      %346 = vmatprep.subr.bf16.mxu0 0
      %347 = vmatpush1.bf16.msra.mxu0 0
      %348 = vmatprep.subr.bf16.mxu0 0
      %349 = vmatpush1.bf16.msra.mxu0 0
      %350 = vmatprep.subr.bf16.mxu0 0
      %351 = vmatpush1.bf16.msra.mxu0 0
      %352 = vmatprep.mubr.bf16.mxu0 0
      %353 = vmatmul.mubr.bf16.gmra.mrb[0].mxu0 %v314
      %v354 = vpop.f32.mrb[0].mxu0
      %v355 = vadd.f32 0.0, %v354
      %v356 = vpop.f32.mrb[0].mxu0
      %v357 = vpop.f32.mrb[0].mxu0
      %v358 = vadd.f32 0.0, %v357
      %v359 = vpop.f32.mrb[0].mxu0
      %360 = vdwg.mxu0
      %v361 = vadd.f32 %v267, %v355
      %v362 = vadd.f32 %v268, %v358
      %vm363 = vcmask 130048
      %364 = vst.msk [vmem:[#allocation2] sm:$0xff] %vm363, %v361
      %365 = vst.msk [vmem:[#allocation2 + $0x8] sm:$0xff] %vm363, %v362
      // Predicated region
      $region37: #{wrapped_deeplab_forward.6} parent=31 // pred_check
        %p366 = pneg %p260
      $region38: #{wrapped_deeplab_forward.6} parent=31 // pred_check_branch
        %368 = sbr.rel (%p366) target = $region40
      $region39: #{wrapped_deeplab_forward.6} parent=31 // pred_region
        %v369 = vld [vmem:[#allocation2] sm:$0xff]
        %v370 = vld [vmem:[#allocation2 + $0x8] sm:$0xff]
        %v371 = vld [vmem:[%s249] sm:$0x1]
        %v373 = vlaneseq
        %v374 = vshrl.u32 %v373, 7
        %v375 = vsub.s32 0, %v374
        %v376 = vrot.slane %v371, %v375
        %v378 = vadd.f32 %v369, %v376
        %v379 = vadd.f32 %v370, %v376
        %v380 = vmax.f32 %v378, 0.0
        %v381 = vmax.f32 %v379, 0.0
        %v382 = vpack.c.bf16 %v381, %v380
        %v384 = vunpack.c.l.b16 %v382
        %v385 = vunpack.c.h.b16 %v382
        %v386 = vpack.c.b16 %v384, %v384
        %v387 = vpack.c.b16 %v385, %v385
        %vm390 = vcmask 125952
        %391 = vst.msk [vmem:[%s257] sm:$0xf] %vm390, %v386
        %392 = vst.msk [vmem:[%s257 + $0x4] sm:$0xf] %vm390, %v387
      $region40: #{wrapped_deeplab_forward.6} parent=31 // pred_fallthru
        _
      %s393 = smul.u32 2, %s19
      %p394 = scmp.lt.s32.totalorder %s393, 3
      %s395 = scalar_select %p394, %s393, 3
      %p396 = scmp.lt.s32.totalorder %s20, 0
      %s397 = scalar_select %p396, %s20, 0
      %s398 = sadd.s32 %s397, %s395
      %s399 = smul.addr %s398, 4
      %s400 = scalar_lea.vmem %s3, %s399
      // Predicated region
      $region41: #{wrapped_deeplab_forward.6} parent=31 // pred_check
        %p401 = pneg %p135
      $region42: #{wrapped_deeplab_forward.6} parent=31 // pred_check_branch
        %403 = sbr.rel (%p401) target = $region44
      $region43: #{wrapped_deeplab_forward.6} parent=31 // pred_region
        %s404 = smul.u32 2, %s19
      $region44: #{wrapped_deeplab_forward.6} parent=31 // pred_fallthru
        _
    $region32: #{wrapped_deeplab_forward.6} parent=5 // pred_fallthru
      _
    %p405 = scmp.le.s32.totalorder 2, %s9
    // Predicated region
    $region45: #{wrapped_deeplab_forward.6} parent=5 // pred_check
      %p406 = pneg %p405
    $region46: #{wrapped_deeplab_forward.6} parent=5 // pred_check_branch
      %408 = sbr.rel (%p406) target = $region48
    $region47: #{wrapped_deeplab_forward.6} parent=5 // pred_region
      %s409 = ssub.s32 %s9, 2
      // Predicated region
      $region49: #{wrapped_deeplab_forward.6} parent=47 // pred_check
        %p410 = pneg %p141
      $region50: #{wrapped_deeplab_forward.6} parent=47 // pred_check_branch
        %412 = sbr.rel (%p410) target = $region52
      $region51: #{wrapped_deeplab_forward.6} parent=47 // pred_region
        %s413 = smul.u32 2, %s22
        %p414 = scmp.lt.s32.totalorder %s413, 3
        %s415 = scalar_select %p414, %s413, 3
        %p416 = scmp.lt.s32.totalorder %s23, 0
        %s417 = scalar_select %p416, %s23, 0
        %s418 = sadd.s32 %s417, %s415
        %s419 = smul.addr %s418, 4
        %s420 = scalar_lea.vmem %s3, %s419
      $region52: #{wrapped_deeplab_forward.6} parent=47 // pred_fallthru
        _
    $region48: #{wrapped_deeplab_forward.6} parent=5 // pred_fallthru
      _
  $region6: #{wrapped_deeplab_forward.6} parent=0 // loop_footer
    %s13 = sadd.s32 1, %s9
  $region7: #{wrapped_deeplab_forward.6} parent=0 // loop_footer_branch
    %8 = sbr.rel target = $region3
  $region8: #{wrapped_deeplab_forward.6} parent=0 // loop_exit
    _

// kernel: wrapped_deeplab_forward.8
$region0: #{wrapped_deeplab_forward.8}
  #allocation0 [shape = 'u32[]', space=smem, size = 0x4, offset = 0x4, fixed_abs, tag = 'smem constant byte address 0x4 - core index']
  #allocation1 [shape = 'u32[144,128]{1,0:T(1,128)}', space=vmem, size = 0x12000, scoped, tag = 'internal scratch']
  %s0 = inlined_call_operand.vmem [shape: bf16[16,4], index: 0, kind: input, shape index: {}]
  %s1 = inlined_call_operand.vmem [shape: bf16[2,4,84], index: 1, kind: input, shape index: {}]
  %s2 = inlined_call_operand.vmem [shape: bf16[2,16,84], index: 2, kind: output, shape index: {}]
  %s3 = sld [smem:[#allocation0]]
  $region41: #{wrapped_deeplab_forward.8} parent=0
    _
  %s5 = ssub.s32 1, %s3
  %s6 = scalar_select 0, %s5, %s3
  loop: start=0, step=1, limit=6
  $region2: #{wrapped_deeplab_forward.8} parent=0 // loop_pre_header
    _
  $region3: #{wrapped_deeplab_forward.8} parent=0 // loop_header
    %s8 = sphi 0, %s12
    %p9 = scmp.ge.s32.totalorder %s8, 6
    %s15 = sphi 0, %s27
    %s16 = sphi 0, %s23
    %s17 = sphi 0, %s15
    %s18 = sphi 0, %s16
    %s19 = sphi 0, %s17
    %s20 = sphi 0, %s18
    %s30 = sphi 0, %s32
    %s33 = sphi 0, %s30
    %s34 = sphi 0, %s33
    %s50 = sphi 0, %s34
    %s56 = sphi 0, %s58
    %s59 = sphi 0, %s56
    %s60 = sphi 0, %s59
    %s76 = sphi 0, %s60
    %s84 = sphi 0, %s86
    %s87 = sphi 0, %s84
    %s88 = sphi 0, %s87
    %s104 = sphi 0, %s88
  $region4: #{wrapped_deeplab_forward.8} parent=0 // loop_header_branch
    %11 = sbr.rel (%p9) target = $region8
  $region5: #{wrapped_deeplab_forward.8} parent=0 // loop_body
    %s13 = ssub.s32 %s8, 1
    %s14 = ssub.s32 %s8, 2
    %s21 = sadd.s32 1, %s16
    %p22 = scmp.ge.s32.totalorder %s21, 2
    %s23 = scalar_select %p22, 0, %s21
    %s24 = sadd.s32 1, %s15
    %s25 = scalar_select %p22, %s24, %s15
    %p26 = scmp.ge.s32.totalorder %s25, 2
    %s27 = scalar_select %p26, 0, %s25
    %s28 = ssub.s32 %s16, %s23
    %p29 = scmp.eq.s32.totalorder %s28, 0
    %s31 = sadd.s32 %s30, 1
    %s32 = scalar_select %p29, %s30, %s31
    %p35 = pneg %p29
    %p36 = scmp.eq.s32.totalorder %s8, 3
    %p37 = por %p35, %p36
    %p38 = scmp.ne.s32.totalorder %s30, %s33
    %p39 = scmp.eq.s32.totalorder %s8, 0
    %p40 = por %p38, %p39
    %p41 = scmp.ne.s32.totalorder %s30, %s33
    %p42 = scmp.eq.s32.totalorder %s13, 3
    %p43 = por %p41, %p42
    %p44 = scmp.ne.s32.totalorder %s33, %s34
    %p45 = scmp.eq.s32.totalorder %s13, 0
    %p46 = por %p44, %p45
    %p47 = scmp.ne.s32.totalorder %s33, %s34
    %p48 = scmp.eq.s32.totalorder %s14, 3
    %p49 = por %p47, %p48
    %p51 = scmp.ne.s32.totalorder %s34, %s50
    %p52 = scmp.eq.s32.totalorder %s14, 0
    %p53 = por %p51, %p52
    %s54 = ssub.s32 %s15, %s27
    %p55 = scmp.eq.s32.totalorder %s54, 0
    %s57 = sadd.s32 %s56, 1
    %s58 = scalar_select %p55, %s56, %s57
    %p61 = pneg %p55
    %p62 = scmp.eq.s32.totalorder %s8, 3
    %p63 = por %p61, %p62
    %p64 = scmp.ne.s32.totalorder %s56, %s59
    %p65 = scmp.eq.s32.totalorder %s8, 0
    %p66 = por %p64, %p65
    %p67 = scmp.ne.s32.totalorder %s56, %s59
    %p68 = scmp.eq.s32.totalorder %s13, 3
    %p69 = por %p67, %p68
    %p70 = scmp.ne.s32.totalorder %s59, %s60
    %p71 = scmp.eq.s32.totalorder %s13, 0
    %p72 = por %p70, %p71
    %p73 = scmp.ne.s32.totalorder %s59, %s60
    %p74 = scmp.eq.s32.totalorder %s14, 3
    %p75 = por %p73, %p74
    %p77 = scmp.ne.s32.totalorder %s60, %s76
    %p78 = scmp.eq.s32.totalorder %s14, 0
    %p79 = por %p77, %p78
    %s80 = ssub.s32 %s15, %s27
    %s81 = ssub.s32 %s16, %s23
    %s82 = sor.u32 %s80, %s81
    %p83 = scmp.eq.s32.totalorder %s82, 0
    %s85 = sadd.s32 %s84, 1
    %s86 = scalar_select %p83, %s84, %s85
    %p89 = pneg %p83
    %p90 = scmp.eq.s32.totalorder %s8, 3
    %p91 = por %p89, %p90
    %p92 = scmp.ne.s32.totalorder %s84, %s87
    %p93 = scmp.eq.s32.totalorder %s8, 0
    %p94 = por %p92, %p93
    %p95 = scmp.ne.s32.totalorder %s84, %s87
    %p96 = scmp.eq.s32.totalorder %s13, 3
    %p97 = por %p95, %p96
    %p98 = scmp.ne.s32.totalorder %s87, %s88
    %p99 = scmp.eq.s32.totalorder %s13, 0
    %p100 = por %p98, %p99
    %p101 = scmp.ne.s32.totalorder %s87, %s88
    %p102 = scmp.eq.s32.totalorder %s14, 3
    %p103 = por %p101, %p102
    %p105 = scmp.ne.s32.totalorder %s88, %s104
    %p106 = scmp.eq.s32.totalorder %s14, 0
    %p107 = por %p105, %p106
    %p108 = scmp.le.s32.totalorder 1, %s8
    %p109 = scmp.lt.s32.totalorder %s8, 5
    %p110 = pnand %p108, %p109
    %p111 = pneg %p110
    // Predicated region
    $region9: #{wrapped_deeplab_forward.8} parent=5 // pred_check
      _
    $region10: #{wrapped_deeplab_forward.8} parent=5 // pred_check_branch
      %113 = sbr.rel (%p110) target = $region12
    $region11: #{wrapped_deeplab_forward.8} parent=5 // pred_region
      %s114 = ssub.s32 %s8, 1
    $region12: #{wrapped_deeplab_forward.8} parent=5 // pred_fallthru
      _
    %p115 = scmp.lt.s32.totalorder %s8, 4
    // Predicated region
    $region13: #{wrapped_deeplab_forward.8} parent=5 // pred_check
      %p116 = pneg %p115
    $region14: #{wrapped_deeplab_forward.8} parent=5 // pred_check_branch
      %118 = sbr.rel (%p116) target = $region16
    $region15: #{wrapped_deeplab_forward.8} parent=5 // pred_region
      // Predicated region
      $region17: #{wrapped_deeplab_forward.8} parent=15 // pred_check
        %p119 = pneg %p40
      $region18: #{wrapped_deeplab_forward.8} parent=15 // pred_check_branch
        %121 = sbr.rel (%p119) target = $region20
      $region19: #{wrapped_deeplab_forward.8} parent=15 // pred_region
        %p122 = scmp.lt.s32.totalorder %s16, 1
        %s123 = scalar_select %p122, %s16, 1
        %s124 = smul.addr %s123, 4
        %s125 = scalar_lea.vmem %s0, %s124
      $region20: #{wrapped_deeplab_forward.8} parent=15 // pred_fallthru
        _
      // Predicated region
      $region21: #{wrapped_deeplab_forward.8} parent=15 // pred_check
        %p126 = pneg %p66
      $region22: #{wrapped_deeplab_forward.8} parent=15 // pred_check_branch
        %128 = sbr.rel (%p126) target = $region24
      $region23: #{wrapped_deeplab_forward.8} parent=15 // pred_region
        %p129 = scmp.lt.s32.totalorder %s15, 1
        %s130 = scalar_select %p129, %s15, 1
        %s131 = smul.addr %s130, 2
        %s132 = scalar_lea.vmem %s1, %s131
      $region24: #{wrapped_deeplab_forward.8} parent=15 // pred_fallthru
        _
    $region16: #{wrapped_deeplab_forward.8} parent=5 // pred_fallthru
      _
    %p133 = scmp.le.s32.totalorder 1, %s8
    %p134 = scmp.lt.s32.totalorder %s8, 5
    %p135 = pnand %p133, %p134
    %p136 = pneg %p135
    // Predicated region
    $region25: #{wrapped_deeplab_forward.8} parent=5 // pred_check
      _
    $region26: #{wrapped_deeplab_forward.8} parent=5 // pred_check_branch
      %138 = sbr.rel (%p135) target = $region28
    $region27: #{wrapped_deeplab_forward.8} parent=5 // pred_region
      %s139 = ssub.s32 %s8, 1
      %p140 = scmp.lt.s32.totalorder %s18, 1
      %s141 = scalar_select %p140, %s18, 1
      %s142 = smul.addr %s141, 4
      %s143 = scalar_lea.vmem %s0, %s142
      %p144 = pneg %p46
      %p145 = pneg %p43
      %p146 = scmp.lt.s32.totalorder %s17, 1
      %s147 = scalar_select %p146, %s17, 1
      %s148 = smul.addr %s147, 2
      %s149 = scalar_lea.vmem %s1, %s148
      %p150 = pneg %p72
      %p151 = pneg %p69
      %p152 = pneg %p100
      %p153 = pneg %p97
      %p154 = scmp.lt.s32.totalorder %s17, 1
      %s155 = scalar_select %p154, %s17, 1
      %p156 = scmp.lt.s32.totalorder %s18, 1
      %s157 = scalar_select %p156, %s18, 1
      %s158 = smul.addr %s155, 2
      %s159 = sadd.s32 %s157, %s158
      %s160 = smul.addr %s159, 4
      %s161 = scalar_lea.vmem %s2, %s160
      %p162 = scmp.lt.s32.totalorder %s18, 1
      %s163 = scalar_select %p162, %s18, 1
      %s164 = smul.addr %s163, 4
      %s165 = scalar_lea.vmem %s0, %s164
      %p166 = scmp.lt.s32.totalorder %s17, 1
      %s167 = scalar_select %p166, %s17, 1
      %s168 = smul.addr %s167, 2
      %s169 = scalar_lea.vmem %s1, %s168
      %p170 = scmp.lt.s32.totalorder %s17, 1
      %s171 = scalar_select %p170, %s17, 1
      %p172 = scmp.lt.s32.totalorder %s18, 1
      %s173 = scalar_select %p172, %s18, 1
      %s174 = smul.addr %s171, 2
      %s175 = sadd.s32 %s173, %s174
      %s176 = smul.addr %s175, 4
      %s177 = scalar_lea.vmem %s2, %s176
      %v179 = vld [vmem:[%s165] sm:$0xf]
      %v180 = vld [vmem:[%s169] sm:$0x3]
      %vm181 = vcmask 31744
      %v183 = vsel %vm181, %v179, 0
      %vm185 = vcmask 1041408
      %v187 = vsel %vm185, %v180, 0
      %189 = vmatprep.subr.bf16.mxu0 0
      %190 = vmatpush1.bf16.msra.mxu0 %v187
      %191 = vmatprep.subr.bf16.mxu0 0
      %192 = vmatpush1.bf16.msra.mxu0 0
      %193 = vmatprep.subr.bf16.mxu0 0
      %194 = vmatpush1.bf16.msra.mxu0 0
      %195 = vmatprep.subr.bf16.mxu0 0
      %196 = vmatpush1.bf16.msra.mxu0 0
      %197 = vmatprep.subr.bf16.mxu0 0
      %198 = vmatpush1.bf16.msra.mxu0 0
      %199 = vmatprep.subr.bf16.mxu0 0
      %200 = vmatpush1.bf16.msra.mxu0 0
      %201 = vmatprep.subr.bf16.mxu0 0
      %202 = vmatpush1.bf16.msra.mxu0 0
      %203 = vmatprep.subr.bf16.mxu0 0
      %204 = vmatpush1.bf16.msra.mxu0 0
      %205 = vmatprep.subr.bf16.mxu0 0
      %206 = vmatpush1.bf16.msra.mxu0 0
      %207 = vmatprep.subr.bf16.mxu0 0
      %208 = vmatpush1.bf16.msra.mxu0 0
      %209 = vmatprep.subr.bf16.mxu0 0
      %210 = vmatpush1.bf16.msra.mxu0 0
      %211 = vmatprep.subr.bf16.mxu0 0
      %212 = vmatpush1.bf16.msra.mxu0 0
      %213 = vmatprep.subr.bf16.mxu0 0
      %214 = vmatpush1.bf16.msra.mxu0 0
      %215 = vmatprep.subr.bf16.mxu0 0
      %216 = vmatpush1.bf16.msra.mxu0 0
      %217 = vmatprep.subr.bf16.mxu0 0
      %218 = vmatpush1.bf16.msra.mxu0 0
      %219 = vmatprep.subr.bf16.mxu0 0
      %220 = vmatpush1.bf16.msra.mxu0 0
      %221 = vmatprep.mubr.bf16.mxu0 0
      %222 = vmatmul.mubr.bf16.gmra.mrb[0].mxu0 %v183
      %v223 = vpop.f32.mrb[0].mxu0
      %v224 = vadd.f32 0.0, %v223
      %v225 = vpop.f32.mrb[0].mxu0
      %v226 = vpop.f32.mrb[0].mxu0
      %v227 = vpop.f32.mrb[0].mxu0
      %228 = vdwg.mxu0
      %v229 = vpack.c.bf16 %v224, %v224
      %vm230 = vcmask 683008
      %231 = vst.msk [vmem:[%s177] sm:$0xf] %vm230, %v229
      %p232 = scmp.lt.s32.totalorder %s17, 1
      %s233 = scalar_select %p232, %s17, 1
      %p234 = scmp.lt.s32.totalorder %s18, 1
      %s235 = scalar_select %p234, %s18, 1
      %s236 = smul.addr %s233, 2
      %s237 = sadd.s32 %s235, %s236
      %s238 = smul.addr %s237, 4
      %s239 = scalar_lea.vmem %s2, %s238
      // Predicated region
      $region29: #{wrapped_deeplab_forward.8} parent=27 // pred_check
        %p240 = pneg %p97
      $region30: #{wrapped_deeplab_forward.8} parent=27 // pred_check_branch
        %242 = sbr.rel (%p240) target = $region32
      $region31: #{wrapped_deeplab_forward.8} parent=27 // pred_region
        _
      $region32: #{wrapped_deeplab_forward.8} parent=27 // pred_fallthru
        _
    $region28: #{wrapped_deeplab_forward.8} parent=5 // pred_fallthru
      _
    %p243 = scmp.le.s32.totalorder 2, %s8
    // Predicated region
    $region33: #{wrapped_deeplab_forward.8} parent=5 // pred_check
      %p244 = pneg %p243
    $region34: #{wrapped_deeplab_forward.8} parent=5 // pred_check_branch
      %246 = sbr.rel (%p244) target = $region36
    $region35: #{wrapped_deeplab_forward.8} parent=5 // pred_region
      %s247 = ssub.s32 %s8, 2
      // Predicated region
      $region37: #{wrapped_deeplab_forward.8} parent=35 // pred_check
        %p248 = pneg %p103
      $region38: #{wrapped_deeplab_forward.8} parent=35 // pred_check_branch
        %250 = sbr.rel (%p248) target = $region40
      $region39: #{wrapped_deeplab_forward.8} parent=35 // pred_region
        %p251 = scmp.lt.s32.totalorder %s19, 1
        %s252 = scalar_select %p251, %s19, 1
        %p253 = scmp.lt.s32.totalorder %s20, 1
        %s254 = scalar_select %p253, %s20, 1
        %s255 = smul.addr %s252, 2
        %s256 = sadd.s32 %s254, %s255
        %s257 = smul.addr %s256, 4
        %s258 = scalar_lea.vmem %s2, %s257
      $region40: #{wrapped_deeplab_forward.8} parent=35 // pred_fallthru
        _
    $region36: #{wrapped_deeplab_forward.8} parent=5 // pred_fallthru
      _
  $region6: #{wrapped_deeplab_forward.8} parent=0 // loop_footer
    %s12 = sadd.s32 1, %s8
  $region7: #{wrapped_deeplab_forward.8} parent=0 // loop_footer_branch
    %7 = sbr.rel target = $region3
  $region8: #{wrapped_deeplab_forward.8} parent=0 // loop_exit
    _

// kernel: wrapped_deeplab_forward.9
$region0: #{wrapped_deeplab_forward.9}
  #allocation0 [shape = 'u32[]', space=smem, size = 0x4, offset = 0x4, fixed_abs, tag = 'smem constant byte address 0x4 - core index']
  #allocation1 [shape = 'u32[144,128]{1,0:T(1,128)}', space=vmem, size = 0x12000, scoped, tag = 'internal scratch']
  %s0 = inlined_call_operand.vmem [shape: bf16[16,4], index: 0, kind: input, shape index: {}]
  %s1 = inlined_call_operand.vmem [shape: bf16[2,4,336], index: 1, kind: input, shape index: {}]
  %s2 = inlined_call_operand.vmem [shape: f32[2,16,336], index: 2, kind: output, shape index: {}]
  %s3 = sld [smem:[#allocation0]]
  $region41: #{wrapped_deeplab_forward.9} parent=0
    _
  %s5 = ssub.s32 1, %s3
  %s6 = scalar_select 0, %s5, %s3
  loop: start=0, step=1, limit=6
  $region2: #{wrapped_deeplab_forward.9} parent=0 // loop_pre_header
    _
  $region3: #{wrapped_deeplab_forward.9} parent=0 // loop_header
    %s8 = sphi 0, %s12
    %p9 = scmp.ge.s32.totalorder %s8, 6
    %s15 = sphi 0, %s27
    %s16 = sphi 0, %s23
    %s17 = sphi 0, %s15
    %s18 = sphi 0, %s16
    %s19 = sphi 0, %s17
    %s20 = sphi 0, %s18
    %s30 = sphi 0, %s32
    %s33 = sphi 0, %s30
    %s34 = sphi 0, %s33
    %s50 = sphi 0, %s34
    %s56 = sphi 0, %s58
    %s59 = sphi 0, %s56
    %s60 = sphi 0, %s59
    %s76 = sphi 0, %s60
    %s84 = sphi 0, %s86
    %s87 = sphi 0, %s84
    %s88 = sphi 0, %s87
    %s104 = sphi 0, %s88
  $region4: #{wrapped_deeplab_forward.9} parent=0 // loop_header_branch
    %11 = sbr.rel (%p9) target = $region8
  $region5: #{wrapped_deeplab_forward.9} parent=0 // loop_body
    %s13 = ssub.s32 %s8, 1
    %s14 = ssub.s32 %s8, 2
    %s21 = sadd.s32 1, %s16
    %p22 = scmp.ge.s32.totalorder %s21, 2
    %s23 = scalar_select %p22, 0, %s21
    %s24 = sadd.s32 1, %s15
    %s25 = scalar_select %p22, %s24, %s15
    %p26 = scmp.ge.s32.totalorder %s25, 2
    %s27 = scalar_select %p26, 0, %s25
    %s28 = ssub.s32 %s16, %s23
    %p29 = scmp.eq.s32.totalorder %s28, 0
    %s31 = sadd.s32 %s30, 1
    %s32 = scalar_select %p29, %s30, %s31
    %p35 = pneg %p29
    %p36 = scmp.eq.s32.totalorder %s8, 3
    %p37 = por %p35, %p36
    %p38 = scmp.ne.s32.totalorder %s30, %s33
    %p39 = scmp.eq.s32.totalorder %s8, 0
    %p40 = por %p38, %p39
    %p41 = scmp.ne.s32.totalorder %s30, %s33
    %p42 = scmp.eq.s32.totalorder %s13, 3
    %p43 = por %p41, %p42
    %p44 = scmp.ne.s32.totalorder %s33, %s34
    %p45 = scmp.eq.s32.totalorder %s13, 0
    %p46 = por %p44, %p45
    %p47 = scmp.ne.s32.totalorder %s33, %s34
    %p48 = scmp.eq.s32.totalorder %s14, 3
    %p49 = por %p47, %p48
    %p51 = scmp.ne.s32.totalorder %s34, %s50
    %p52 = scmp.eq.s32.totalorder %s14, 0
    %p53 = por %p51, %p52
    %s54 = ssub.s32 %s15, %s27
    %p55 = scmp.eq.s32.totalorder %s54, 0
    %s57 = sadd.s32 %s56, 1
    %s58 = scalar_select %p55, %s56, %s57
    %p61 = pneg %p55
    %p62 = scmp.eq.s32.totalorder %s8, 3
    %p63 = por %p61, %p62
    %p64 = scmp.ne.s32.totalorder %s56, %s59
    %p65 = scmp.eq.s32.totalorder %s8, 0
    %p66 = por %p64, %p65
    %p67 = scmp.ne.s32.totalorder %s56, %s59
    %p68 = scmp.eq.s32.totalorder %s13, 3
    %p69 = por %p67, %p68
    %p70 = scmp.ne.s32.totalorder %s59, %s60
    %p71 = scmp.eq.s32.totalorder %s13, 0
    %p72 = por %p70, %p71
    %p73 = scmp.ne.s32.totalorder %s59, %s60
    %p74 = scmp.eq.s32.totalorder %s14, 3
    %p75 = por %p73, %p74
    %p77 = scmp.ne.s32.totalorder %s60, %s76
    %p78 = scmp.eq.s32.totalorder %s14, 0
    %p79 = por %p77, %p78
    %s80 = ssub.s32 %s15, %s27
    %s81 = ssub.s32 %s16, %s23
    %s82 = sor.u32 %s80, %s81
    %p83 = scmp.eq.s32.totalorder %s82, 0
    %s85 = sadd.s32 %s84, 1
    %s86 = scalar_select %p83, %s84, %s85
    %p89 = pneg %p83
    %p90 = scmp.eq.s32.totalorder %s8, 3
    %p91 = por %p89, %p90
    %p92 = scmp.ne.s32.totalorder %s84, %s87
    %p93 = scmp.eq.s32.totalorder %s8, 0
    %p94 = por %p92, %p93
    %p95 = scmp.ne.s32.totalorder %s84, %s87
    %p96 = scmp.eq.s32.totalorder %s13, 3
    %p97 = por %p95, %p96
    %p98 = scmp.ne.s32.totalorder %s87, %s88
    %p99 = scmp.eq.s32.totalorder %s13, 0
    %p100 = por %p98, %p99
    %p101 = scmp.ne.s32.totalorder %s87, %s88
    %p102 = scmp.eq.s32.totalorder %s14, 3
    %p103 = por %p101, %p102
    %p105 = scmp.ne.s32.totalorder %s88, %s104
    %p106 = scmp.eq.s32.totalorder %s14, 0
    %p107 = por %p105, %p106
    %p108 = scmp.le.s32.totalorder 1, %s8
    %p109 = scmp.lt.s32.totalorder %s8, 5
    %p110 = pnand %p108, %p109
    %p111 = pneg %p110
    // Predicated region
    $region9: #{wrapped_deeplab_forward.9} parent=5 // pred_check
      _
    $region10: #{wrapped_deeplab_forward.9} parent=5 // pred_check_branch
      %113 = sbr.rel (%p110) target = $region12
    $region11: #{wrapped_deeplab_forward.9} parent=5 // pred_region
      %s114 = ssub.s32 %s8, 1
    $region12: #{wrapped_deeplab_forward.9} parent=5 // pred_fallthru
      _
    %p115 = scmp.lt.s32.totalorder %s8, 4
    // Predicated region
    $region13: #{wrapped_deeplab_forward.9} parent=5 // pred_check
      %p116 = pneg %p115
    $region14: #{wrapped_deeplab_forward.9} parent=5 // pred_check_branch
      %118 = sbr.rel (%p116) target = $region16
    $region15: #{wrapped_deeplab_forward.9} parent=5 // pred_region
      // Predicated region
      $region17: #{wrapped_deeplab_forward.9} parent=15 // pred_check
        %p119 = pneg %p40
      $region18: #{wrapped_deeplab_forward.9} parent=15 // pred_check_branch
        %121 = sbr.rel (%p119) target = $region20
      $region19: #{wrapped_deeplab_forward.9} parent=15 // pred_region
        %p122 = scmp.lt.s32.totalorder %s16, 1
        %s123 = scalar_select %p122, %s16, 1
        %s124 = smul.addr %s123, 4
        %s125 = scalar_lea.vmem %s0, %s124
      $region20: #{wrapped_deeplab_forward.9} parent=15 // pred_fallthru
        _
      // Predicated region
      $region21: #{wrapped_deeplab_forward.9} parent=15 // pred_check
        %p126 = pneg %p66
      $region22: #{wrapped_deeplab_forward.9} parent=15 // pred_check_branch
        %128 = sbr.rel (%p126) target = $region24
      $region23: #{wrapped_deeplab_forward.9} parent=15 // pred_region
        %p129 = scmp.lt.s32.totalorder %s15, 1
        %s130 = scalar_select %p129, %s15, 1
        %s131 = smul.addr %s130, 3
        %s132 = smul.addr %s131, 2
        %s133 = scalar_lea.vmem %s1, %s132
      $region24: #{wrapped_deeplab_forward.9} parent=15 // pred_fallthru
        _
    $region16: #{wrapped_deeplab_forward.9} parent=5 // pred_fallthru
      _
    %p134 = scmp.le.s32.totalorder 1, %s8
    %p135 = scmp.lt.s32.totalorder %s8, 5
    %p136 = pnand %p134, %p135
    %p137 = pneg %p136
    // Predicated region
    $region25: #{wrapped_deeplab_forward.9} parent=5 // pred_check
      _
    $region26: #{wrapped_deeplab_forward.9} parent=5 // pred_check_branch
      %139 = sbr.rel (%p136) target = $region28
    $region27: #{wrapped_deeplab_forward.9} parent=5 // pred_region
      %s140 = ssub.s32 %s8, 1
      %p141 = scmp.lt.s32.totalorder %s18, 1
      %s142 = scalar_select %p141, %s18, 1
      %s143 = smul.addr %s142, 4
      %s144 = scalar_lea.vmem %s0, %s143
      %p145 = pneg %p46
      %p146 = pneg %p43
      %p147 = scmp.lt.s32.totalorder %s17, 1
      %s148 = scalar_select %p147, %s17, 1
      %s149 = smul.addr %s148, 3
      %s150 = smul.addr %s149, 2
      %s151 = scalar_lea.vmem %s1, %s150
      %p152 = pneg %p72
      %p153 = pneg %p69
      %p154 = pneg %p100
      %p155 = pneg %p97
      %p156 = scmp.lt.s32.totalorder %s17, 1
      %s157 = scalar_select %p156, %s17, 1
      %p158 = scmp.lt.s32.totalorder %s18, 1
      %s159 = scalar_select %p158, %s18, 1
      %s160 = smul.addr %s159, 3
      %s161 = smul.addr %s157, 6
      %s162 = sadd.s32 %s160, %s161
      %s163 = smul.addr %s162, 8
      %s164 = scalar_lea.vmem %s2, %s163
      %p165 = scmp.lt.s32.totalorder %s18, 1
      %s166 = scalar_select %p165, %s18, 1
      %s167 = smul.addr %s166, 4
      %s168 = scalar_lea.vmem %s0, %s167
      %p169 = scmp.lt.s32.totalorder %s17, 1
      %s170 = scalar_select %p169, %s17, 1
      %s171 = smul.addr %s170, 3
      %s172 = smul.addr %s171, 2
      %s173 = scalar_lea.vmem %s1, %s172
      %p174 = scmp.lt.s32.totalorder %s17, 1
      %s175 = scalar_select %p174, %s17, 1
      %p176 = scmp.lt.s32.totalorder %s18, 1
      %s177 = scalar_select %p176, %s18, 1
      %s178 = smul.addr %s177, 3
      %s179 = smul.addr %s175, 6
      %s180 = sadd.s32 %s178, %s179
      %s181 = smul.addr %s180, 8
      %s182 = scalar_lea.vmem %s2, %s181
      %v184 = vld [vmem:[%s168] sm:$0xf]
      %v185 = vld [vmem:[%s173] sm:$0x3f]
      %v187 = vcombine.high %v185, %v185
      %v189 = vunpack.c.l.s4 1983009808
      %v190 = vunpack.c.0.s8 %v189
      %v191 = vlaneseq
      %v192 = vshrl.u32 %v191, 7
      %v193 = vsub.s32 %v190, %v192
      %v194 = vrot.slane %v185, %v193
      %v196 = vunpack.c.l.s4 1983009808
      %v197 = vunpack.c.0.s8 %v196
      %v198 = vlaneseq
      %v199 = vshrl.u32 %v198, 7
      %v200 = vsub.s32 %v197, %v199
      %v201 = vrot.slane %v187, %v200
      %v202 = vcombine.high %v194, %v194
      %vm203 = vcmask 31744
      %v205 = vsel %vm203, %v184, 0
      %vm207 = vcmask 1041408
      %v209 = vsel %vm207, %v194, 0
      %v212 = vsel %vm207, %v202, 0
      %v215 = vsel %vm207, %v201, 0
      %217 = vmatprep.subr.bf16.mxu0 %v212
      %218 = vmatpush1.bf16.msra.mxu0 %v209
      %219 = vmatprep.subr.bf16.mxu0 0
      %220 = vmatpush1.bf16.msra.mxu0 0
      %221 = vmatprep.subr.bf16.mxu0 0
      %222 = vmatpush1.bf16.msra.mxu0 0
      %223 = vmatprep.subr.bf16.mxu0 0
      %224 = vmatpush1.bf16.msra.mxu0 0
      %225 = vmatprep.subr.bf16.mxu0 0
      %226 = vmatpush1.bf16.msra.mxu0 0
      %227 = vmatprep.subr.bf16.mxu0 0
      %228 = vmatpush1.bf16.msra.mxu0 0
      %229 = vmatprep.subr.bf16.mxu0 0
      %230 = vmatpush1.bf16.msra.mxu0 0
      %231 = vmatprep.subr.bf16.mxu0 0
      %232 = vmatpush1.bf16.msra.mxu0 0
      %233 = vmatprep.subr.bf16.mxu0 0
      %234 = vmatpush1.bf16.msra.mxu0 0
      %235 = vmatprep.subr.bf16.mxu0 0
      %236 = vmatpush1.bf16.msra.mxu0 0
      %237 = vmatprep.subr.bf16.mxu0 0
      %238 = vmatpush1.bf16.msra.mxu0 0
      %239 = vmatprep.subr.bf16.mxu0 0
      %240 = vmatpush1.bf16.msra.mxu0 0
      %241 = vmatprep.subr.bf16.mxu0 0
      %242 = vmatpush1.bf16.msra.mxu0 0
      %243 = vmatprep.subr.bf16.mxu0 0
      %244 = vmatpush1.bf16.msra.mxu0 0
      %245 = vmatprep.subr.bf16.mxu0 0
      %246 = vmatpush1.bf16.msra.mxu0 0
      %247 = vmatprep.subr.bf16.mxu0 0
      %248 = vmatpush1.bf16.msra.mxu0 0
      %249 = vmatprep.mubr.bf16.mxu0 0
      %250 = vmatmul.mubr.bf16.gmra.mrb[0].mxu0 %v205
      %v251 = vpop.f32.mrb[0].mxu0
      %v252 = vadd.f32 0.0, %v251
      %v253 = vpop.f32.mrb[0].mxu0
      %v254 = vadd.f32 0.0, %v253
      %v255 = vpop.f32.mrb[0].mxu0
      %v256 = vpop.f32.mrb[0].mxu0
      %257 = vdwg.mxu0
      %258 = vmatprep.subr.bf16.mxu0 0
      %259 = vmatpush1.bf16.msra.mxu0 %v215
      %260 = vmatprep.subr.bf16.mxu0 0
      %261 = vmatpush1.bf16.msra.mxu0 0
      %262 = vmatprep.subr.bf16.mxu0 0
      %263 = vmatpush1.bf16.msra.mxu0 0
      %264 = vmatprep.subr.bf16.mxu0 0
      %265 = vmatpush1.bf16.msra.mxu0 0
      %266 = vmatprep.subr.bf16.mxu0 0
      %267 = vmatpush1.bf16.msra.mxu0 0
      %268 = vmatprep.subr.bf16.mxu0 0
      %269 = vmatpush1.bf16.msra.mxu0 0
      %270 = vmatprep.subr.bf16.mxu0 0
      %271 = vmatpush1.bf16.msra.mxu0 0
      %272 = vmatprep.subr.bf16.mxu0 0
      %273 = vmatpush1.bf16.msra.mxu0 0
      %274 = vmatprep.subr.bf16.mxu0 0
      %275 = vmatpush1.bf16.msra.mxu0 0
      %276 = vmatprep.subr.bf16.mxu0 0
      %277 = vmatpush1.bf16.msra.mxu0 0
      %278 = vmatprep.subr.bf16.mxu0 0
      %279 = vmatpush1.bf16.msra.mxu0 0
      %280 = vmatprep.subr.bf16.mxu0 0
      %281 = vmatpush1.bf16.msra.mxu0 0
      %282 = vmatprep.subr.bf16.mxu0 0
      %283 = vmatpush1.bf16.msra.mxu0 0
      %284 = vmatprep.subr.bf16.mxu0 0
      %285 = vmatpush1.bf16.msra.mxu0 0
      %286 = vmatprep.subr.bf16.mxu0 0
      %287 = vmatpush1.bf16.msra.mxu0 0
      %288 = vmatprep.subr.bf16.mxu0 0
      %289 = vmatpush1.bf16.msra.mxu0 0
      %290 = vmatprep.mubr.bf16.mxu0 0
      %291 = vmatmul.mubr.bf16.gmra.mrb[0].mxu0 %v205
      %v292 = vpop.f32.mrb[0].mxu0
      %v293 = vadd.f32 0.0, %v292
      %v294 = vpop.f32.mrb[0].mxu0
      %v295 = vpop.f32.mrb[0].mxu0
      %v296 = vpop.f32.mrb[0].mxu0
      %297 = vdwg.mxu0
      %298 = vst [vmem:[%s182] sm:$0xff] %v252
      %299 = vst [vmem:[%s182 + $0x8] sm:$0xff] %v254
      %vm300 = vcmask 654336
      %301 = vst.msk [vmem:[%s182 + $0x10] sm:$0xff] %vm300, %v293
      %p302 = scmp.lt.s32.totalorder %s17, 1
      %s303 = scalar_select %p302, %s17, 1
      %p304 = scmp.lt.s32.totalorder %s18, 1
      %s305 = scalar_select %p304, %s18, 1
      %s306 = smul.addr %s305, 3
      %s307 = smul.addr %s303, 6
      %s308 = sadd.s32 %s306, %s307
      %s309 = smul.addr %s308, 8
      %s310 = scalar_lea.vmem %s2, %s309
      // Predicated region
      $region29: #{wrapped_deeplab_forward.9} parent=27 // pred_check
        %p311 = pneg %p97
      $region30: #{wrapped_deeplab_forward.9} parent=27 // pred_check_branch
        %313 = sbr.rel (%p311) target = $region32
      $region31: #{wrapped_deeplab_forward.9} parent=27 // pred_region
        _
      $region32: #{wrapped_deeplab_forward.9} parent=27 // pred_fallthru
        _
    $region28: #{wrapped_deeplab_forward.9} parent=5 // pred_fallthru
      _
    %p314 = scmp.le.s32.totalorder 2, %s8
    // Predicated region
    $region33: #{wrapped_deeplab_forward.9} parent=5 // pred_check
      %p315 = pneg %p314
    $region34: #{wrapped_deeplab_forward.9} parent=5 // pred_check_branch
      %317 = sbr.rel (%p315) target = $region36
    $region35: #{wrapped_deeplab_forward.9} parent=5 // pred_region
      %s318 = ssub.s32 %s8, 2
      // Predicated region
      $region37: #{wrapped_deeplab_forward.9} parent=35 // pred_check
        %p319 = pneg %p103
      $region38: #{wrapped_deeplab_forward.9} parent=35 // pred_check_branch
        %321 = sbr.rel (%p319) target = $region40
      $region39: #{wrapped_deeplab_forward.9} parent=35 // pred_region
        %p322 = scmp.lt.s32.totalorder %s19, 1
        %s323 = scalar_select %p322, %s19, 1
        %p324 = scmp.lt.s32.totalorder %s20, 1
        %s325 = scalar_select %p324, %s20, 1
        %s326 = smul.addr %s325, 3
        %s327 = smul.addr %s323, 6
        %s328 = sadd.s32 %s326, %s327
        %s329 = smul.addr %s328, 8
        %s330 = scalar_lea.vmem %s2, %s329
      $region40: #{wrapped_deeplab_forward.9} parent=35 // pred_fallthru
        _
    $region36: #{wrapped_deeplab_forward.9} parent=5 // pred_fallthru
      _
  $region6: #{wrapped_deeplab_forward.9} parent=0 // loop_footer
    %s12 = sadd.s32 1, %s8
  $region7: #{wrapped_deeplab_forward.9} parent=0 // loop_footer_branch
    %7 = sbr.rel target = $region3
  $region8: #{wrapped_deeplab_forward.9} parent=0 // loop_exit
    _

// kernel: wrapped_deeplab_forward.7
$region0: #{wrapped_deeplab_forward.7}
  #allocation0 [shape = 'u32[]', space=smem, size = 0x4, offset = 0x4, fixed_abs, tag = 'smem constant byte address 0x4 - core index']
  #allocation1 [shape = 'u32[144,128]{1,0:T(1,128)}', space=vmem, size = 0x12000, scoped, tag = 'internal scratch']
  %s0 = inlined_call_operand.vmem [shape: bf16[2,12,12,16], index: 0, kind: input, shape index: {}]
  %s1 = inlined_call_operand.vmem [shape: bf16[16,8], index: 1, kind: input, shape index: {}]
  %s2 = inlined_call_operand.vmem [shape: f32[1,8], index: 2, kind: input, shape index: {}]
  %s3 = inlined_call_operand.vmem [shape: bf16[144,8], index: 3, kind: input, shape index: {}]
  %s4 = inlined_call_operand.vmem [shape: f32[1,8], index: 4, kind: input, shape index: {}]
  %s5 = inlined_call_operand.vmem [shape: bf16[144,8], index: 5, kind: input, shape index: {}]
  %s6 = inlined_call_operand.vmem [shape: f32[1,8], index: 6, kind: input, shape index: {}]
  %s7 = inlined_call_operand.vmem [shape: bf16[16,8], index: 7, kind: input, shape index: {}]
  %s8 = inlined_call_operand.vmem [shape: f32[1,8], index: 8, kind: input, shape index: {}]
  %s9 = inlined_call_operand.vmem [shape: bf16[24,16], index: 9, kind: input, shape index: {}]
  %s10 = inlined_call_operand.vmem [shape: bf16[8,16], index: 10, kind: input, shape index: {}]
  %s11 = inlined_call_operand.vmem [shape: f32[1,16], index: 11, kind: input, shape index: {}]
  %s12 = inlined_call_operand.vmem [shape: bf16[16,21], index: 12, kind: input, shape index: {}]
  %s13 = inlined_call_operand.vmem [shape: f32[1,21], index: 13, kind: input, shape index: {}]
  %s14 = inlined_call_operand.vmem [shape: bf16[2,16,21], index: 14, kind: output, shape index: {}]
  %s15 = sld [smem:[#allocation0]]
  $region89: #{wrapped_deeplab_forward.7} parent=0
    _
  %s17 = ssub.s32 1, %s15
  %s18 = scalar_select 0, %s17, %s15
  loop: start=0, step=1, limit=4
  $region2: #{wrapped_deeplab_forward.7} parent=0 // loop_pre_header
    _
  $region3: #{wrapped_deeplab_forward.7} parent=0 // loop_header
    %s20 = sphi 0, %s24
    %p21 = scmp.ge.s32.totalorder %s20, 4
    %s30 = sphi 0, %s32
    %s33 = sphi 0, %s30
    %s34 = sphi 0, %s33
    %s50 = sphi 0, %s34
    %s54 = sphi 0, %s54
    %s56 = sphi 0, %s54
    %s57 = sphi 0, %s56
    %s71 = sphi 0, %s57
    %s75 = sphi 0, %s75
    %s77 = sphi 0, %s75
    %s78 = sphi 0, %s77
    %s92 = sphi 0, %s78
    %s96 = sphi 0, %s96
    %s98 = sphi 0, %s96
    %s99 = sphi 0, %s98
    %s113 = sphi 0, %s99
    %s117 = sphi 0, %s117
    %s119 = sphi 0, %s117
    %s120 = sphi 0, %s119
    %s134 = sphi 0, %s120
    %s138 = sphi 0, %s138
    %s140 = sphi 0, %s138
    %s141 = sphi 0, %s140
    %s155 = sphi 0, %s141
    %s159 = sphi 0, %s159
    %s161 = sphi 0, %s159
    %s162 = sphi 0, %s161
    %s176 = sphi 0, %s162
    %s180 = sphi 0, %s180
    %s182 = sphi 0, %s180
    %s183 = sphi 0, %s182
    %s197 = sphi 0, %s183
    %s201 = sphi 0, %s201
    %s203 = sphi 0, %s201
    %s204 = sphi 0, %s203
    %s218 = sphi 0, %s204
    %s222 = sphi 0, %s222
    %s224 = sphi 0, %s222
    %s225 = sphi 0, %s224
    %s239 = sphi 0, %s225
    %s243 = sphi 0, %s243
    %s245 = sphi 0, %s243
    %s246 = sphi 0, %s245
    %s260 = sphi 0, %s246
    %s264 = sphi 0, %s264
    %s266 = sphi 0, %s264
    %s267 = sphi 0, %s266
    %s281 = sphi 0, %s267
    %s285 = sphi 0, %s285
    %s287 = sphi 0, %s285
    %s288 = sphi 0, %s287
    %s302 = sphi 0, %s288
    %s306 = sphi 0, %s306
    %s308 = sphi 0, %s306
    %s309 = sphi 0, %s308
    %s323 = sphi 0, %s309
    %s329 = sphi 0, %s331
    %s332 = sphi 0, %s329
    %s333 = sphi 0, %s332
    %s349 = sphi 0, %s333
  $region4: #{wrapped_deeplab_forward.7} parent=0 // loop_header_branch
    %23 = sbr.rel (%p21) target = $region8
  $region5: #{wrapped_deeplab_forward.7} parent=0 // loop_body
    %s25 = ssub.s32 %s20, 1
    %s26 = ssub.s32 %s20, 2
    %s27 = sadd.s32 %s20, 1
    %s28 = ssub.s32 %s20, %s27
    %p29 = scmp.eq.s32.totalorder %s28, 0
    %s31 = sadd.s32 %s30, 1
    %s32 = scalar_select %p29, %s30, %s31
    %p35 = pneg %p29
    %p36 = scmp.eq.s32.totalorder %s20, 1
    %p37 = por %p35, %p36
    %p38 = scmp.ne.s32.totalorder %s30, %s33
    %p39 = scmp.eq.s32.totalorder %s20, 0
    %p40 = por %p38, %p39
    %p41 = scmp.ne.s32.totalorder %s30, %s33
    %p42 = scmp.eq.s32.totalorder %s25, 1
    %p43 = por %p41, %p42
    %p44 = scmp.ne.s32.totalorder %s33, %s34
    %p45 = scmp.eq.s32.totalorder %s25, 0
    %p46 = por %p44, %p45
    %p47 = scmp.ne.s32.totalorder %s33, %s34
    %p48 = scmp.eq.s32.totalorder %s26, 1
    %p49 = por %p47, %p48
    %p51 = scmp.ne.s32.totalorder %s34, %s50
    %p52 = scmp.eq.s32.totalorder %s26, 0
    %p53 = por %p51, %p52
    %s55 = sadd.s32 %s54, 1
    %p58 = scmp.eq.s32.totalorder %s20, 1
    %p59 = scmp.ne.s32.totalorder %s54, %s56
    %p60 = scmp.eq.s32.totalorder %s20, 0
    %p61 = por %p59, %p60
    %p62 = scmp.ne.s32.totalorder %s54, %s56
    %p63 = scmp.eq.s32.totalorder %s25, 1
    %p64 = por %p62, %p63
    %p65 = scmp.ne.s32.totalorder %s56, %s57
    %p66 = scmp.eq.s32.totalorder %s25, 0
    %p67 = por %p65, %p66
    %p68 = scmp.ne.s32.totalorder %s56, %s57
    %p69 = scmp.eq.s32.totalorder %s26, 1
    %p70 = por %p68, %p69
    %p72 = scmp.ne.s32.totalorder %s57, %s71
    %p73 = scmp.eq.s32.totalorder %s26, 0
    %p74 = por %p72, %p73
    %s76 = sadd.s32 %s75, 1
    %p79 = scmp.eq.s32.totalorder %s20, 1
    %p80 = scmp.ne.s32.totalorder %s75, %s77
    %p81 = scmp.eq.s32.totalorder %s20, 0
    %p82 = por %p80, %p81
    %p83 = scmp.ne.s32.totalorder %s75, %s77
    %p84 = scmp.eq.s32.totalorder %s25, 1
    %p85 = por %p83, %p84
    %p86 = scmp.ne.s32.totalorder %s77, %s78
    %p87 = scmp.eq.s32.totalorder %s25, 0
    %p88 = por %p86, %p87
    %p89 = scmp.ne.s32.totalorder %s77, %s78
    %p90 = scmp.eq.s32.totalorder %s26, 1
    %p91 = por %p89, %p90
    %p93 = scmp.ne.s32.totalorder %s78, %s92
    %p94 = scmp.eq.s32.totalorder %s26, 0
    %p95 = por %p93, %p94
    %s97 = sadd.s32 %s96, 1
    %p100 = scmp.eq.s32.totalorder %s20, 1
    %p101 = scmp.ne.s32.totalorder %s96, %s98
    %p102 = scmp.eq.s32.totalorder %s20, 0
    %p103 = por %p101, %p102
    %p104 = scmp.ne.s32.totalorder %s96, %s98
    %p105 = scmp.eq.s32.totalorder %s25, 1
    %p106 = por %p104, %p105
    %p107 = scmp.ne.s32.totalorder %s98, %s99
    %p108 = scmp.eq.s32.totalorder %s25, 0
    %p109 = por %p107, %p108
    %p110 = scmp.ne.s32.totalorder %s98, %s99
    %p111 = scmp.eq.s32.totalorder %s26, 1
    %p112 = por %p110, %p111
    %p114 = scmp.ne.s32.totalorder %s99, %s113
    %p115 = scmp.eq.s32.totalorder %s26, 0
    %p116 = por %p114, %p115
    %s118 = sadd.s32 %s117, 1
    %p121 = scmp.eq.s32.totalorder %s20, 1
    %p122 = scmp.ne.s32.totalorder %s117, %s119
    %p123 = scmp.eq.s32.totalorder %s20, 0
    %p124 = por %p122, %p123
    %p125 = scmp.ne.s32.totalorder %s117, %s119
    %p126 = scmp.eq.s32.totalorder %s25, 1
    %p127 = por %p125, %p126
    %p128 = scmp.ne.s32.totalorder %s119, %s120
    %p129 = scmp.eq.s32.totalorder %s25, 0
    %p130 = por %p128, %p129
    %p131 = scmp.ne.s32.totalorder %s119, %s120
    %p132 = scmp.eq.s32.totalorder %s26, 1
    %p133 = por %p131, %p132
    %p135 = scmp.ne.s32.totalorder %s120, %s134
    %p136 = scmp.eq.s32.totalorder %s26, 0
    %p137 = por %p135, %p136
    %s139 = sadd.s32 %s138, 1
    %p142 = scmp.eq.s32.totalorder %s20, 1
    %p143 = scmp.ne.s32.totalorder %s138, %s140
    %p144 = scmp.eq.s32.totalorder %s20, 0
    %p145 = por %p143, %p144
    %p146 = scmp.ne.s32.totalorder %s138, %s140
    %p147 = scmp.eq.s32.totalorder %s25, 1
    %p148 = por %p146, %p147
    %p149 = scmp.ne.s32.totalorder %s140, %s141
    %p150 = scmp.eq.s32.totalorder %s25, 0
    %p151 = por %p149, %p150
    %p152 = scmp.ne.s32.totalorder %s140, %s141
    %p153 = scmp.eq.s32.totalorder %s26, 1
    %p154 = por %p152, %p153
    %p156 = scmp.ne.s32.totalorder %s141, %s155
    %p157 = scmp.eq.s32.totalorder %s26, 0
    %p158 = por %p156, %p157
    %s160 = sadd.s32 %s159, 1
    %p163 = scmp.eq.s32.totalorder %s20, 1
    %p164 = scmp.ne.s32.totalorder %s159, %s161
    %p165 = scmp.eq.s32.totalorder %s20, 0
    %p166 = por %p164, %p165
    %p167 = scmp.ne.s32.totalorder %s159, %s161
    %p168 = scmp.eq.s32.totalorder %s25, 1
    %p169 = por %p167, %p168
    %p170 = scmp.ne.s32.totalorder %s161, %s162
    %p171 = scmp.eq.s32.totalorder %s25, 0
    %p172 = por %p170, %p171
    %p173 = scmp.ne.s32.totalorder %s161, %s162
    %p174 = scmp.eq.s32.totalorder %s26, 1
    %p175 = por %p173, %p174
    %p177 = scmp.ne.s32.totalorder %s162, %s176
    %p178 = scmp.eq.s32.totalorder %s26, 0
    %p179 = por %p177, %p178
    %s181 = sadd.s32 %s180, 1
    %p184 = scmp.eq.s32.totalorder %s20, 1
    %p185 = scmp.ne.s32.totalorder %s180, %s182
    %p186 = scmp.eq.s32.totalorder %s20, 0
    %p187 = por %p185, %p186
    %p188 = scmp.ne.s32.totalorder %s180, %s182
    %p189 = scmp.eq.s32.totalorder %s25, 1
    %p190 = por %p188, %p189
    %p191 = scmp.ne.s32.totalorder %s182, %s183
    %p192 = scmp.eq.s32.totalorder %s25, 0
    %p193 = por %p191, %p192
    %p194 = scmp.ne.s32.totalorder %s182, %s183
    %p195 = scmp.eq.s32.totalorder %s26, 1
    %p196 = por %p194, %p195
    %p198 = scmp.ne.s32.totalorder %s183, %s197
    %p199 = scmp.eq.s32.totalorder %s26, 0
    %p200 = por %p198, %p199
    %s202 = sadd.s32 %s201, 1
    %p205 = scmp.eq.s32.totalorder %s20, 1
    %p206 = scmp.ne.s32.totalorder %s201, %s203
    %p207 = scmp.eq.s32.totalorder %s20, 0
    %p208 = por %p206, %p207
    %p209 = scmp.ne.s32.totalorder %s201, %s203
    %p210 = scmp.eq.s32.totalorder %s25, 1
    %p211 = por %p209, %p210
    %p212 = scmp.ne.s32.totalorder %s203, %s204
    %p213 = scmp.eq.s32.totalorder %s25, 0
    %p214 = por %p212, %p213
    %p215 = scmp.ne.s32.totalorder %s203, %s204
    %p216 = scmp.eq.s32.totalorder %s26, 1
    %p217 = por %p215, %p216
    %p219 = scmp.ne.s32.totalorder %s204, %s218
    %p220 = scmp.eq.s32.totalorder %s26, 0
    %p221 = por %p219, %p220
    %s223 = sadd.s32 %s222, 1
    %p226 = scmp.eq.s32.totalorder %s20, 1
    %p227 = scmp.ne.s32.totalorder %s222, %s224
    %p228 = scmp.eq.s32.totalorder %s20, 0
    %p229 = por %p227, %p228
    %p230 = scmp.ne.s32.totalorder %s222, %s224
    %p231 = scmp.eq.s32.totalorder %s25, 1
    %p232 = por %p230, %p231
    %p233 = scmp.ne.s32.totalorder %s224, %s225
    %p234 = scmp.eq.s32.totalorder %s25, 0
    %p235 = por %p233, %p234
    %p236 = scmp.ne.s32.totalorder %s224, %s225
    %p237 = scmp.eq.s32.totalorder %s26, 1
    %p238 = por %p236, %p237
    %p240 = scmp.ne.s32.totalorder %s225, %s239
    %p241 = scmp.eq.s32.totalorder %s26, 0
    %p242 = por %p240, %p241
    %s244 = sadd.s32 %s243, 1
    %p247 = scmp.eq.s32.totalorder %s20, 1
    %p248 = scmp.ne.s32.totalorder %s243, %s245
    %p249 = scmp.eq.s32.totalorder %s20, 0
    %p250 = por %p248, %p249
    %p251 = scmp.ne.s32.totalorder %s243, %s245
    %p252 = scmp.eq.s32.totalorder %s25, 1
    %p253 = por %p251, %p252
    %p254 = scmp.ne.s32.totalorder %s245, %s246
    %p255 = scmp.eq.s32.totalorder %s25, 0
    %p256 = por %p254, %p255
    %p257 = scmp.ne.s32.totalorder %s245, %s246
    %p258 = scmp.eq.s32.totalorder %s26, 1
    %p259 = por %p257, %p258
    %p261 = scmp.ne.s32.totalorder %s246, %s260
    %p262 = scmp.eq.s32.totalorder %s26, 0
    %p263 = por %p261, %p262
    %s265 = sadd.s32 %s264, 1
    %p268 = scmp.eq.s32.totalorder %s20, 1
    %p269 = scmp.ne.s32.totalorder %s264, %s266
    %p270 = scmp.eq.s32.totalorder %s20, 0
    %p271 = por %p269, %p270
    %p272 = scmp.ne.s32.totalorder %s264, %s266
    %p273 = scmp.eq.s32.totalorder %s25, 1
    %p274 = por %p272, %p273
    %p275 = scmp.ne.s32.totalorder %s266, %s267
    %p276 = scmp.eq.s32.totalorder %s25, 0
    %p277 = por %p275, %p276
    %p278 = scmp.ne.s32.totalorder %s266, %s267
    %p279 = scmp.eq.s32.totalorder %s26, 1
    %p280 = por %p278, %p279
    %p282 = scmp.ne.s32.totalorder %s267, %s281
    %p283 = scmp.eq.s32.totalorder %s26, 0
    %p284 = por %p282, %p283
    %s286 = sadd.s32 %s285, 1
    %p289 = scmp.eq.s32.totalorder %s20, 1
    %p290 = scmp.ne.s32.totalorder %s285, %s287
    %p291 = scmp.eq.s32.totalorder %s20, 0
    %p292 = por %p290, %p291
    %p293 = scmp.ne.s32.totalorder %s285, %s287
    %p294 = scmp.eq.s32.totalorder %s25, 1
    %p295 = por %p293, %p294
    %p296 = scmp.ne.s32.totalorder %s287, %s288
    %p297 = scmp.eq.s32.totalorder %s25, 0
    %p298 = por %p296, %p297
    %p299 = scmp.ne.s32.totalorder %s287, %s288
    %p300 = scmp.eq.s32.totalorder %s26, 1
    %p301 = por %p299, %p300
    %p303 = scmp.ne.s32.totalorder %s288, %s302
    %p304 = scmp.eq.s32.totalorder %s26, 0
    %p305 = por %p303, %p304
    %s307 = sadd.s32 %s306, 1
    %p310 = scmp.eq.s32.totalorder %s20, 1
    %p311 = scmp.ne.s32.totalorder %s306, %s308
    %p312 = scmp.eq.s32.totalorder %s20, 0
    %p313 = por %p311, %p312
    %p314 = scmp.ne.s32.totalorder %s306, %s308
    %p315 = scmp.eq.s32.totalorder %s25, 1
    %p316 = por %p314, %p315
    %p317 = scmp.ne.s32.totalorder %s308, %s309
    %p318 = scmp.eq.s32.totalorder %s25, 0
    %p319 = por %p317, %p318
    %p320 = scmp.ne.s32.totalorder %s308, %s309
    %p321 = scmp.eq.s32.totalorder %s26, 1
    %p322 = por %p320, %p321
    %p324 = scmp.ne.s32.totalorder %s309, %s323
    %p325 = scmp.eq.s32.totalorder %s26, 0
    %p326 = por %p324, %p325
    %s327 = ssub.s32 %s20, %s27
    %p328 = scmp.eq.s32.totalorder %s327, 0
    %s330 = sadd.s32 %s329, 1
    %s331 = scalar_select %p328, %s329, %s330
    %p334 = pneg %p328
    %p335 = scmp.eq.s32.totalorder %s20, 1
    %p336 = por %p334, %p335
    %p337 = scmp.ne.s32.totalorder %s329, %s332
    %p338 = scmp.eq.s32.totalorder %s20, 0
    %p339 = por %p337, %p338
    %p340 = scmp.ne.s32.totalorder %s329, %s332
    %p341 = scmp.eq.s32.totalorder %s25, 1
    %p342 = por %p340, %p341
    %p343 = scmp.ne.s32.totalorder %s332, %s333
    %p344 = scmp.eq.s32.totalorder %s25, 0
    %p345 = por %p343, %p344
    %p346 = scmp.ne.s32.totalorder %s332, %s333
    %p347 = scmp.eq.s32.totalorder %s26, 1
    %p348 = por %p346, %p347
    %p350 = scmp.ne.s32.totalorder %s333, %s349
    %p351 = scmp.eq.s32.totalorder %s26, 0
    %p352 = por %p350, %p351
    %p353 = scmp.le.s32.totalorder 1, %s20
    %p354 = scmp.lt.s32.totalorder %s20, 3
    %p355 = pnand %p353, %p354
    %p356 = pneg %p355
    // Predicated region
    $region9: #{wrapped_deeplab_forward.7} parent=5 // pred_check
      _
    $region10: #{wrapped_deeplab_forward.7} parent=5 // pred_check_branch
      %358 = sbr.rel (%p355) target = $region12
    $region11: #{wrapped_deeplab_forward.7} parent=5 // pred_region
      %s359 = ssub.s32 %s20, 1
      // Predicated region
      $region13: #{wrapped_deeplab_forward.7} parent=11 // pred_check
        %p360 = pneg %p67
      $region14: #{wrapped_deeplab_forward.7} parent=11 // pred_check_branch
        %362 = sbr.rel (%p360) target = $region16
      $region15: #{wrapped_deeplab_forward.7} parent=11 // pred_region
        _
      $region16: #{wrapped_deeplab_forward.7} parent=11 // pred_fallthru
        _
      // Predicated region
      $region17: #{wrapped_deeplab_forward.7} parent=11 // pred_check
        %p363 = pneg %p88
      $region18: #{wrapped_deeplab_forward.7} parent=11 // pred_check_branch
        %365 = sbr.rel (%p363) target = $region20
      $region19: #{wrapped_deeplab_forward.7} parent=11 // pred_region
        _
      $region20: #{wrapped_deeplab_forward.7} parent=11 // pred_fallthru
        _
      // Predicated region
      $region21: #{wrapped_deeplab_forward.7} parent=11 // pred_check
        %p366 = pneg %p109
      $region22: #{wrapped_deeplab_forward.7} parent=11 // pred_check_branch
        %368 = sbr.rel (%p366) target = $region24
      $region23: #{wrapped_deeplab_forward.7} parent=11 // pred_region
        _
      $region24: #{wrapped_deeplab_forward.7} parent=11 // pred_fallthru
        _
      // Predicated region
      $region25: #{wrapped_deeplab_forward.7} parent=11 // pred_check
        %p369 = pneg %p130
      $region26: #{wrapped_deeplab_forward.7} parent=11 // pred_check_branch
        %371 = sbr.rel (%p369) target = $region28
      $region27: #{wrapped_deeplab_forward.7} parent=11 // pred_region
        _
      $region28: #{wrapped_deeplab_forward.7} parent=11 // pred_fallthru
        _
      // Predicated region
      $region29: #{wrapped_deeplab_forward.7} parent=11 // pred_check
        %p372 = pneg %p151
      $region30: #{wrapped_deeplab_forward.7} parent=11 // pred_check_branch
        %374 = sbr.rel (%p372) target = $region32
      $region31: #{wrapped_deeplab_forward.7} parent=11 // pred_region
        _
      $region32: #{wrapped_deeplab_forward.7} parent=11 // pred_fallthru
        _
      // Predicated region
      $region33: #{wrapped_deeplab_forward.7} parent=11 // pred_check
        %p375 = pneg %p172
      $region34: #{wrapped_deeplab_forward.7} parent=11 // pred_check_branch
        %377 = sbr.rel (%p375) target = $region36
      $region35: #{wrapped_deeplab_forward.7} parent=11 // pred_region
        _
      $region36: #{wrapped_deeplab_forward.7} parent=11 // pred_fallthru
        _
      // Predicated region
      $region37: #{wrapped_deeplab_forward.7} parent=11 // pred_check
        %p378 = pneg %p193
      $region38: #{wrapped_deeplab_forward.7} parent=11 // pred_check_branch
        %380 = sbr.rel (%p378) target = $region40
      $region39: #{wrapped_deeplab_forward.7} parent=11 // pred_region
        _
      $region40: #{wrapped_deeplab_forward.7} parent=11 // pred_fallthru
        _
      // Predicated region
      $region41: #{wrapped_deeplab_forward.7} parent=11 // pred_check
        %p381 = pneg %p214
      $region42: #{wrapped_deeplab_forward.7} parent=11 // pred_check_branch
        %383 = sbr.rel (%p381) target = $region44
      $region43: #{wrapped_deeplab_forward.7} parent=11 // pred_region
        _
      $region44: #{wrapped_deeplab_forward.7} parent=11 // pred_fallthru
        _
      // Predicated region
      $region45: #{wrapped_deeplab_forward.7} parent=11 // pred_check
        %p384 = pneg %p235
      $region46: #{wrapped_deeplab_forward.7} parent=11 // pred_check_branch
        %386 = sbr.rel (%p384) target = $region48
      $region47: #{wrapped_deeplab_forward.7} parent=11 // pred_region
        _
      $region48: #{wrapped_deeplab_forward.7} parent=11 // pred_fallthru
        _
      // Predicated region
      $region49: #{wrapped_deeplab_forward.7} parent=11 // pred_check
        %p387 = pneg %p256
      $region50: #{wrapped_deeplab_forward.7} parent=11 // pred_check_branch
        %389 = sbr.rel (%p387) target = $region52
      $region51: #{wrapped_deeplab_forward.7} parent=11 // pred_region
        _
      $region52: #{wrapped_deeplab_forward.7} parent=11 // pred_fallthru
        _
      // Predicated region
      $region53: #{wrapped_deeplab_forward.7} parent=11 // pred_check
        %p390 = pneg %p277
      $region54: #{wrapped_deeplab_forward.7} parent=11 // pred_check_branch
        %392 = sbr.rel (%p390) target = $region56
      $region55: #{wrapped_deeplab_forward.7} parent=11 // pred_region
        _
      $region56: #{wrapped_deeplab_forward.7} parent=11 // pred_fallthru
        _
      // Predicated region
      $region57: #{wrapped_deeplab_forward.7} parent=11 // pred_check
        %p393 = pneg %p298
      $region58: #{wrapped_deeplab_forward.7} parent=11 // pred_check_branch
        %395 = sbr.rel (%p393) target = $region60
      $region59: #{wrapped_deeplab_forward.7} parent=11 // pred_region
        _
      $region60: #{wrapped_deeplab_forward.7} parent=11 // pred_fallthru
        _
      // Predicated region
      $region61: #{wrapped_deeplab_forward.7} parent=11 // pred_check
        %p396 = pneg %p319
      $region62: #{wrapped_deeplab_forward.7} parent=11 // pred_check_branch
        %398 = sbr.rel (%p396) target = $region64
      $region63: #{wrapped_deeplab_forward.7} parent=11 // pred_region
        _
      $region64: #{wrapped_deeplab_forward.7} parent=11 // pred_fallthru
        _
    $region12: #{wrapped_deeplab_forward.7} parent=5 // pred_fallthru
      _
    %p399 = scmp.lt.s32.totalorder %s20, 2
    // Predicated region
    $region65: #{wrapped_deeplab_forward.7} parent=5 // pred_check
      %p400 = pneg %p399
    $region66: #{wrapped_deeplab_forward.7} parent=5 // pred_check_branch
      %402 = sbr.rel (%p400) target = $region68
    $region67: #{wrapped_deeplab_forward.7} parent=5 // pred_region
      // Predicated region
      $region69: #{wrapped_deeplab_forward.7} parent=67 // pred_check
        %p403 = pneg %p40
      $region70: #{wrapped_deeplab_forward.7} parent=67 // pred_check_branch
        %405 = sbr.rel (%p403) target = $region72
      $region71: #{wrapped_deeplab_forward.7} parent=67 // pred_region
        %p406 = scmp.lt.s32.totalorder %s20, 1
        %s407 = scalar_select %p406, %s20, 1
        %s408 = smul.addr %s407, 24
        %s409 = smul.addr %s408, 4
        %s410 = scalar_lea.vmem %s0, %s409
      $region72: #{wrapped_deeplab_forward.7} parent=67 // pred_fallthru
        _
    $region68: #{wrapped_deeplab_forward.7} parent=5 // pred_fallthru
      _
    %p411 = scmp.le.s32.totalorder 1, %s20
    %p412 = scmp.lt.s32.totalorder %s20, 3
    %p413 = pnand %p411, %p412
    %p414 = pneg %p413
    // Predicated region
    $region73: #{wrapped_deeplab_forward.7} parent=5 // pred_check
      _
    $region74: #{wrapped_deeplab_forward.7} parent=5 // pred_check_branch
      %416 = sbr.rel (%p413) target = $region76
    $region75: #{wrapped_deeplab_forward.7} parent=5 // pred_region
      %s417 = ssub.s32 %s20, 1
      %p418 = scmp.lt.s32.totalorder %s25, 1
      %s419 = scalar_select %p418, %s25, 1
      %s420 = smul.addr %s419, 24
      %s421 = smul.addr %s420, 4
      %s422 = scalar_lea.vmem %s0, %s421
      %p423 = pneg %p46
      %p424 = pneg %p43
      %p425 = pneg %p67
      %p426 = pneg %p64
      %p427 = pneg %p88
      %p428 = pneg %p85
      %p429 = pneg %p109
      %p430 = pneg %p106
      %p431 = pneg %p130
      %p432 = pneg %p127
      %p433 = pneg %p151
      %p434 = pneg %p148
      %p435 = pneg %p172
      %p436 = pneg %p169
      %p437 = pneg %p193
      %p438 = pneg %p190
      %p439 = pneg %p214
      %p440 = pneg %p211
      %p441 = pneg %p235
      %p442 = pneg %p232
      %p443 = pneg %p256
      %p444 = pneg %p253
      %p445 = pneg %p277
      %p446 = pneg %p274
      %p447 = pneg %p298
      %p448 = pneg %p295
      %p449 = pneg %p319
      %p450 = pneg %p316
      %p451 = pneg %p345
      %p452 = pneg %p342
      %p453 = scmp.lt.s32.totalorder %s25, 1
      %s454 = scalar_select %p453, %s25, 1
      %s455 = smul.addr %s454, 2
      %s456 = smul.addr %s455, 4
      %s457 = scalar_lea.vmem %s14, %s456
      %p458 = scmp.lt.s32.totalorder %s25, 1
      %s459 = scalar_select %p458, %s25, 1
      %s460 = smul.addr %s459, 24
      %s461 = smul.addr %s460, 4
      %s462 = scalar_lea.vmem %s0, %s461
      %p463 = scmp.lt.s32.totalorder %s25, 1
      %s464 = scalar_select %p463, %s25, 1
      %s465 = smul.addr %s464, 2
      %s466 = smul.addr %s465, 4
      %s467 = scalar_lea.vmem %s14, %s466
      %v469 = vld [vmem:[%s462] sm:$0xf]
      %v470 = vld [vmem:[%s462 + $0x4] sm:$0x3]
      %v471 = vld [vmem:[%s462 + $0x8] sm:$0xf]
      %v472 = vld [vmem:[%s462 + $0xc] sm:$0x3]
      %v473 = vld [vmem:[%s462 + $0x10] sm:$0xf]
      %v474 = vld [vmem:[%s462 + $0x14] sm:$0x3]
      %v475 = vld [vmem:[%s462 + $0x18] sm:$0xf]
      %v476 = vld [vmem:[%s462 + $0x1c] sm:$0x3]
      %v477 = vld [vmem:[%s462 + $0x20] sm:$0xf]
      %v478 = vld [vmem:[%s462 + $0x24] sm:$0x3]
      %v479 = vld [vmem:[%s462 + $0x28] sm:$0xf]
      %v480 = vld [vmem:[%s462 + $0x2c] sm:$0x3]
      %v481 = vld [vmem:[%s462 + $0x30] sm:$0xf]
      %v482 = vld [vmem:[%s462 + $0x34] sm:$0x3]
      %v483 = vld [vmem:[%s462 + $0x38] sm:$0xf]
      %v484 = vld [vmem:[%s462 + $0x3c] sm:$0x3]
      %v485 = vld [vmem:[%s462 + $0x40] sm:$0xf]
      %v486 = vld [vmem:[%s462 + $0x44] sm:$0x3]
      %v487 = vld [vmem:[%s462 + $0x48] sm:$0xf]
      %v488 = vld [vmem:[%s462 + $0x4c] sm:$0x3]
      %v489 = vld [vmem:[%s462 + $0x50] sm:$0xf]
      %v490 = vld [vmem:[%s462 + $0x54] sm:$0x3]
      %v491 = vld [vmem:[%s462 + $0x58] sm:$0xf]
      %v492 = vld [vmem:[%s462 + $0x5c] sm:$0x3]
      %v494 = vunpack.c.l.b16 %v477
      %v495 = vpack.c.b16 %v494, %v494
      %v496 = vrot.slane %v495, 2
      %v498 = vunpack.c.l.b16 %v481
      %v499 = vpack.c.b16 %v498, %v498
      %v500 = vrot.slane %v499, 6
      %v502 = vunpack.c.l.b16 %v483
      %v503 = vpack.c.b16 %v502, %v502
      %vm504 = vcmask 1041408
      %v507 = vsel %vm504, %v496, %v479
      %vm508 = vcmask 1043456
      %v510 = vsel %vm508, %v507, %v500
      %vm511 = vcmask 1045504
      %v513 = vsel %vm511, %v510, %v503
      %v515 = vld [vmem:[%s1] sm:$0xf]
      %v516 = vld [vmem:[%s1 + $0x4] sm:$0xf]
      %v517 = vld [vmem:[%s2] sm:$0x1]
      %v519 = vlaneseq
      %v520 = vshrl.u32 %v519, 7
      %v521 = vsub.s32 0, %v520
      %v522 = vrot.slane %v517, %v521
      %v526 = vunpack.c.l.b16 %v515
      %v527 = vunpack.c.l.b16 %v516
      %v528 = vpack.c.b16 %v527, %v526
      %vm530 = vcmask 130048
      %v531 = vsel %vm530, %v513, 0
      %533 = vmatprep.subr.bf16.mxu0 0
      %534 = vmatpush1.bf16.msra.mxu0 %v528
      %535 = vmatprep.subr.bf16.mxu0 0
      %536 = vmatpush1.bf16.msra.mxu0 0
      %537 = vmatprep.subr.bf16.mxu0 0
      %538 = vmatpush1.bf16.msra.mxu0 0
      %539 = vmatprep.subr.bf16.mxu0 0
      %540 = vmatpush1.bf16.msra.mxu0 0
      %541 = vmatprep.subr.bf16.mxu0 0
      %542 = vmatpush1.bf16.msra.mxu0 0
      %543 = vmatprep.subr.bf16.mxu0 0
      %544 = vmatpush1.bf16.msra.mxu0 0
      %545 = vmatprep.subr.bf16.mxu0 0
      %546 = vmatpush1.bf16.msra.mxu0 0
      %547 = vmatprep.subr.bf16.mxu0 0
      %548 = vmatpush1.bf16.msra.mxu0 0
      %549 = vmatprep.subr.bf16.mxu0 0
      %550 = vmatpush1.bf16.msra.mxu0 0
      %551 = vmatprep.subr.bf16.mxu0 0
      %552 = vmatpush1.bf16.msra.mxu0 0
      %553 = vmatprep.subr.bf16.mxu0 0
      %554 = vmatpush1.bf16.msra.mxu0 0
      %555 = vmatprep.subr.bf16.mxu0 0
      %556 = vmatpush1.bf16.msra.mxu0 0
      %557 = vmatprep.subr.bf16.mxu0 0
      %558 = vmatpush1.bf16.msra.mxu0 0
      %559 = vmatprep.subr.bf16.mxu0 0
      %560 = vmatpush1.bf16.msra.mxu0 0
      %561 = vmatprep.subr.bf16.mxu0 0
      %562 = vmatpush1.bf16.msra.mxu0 0
      %563 = vmatprep.subr.bf16.mxu0 0
      %564 = vmatpush1.bf16.msra.mxu0 0
      %565 = vmatprep.mubr.bf16.mxu0 0
      %566 = vmatmul.mubr.bf16.gmra.mrb[0].mxu0 %v531
      %v567 = vpop.f32.mrb[0].mxu0
      %v568 = vadd.f32 %v522, %v567
      %v569 = vpop.f32.mrb[0].mxu0
      %v570 = vpop.f32.mrb[0].mxu0
      %v571 = vadd.f32 %v522, %v570
      %v572 = vpop.f32.mrb[0].mxu0
      %573 = vdwg.mxu0
      %v574 = vmax.f32 %v568, 0.0
      %v575 = vmax.f32 %v571, 0.0
      %v577 = vunpack.c.l.b16 %v473
      %v578 = vpack.c.b16 %v577, %v577
      %v579 = vrot.slane %v578, 1
      %580 = vrot.lane.b32.xlu0 %v579, 16
      %v581 = vpop.permute.xlu0 %580
      %v583 = vunpack.c.l.b16 %v474
      %v584 = vpack.c.b16 %v583, %v577
      %v585 = vrot.slane %v584, 2
      %586 = vrot.lane.b32.xlu0 %v585, 32
      %v587 = vpop.permute.xlu0 %586
      %588 = vrot.lane.b32.xlu0 %v495, 48
      %v589 = vpop.permute.xlu0 %588
      %v590 = vrot.slane %v495, 1
      %591 = vrot.lane.b32.xlu0 %v590, 64
      %v592 = vpop.permute.xlu0 %591
      %v594 = vunpack.c.l.b16 %v478
      %v595 = vpack.c.b16 %v594, %v494
      %v596 = vrot.slane %v595, 2
      %597 = vrot.lane.b32.xlu0 %v596, 80
      %v598 = vpop.permute.xlu0 %597
      %599 = vrot.lane.b32.xlu0 %v499, 96
      %v600 = vpop.permute.xlu0 %599
      %v601 = vrot.slane %v499, 1
      %602 = vrot.lane.b32.xlu0 %v601, 112
      %v603 = vpop.permute.xlu0 %602
      %v605 = vunpack.c.l.b16 %v482
      %v606 = vpack.c.b16 %v605, %v498
      %v607 = vrot.slane %v606, 2
      %v610 = vsel %vm530, %v473, %v581
      %vm611 = vcmask 261120
      %v613 = vsel %vm611, %v610, %v587
      %vm614 = vcmask 392192
      %v616 = vsel %vm614, %v613, %v589
      %vm617 = vcmask 523264
      %v619 = vsel %vm617, %v616, %v592
      %vm620 = vcmask 654336
      %v622 = vsel %vm620, %v619, %v598
      %vm623 = vcmask 785408
      %v625 = vsel %vm623, %v622, %v600
      %vm626 = vcmask 916480
      %v628 = vsel %vm626, %v625, %v603
      %v629 = vld [vmem:[%s3] sm:$0xf]
      %v630 = vld [vmem:[%s3 + $0x4] sm:$0xf]
      %v631 = vld [vmem:[%s3 + $0x8] sm:$0xf]
      %v632 = vld [vmem:[%s3 + $0xc] sm:$0xf]
      %v633 = vld [vmem:[%s3 + $0x10] sm:$0xf]
      %v634 = vld [vmem:[%s3 + $0x14] sm:$0xf]
      %v635 = vld [vmem:[%s3 + $0x18] sm:$0xf]
      %v636 = vld [vmem:[%s3 + $0x1c] sm:$0xf]
      %v637 = vld [vmem:[%s3 + $0x20] sm:$0xf]
      %v638 = vld [vmem:[%s3 + $0x24] sm:$0xf]
      %v639 = vld [vmem:[%s3 + $0x28] sm:$0xf]
      %v640 = vld [vmem:[%s3 + $0x2c] sm:$0xf]
      %v641 = vld [vmem:[%s3 + $0x30] sm:$0xf]
      %v642 = vld [vmem:[%s3 + $0x34] sm:$0xf]
      %v643 = vld [vmem:[%s3 + $0x38] sm:$0xf]
      %v644 = vld [vmem:[%s3 + $0x3c] sm:$0xf]
      %v645 = vld [vmem:[%s3 + $0x40] sm:$0xf]
      %v646 = vld [vmem:[%s3 + $0x44] sm:$0xf]
      %v648 = vrot.slane %v628, 1
      %v649 = vrot.slane %v607, 1
      %v669 = vunpack.c.l.b16 %v629
      %v670 = vunpack.c.l.b16 %v630
      %v671 = vunpack.c.l.b16 %v631
      %v672 = vunpack.c.l.b16 %v632
      %v673 = vunpack.c.l.b16 %v633
      %v674 = vunpack.c.l.b16 %v634
      %v675 = vunpack.c.l.b16 %v635
      %v676 = vunpack.c.l.b16 %v636
      %v677 = vunpack.c.l.b16 %v637
      %v678 = vunpack.c.l.b16 %v638
      %v679 = vunpack.c.l.b16 %v639
      %v680 = vunpack.c.l.b16 %v640
      %v681 = vunpack.c.l.b16 %v641
      %v682 = vunpack.c.l.b16 %v642
      %v683 = vunpack.c.l.b16 %v643
      %v684 = vunpack.c.l.b16 %v644
      %v685 = vunpack.c.l.b16 %v645
      %v686 = vunpack.c.l.b16 %v646
      %v687 = vpack.c.b16 %v670, %v669
      %v688 = vpack.c.b16 %v672, %v671
      %v689 = vpack.c.b16 %v674, %v673
      %v690 = vpack.c.b16 %v676, %v675
      %v691 = vpack.c.b16 %v678, %v677
      %v692 = vpack.c.b16 %v680, %v679
      %v693 = vpack.c.b16 %v682, %v681
      %v694 = vpack.c.b16 %v684, %v683
      %v695 = vpack.c.b16 %v686, %v685
      %v706 = vsel %vm530, %v649, 0
      %708 = vmatprep.subr.bf16.mxu0 0
      %709 = vmatpush1.bf16.msra.mxu0 %v687
      %710 = vmatprep.subr.bf16.mxu0 0
      %711 = vmatpush1.bf16.msra.mxu0 %v688
      %712 = vmatprep.subr.bf16.mxu0 0
      %713 = vmatpush1.bf16.msra.mxu0 %v689
      %714 = vmatprep.subr.bf16.mxu0 0
      %715 = vmatpush1.bf16.msra.mxu0 %v690
      %716 = vmatprep.subr.bf16.mxu0 0
      %717 = vmatpush1.bf16.msra.mxu0 %v691
      %718 = vmatprep.subr.bf16.mxu0 0
      %719 = vmatpush1.bf16.msra.mxu0 %v692
      %720 = vmatprep.subr.bf16.mxu0 0
      %721 = vmatpush1.bf16.msra.mxu0 %v693
      %722 = vmatprep.subr.bf16.mxu0 0
      %723 = vmatpush1.bf16.msra.mxu0 %v694
      %724 = vmatprep.subr.bf16.mxu0 0
      %725 = vmatpush1.bf16.msra.mxu0 %v695
      %726 = vmatprep.subr.bf16.mxu0 0
      %727 = vmatpush1.bf16.msra.mxu0 0
      %728 = vmatprep.subr.bf16.mxu0 0
      %729 = vmatpush1.bf16.msra.mxu0 0
      %730 = vmatprep.subr.bf16.mxu0 0
      %731 = vmatpush1.bf16.msra.mxu0 0
      %732 = vmatprep.subr.bf16.mxu0 0
      %733 = vmatpush1.bf16.msra.mxu0 0
      %734 = vmatprep.subr.bf16.mxu0 0
      %735 = vmatpush1.bf16.msra.mxu0 0
      %736 = vmatprep.subr.bf16.mxu0 0
      %737 = vmatpush1.bf16.msra.mxu0 0
      %738 = vmatprep.subr.bf16.mxu0 0
      %739 = vmatpush1.bf16.msra.mxu0 0
      %740 = vmatprep.mubr.bf16.mxu0 %v706
      %741 = vmatmul.mubr.bf16.gmra.mrb[0].mxu0 %v648
      %v742 = vpop.f32.mrb[0].mxu0
      %v743 = vadd.f32 0.0, %v742
      %v744 = vpop.f32.mrb[0].mxu0
      %v745 = vpop.f32.mrb[0].mxu0
      %v746 = vpop.f32.mrb[0].mxu0
      %747 = vdwg.mxu0
      %v749 = vunpack.c.l.b16 %v475
      %v750 = vpack.c.b16 %v749, %v749
      %v751 = vrot.slane %v750, 1
      %752 = vrot.lane.b32.xlu0 %v751, 16
      %v753 = vpop.permute.xlu0 %752
      %v755 = vunpack.c.l.b16 %v476
      %v756 = vpack.c.b16 %v755, %v749
      %v757 = vrot.slane %v756, 2
      %758 = vrot.lane.b32.xlu0 %v757, 32
      %v759 = vpop.permute.xlu0 %758
      %v761 = vunpack.c.l.b16 %v479
      %v762 = vpack.c.b16 %v761, %v761
      %763 = vrot.lane.b32.xlu0 %v762, 48
      %v764 = vpop.permute.xlu0 %763
      %v765 = vrot.slane %v762, 1
      %766 = vrot.lane.b32.xlu0 %v765, 64
      %v767 = vpop.permute.xlu0 %766
      %v769 = vunpack.c.l.b16 %v480
      %v770 = vpack.c.b16 %v769, %v761
      %v771 = vrot.slane %v770, 2
      %772 = vrot.lane.b32.xlu0 %v771, 80
      %v773 = vpop.permute.xlu0 %772
      %774 = vrot.lane.b32.xlu0 %v503, 96
      %v775 = vpop.permute.xlu0 %774
      %v776 = vrot.slane %v503, 1
      %777 = vrot.lane.b32.xlu0 %v776, 112
      %v778 = vpop.permute.xlu0 %777
      %v780 = vunpack.c.l.b16 %v484
      %v781 = vpack.c.b16 %v780, %v502
      %v782 = vrot.slane %v781, 2
      %v785 = vsel %vm530, %v475, %v753
      %v787 = vsel %vm611, %v785, %v759
      %v789 = vsel %vm614, %v787, %v764
      %v791 = vsel %vm617, %v789, %v767
      %v793 = vsel %vm620, %v791, %v773
      %v795 = vsel %vm623, %v793, %v775
      %v797 = vsel %vm626, %v795, %v778
      %v799 = vrot.slane %v797, 1
      %v800 = vrot.slane %v782, 1
      %v803 = vsel %vm530, %v800, 0
      %805 = vmatprep.subr.bf16.mxu0 0
      %806 = vmatpush1.bf16.msra.mxu0 %v687
      %807 = vmatprep.subr.bf16.mxu0 0
      %808 = vmatpush1.bf16.msra.mxu0 %v688
      %809 = vmatprep.subr.bf16.mxu0 0
      %810 = vmatpush1.bf16.msra.mxu0 %v689
      %811 = vmatprep.subr.bf16.mxu0 0
      %812 = vmatpush1.bf16.msra.mxu0 %v690
      %813 = vmatprep.subr.bf16.mxu0 0
      %814 = vmatpush1.bf16.msra.mxu0 %v691
      %815 = vmatprep.subr.bf16.mxu0 0
      %816 = vmatpush1.bf16.msra.mxu0 %v692
      %817 = vmatprep.subr.bf16.mxu0 0
      %818 = vmatpush1.bf16.msra.mxu0 %v693
      %819 = vmatprep.subr.bf16.mxu0 0
      %820 = vmatpush1.bf16.msra.mxu0 %v694
      %821 = vmatprep.subr.bf16.mxu0 0
      %822 = vmatpush1.bf16.msra.mxu0 %v695
      %823 = vmatprep.subr.bf16.mxu0 0
      %824 = vmatpush1.bf16.msra.mxu0 0
      %825 = vmatprep.subr.bf16.mxu0 0
      %826 = vmatpush1.bf16.msra.mxu0 0
      %827 = vmatprep.subr.bf16.mxu0 0
      %828 = vmatpush1.bf16.msra.mxu0 0
      %829 = vmatprep.subr.bf16.mxu0 0
      %830 = vmatpush1.bf16.msra.mxu0 0
      %831 = vmatprep.subr.bf16.mxu0 0
      %832 = vmatpush1.bf16.msra.mxu0 0
      %833 = vmatprep.subr.bf16.mxu0 0
      %834 = vmatpush1.bf16.msra.mxu0 0
      %835 = vmatprep.subr.bf16.mxu0 0
      %836 = vmatpush1.bf16.msra.mxu0 0
      %837 = vmatprep.mubr.bf16.mxu0 %v803
      %838 = vmatmul.mubr.bf16.gmra.mrb[0].mxu0 %v799
      %v839 = vpop.f32.mrb[0].mxu0
      %v840 = vadd.f32 0.0, %v839
      %v841 = vpop.f32.mrb[0].mxu0
      %v842 = vpop.f32.mrb[0].mxu0
      %v843 = vpop.f32.mrb[0].mxu0
      %844 = vdwg.mxu0
      %845 = vrot.lane.b32.xlu0 %v590, 16
      %v846 = vpop.permute.xlu0 %845
      %847 = vrot.lane.b32.xlu0 %v596, 32
      %v848 = vpop.permute.xlu0 %847
      %849 = vrot.lane.b32.xlu0 %v499, 48
      %v850 = vpop.permute.xlu0 %849
      %851 = vrot.lane.b32.xlu0 %v601, 64
      %v852 = vpop.permute.xlu0 %851
      %853 = vrot.lane.b32.xlu0 %v607, 80
      %v854 = vpop.permute.xlu0 %853
      %v856 = vunpack.c.l.b16 %v485
      %v857 = vpack.c.b16 %v856, %v856
      %858 = vrot.lane.b32.xlu0 %v857, 96
      %v859 = vpop.permute.xlu0 %858
      %v860 = vrot.slane %v857, 1
      %861 = vrot.lane.b32.xlu0 %v860, 112
      %v862 = vpop.permute.xlu0 %861
      %v864 = vunpack.c.l.b16 %v486
      %v865 = vpack.c.b16 %v864, %v856
      %v866 = vrot.slane %v865, 2
      %v869 = vsel %vm530, %v477, %v846
      %v871 = vsel %vm611, %v869, %v848
      %v873 = vsel %vm614, %v871, %v850
      %v875 = vsel %vm617, %v873, %v852
      %v877 = vsel %vm620, %v875, %v854
      %v879 = vsel %vm623, %v877, %v859
      %v881 = vsel %vm626, %v879, %v862
      %v883 = vrot.slane %v881, 1
      %v884 = vrot.slane %v866, 1
      %v887 = vsel %vm530, %v884, 0
      %889 = vmatprep.subr.bf16.mxu0 0
      %890 = vmatpush1.bf16.msra.mxu0 %v687
      %891 = vmatprep.subr.bf16.mxu0 0
      %892 = vmatpush1.bf16.msra.mxu0 %v688
      %893 = vmatprep.subr.bf16.mxu0 0
      %894 = vmatpush1.bf16.msra.mxu0 %v689
      %895 = vmatprep.subr.bf16.mxu0 0
      %896 = vmatpush1.bf16.msra.mxu0 %v690
      %897 = vmatprep.subr.bf16.mxu0 0
      %898 = vmatpush1.bf16.msra.mxu0 %v691
      %899 = vmatprep.subr.bf16.mxu0 0
      %900 = vmatpush1.bf16.msra.mxu0 %v692
      %901 = vmatprep.subr.bf16.mxu0 0
      %902 = vmatpush1.bf16.msra.mxu0 %v693
      %903 = vmatprep.subr.bf16.mxu0 0
      %904 = vmatpush1.bf16.msra.mxu0 %v694
      %905 = vmatprep.subr.bf16.mxu0 0
      %906 = vmatpush1.bf16.msra.mxu0 %v695
      %907 = vmatprep.subr.bf16.mxu0 0
      %908 = vmatpush1.bf16.msra.mxu0 0
      %909 = vmatprep.subr.bf16.mxu0 0
      %910 = vmatpush1.bf16.msra.mxu0 0
      %911 = vmatprep.subr.bf16.mxu0 0
      %912 = vmatpush1.bf16.msra.mxu0 0
      %913 = vmatprep.subr.bf16.mxu0 0
      %914 = vmatpush1.bf16.msra.mxu0 0
      %915 = vmatprep.subr.bf16.mxu0 0
      %916 = vmatpush1.bf16.msra.mxu0 0
      %917 = vmatprep.subr.bf16.mxu0 0
      %918 = vmatpush1.bf16.msra.mxu0 0
      %919 = vmatprep.subr.bf16.mxu0 0
      %920 = vmatpush1.bf16.msra.mxu0 0
      %921 = vmatprep.mubr.bf16.mxu0 %v887
      %922 = vmatmul.mubr.bf16.gmra.mrb[0].mxu0 %v883
      %v923 = vpop.f32.mrb[0].mxu0
      %v924 = vadd.f32 0.0, %v923
      %v925 = vpop.f32.mrb[0].mxu0
      %v926 = vpop.f32.mrb[0].mxu0
      %v927 = vpop.f32.mrb[0].mxu0
      %928 = vdwg.mxu0
      %929 = vrot.lane.b32.xlu0 %v765, 16
      %v930 = vpop.permute.xlu0 %929
      %931 = vrot.lane.b32.xlu0 %v771, 32
      %v932 = vpop.permute.xlu0 %931
      %933 = vrot.lane.b32.xlu0 %v503, 48
      %v934 = vpop.permute.xlu0 %933
      %935 = vrot.lane.b32.xlu0 %v776, 64
      %v936 = vpop.permute.xlu0 %935
      %937 = vrot.lane.b32.xlu0 %v782, 80
      %v938 = vpop.permute.xlu0 %937
      %v940 = vunpack.c.l.b16 %v487
      %v941 = vpack.c.b16 %v940, %v940
      %942 = vrot.lane.b32.xlu0 %v941, 96
      %v943 = vpop.permute.xlu0 %942
      %v944 = vrot.slane %v941, 1
      %945 = vrot.lane.b32.xlu0 %v944, 112
      %v946 = vpop.permute.xlu0 %945
      %v948 = vunpack.c.l.b16 %v488
      %v949 = vpack.c.b16 %v948, %v940
      %v950 = vrot.slane %v949, 2
      %v952 = vsel %vm530, %v479, %v930
      %v954 = vsel %vm611, %v952, %v932
      %v956 = vsel %vm614, %v954, %v934
      %v958 = vsel %vm617, %v956, %v936
      %v960 = vsel %vm620, %v958, %v938
      %v962 = vsel %vm623, %v960, %v943
      %v964 = vsel %vm626, %v962, %v946
      %v966 = vrot.slane %v964, 1
      %v967 = vrot.slane %v950, 1
      %v970 = vsel %vm530, %v967, 0
      %972 = vmatprep.subr.bf16.mxu0 0
      %973 = vmatpush1.bf16.msra.mxu0 %v687
      %974 = vmatprep.subr.bf16.mxu0 0
      %975 = vmatpush1.bf16.msra.mxu0 %v688
      %976 = vmatprep.subr.bf16.mxu0 0
      %977 = vmatpush1.bf16.msra.mxu0 %v689
      %978 = vmatprep.subr.bf16.mxu0 0
      %979 = vmatpush1.bf16.msra.mxu0 %v690
      %980 = vmatprep.subr.bf16.mxu0 0
      %981 = vmatpush1.bf16.msra.mxu0 %v691
      %982 = vmatprep.subr.bf16.mxu0 0
      %983 = vmatpush1.bf16.msra.mxu0 %v692
      %984 = vmatprep.subr.bf16.mxu0 0
      %985 = vmatpush1.bf16.msra.mxu0 %v693
      %986 = vmatprep.subr.bf16.mxu0 0
      %987 = vmatpush1.bf16.msra.mxu0 %v694
      %988 = vmatprep.subr.bf16.mxu0 0
      %989 = vmatpush1.bf16.msra.mxu0 %v695
      %990 = vmatprep.subr.bf16.mxu0 0
      %991 = vmatpush1.bf16.msra.mxu0 0
      %992 = vmatprep.subr.bf16.mxu0 0
      %993 = vmatpush1.bf16.msra.mxu0 0
      %994 = vmatprep.subr.bf16.mxu0 0
      %995 = vmatpush1.bf16.msra.mxu0 0
      %996 = vmatprep.subr.bf16.mxu0 0
      %997 = vmatpush1.bf16.msra.mxu0 0
      %998 = vmatprep.subr.bf16.mxu0 0
      %999 = vmatpush1.bf16.msra.mxu0 0
      %1000 = vmatprep.subr.bf16.mxu0 0
      %1001 = vmatpush1.bf16.msra.mxu0 0
      %1002 = vmatprep.subr.bf16.mxu0 0
      %1003 = vmatpush1.bf16.msra.mxu0 0
      %1004 = vmatprep.mubr.bf16.mxu0 %v970
      %1005 = vmatmul.mubr.bf16.gmra.mrb[0].mxu0 %v966
      %v1006 = vpop.f32.mrb[0].mxu0
      %v1007 = vadd.f32 0.0, %v1006
      %v1008 = vpop.f32.mrb[0].mxu0
      %v1009 = vpop.f32.mrb[0].mxu0
      %v1010 = vpop.f32.mrb[0].mxu0
      %1011 = vdwg.mxu0
      %v1013 = vrot.slane %v840, 4
      %v1016 = vrot.slane %v1007, 4
      %v1018 = vsel %vm508, %v743, %v1013
      %v1019 = vsel %vm508, %v924, %v1016
      %v1020 = vld [vmem:[%s4] sm:$0x1]
      %v1022 = vlaneseq
      %v1023 = vshrl.u32 %v1022, 7
      %v1024 = vsub.s32 0, %v1023
      %v1025 = vrot.slane %v1020, %v1024
      %v1027 = vadd.f32 %v1018, %v1025
      %v1028 = vadd.f32 %v1019, %v1025
      %v1029 = vmax.f32 %v1027, 0.0
      %v1030 = vmax.f32 %v1028, 0.0
      %v1032 = vunpack.c.l.b16 %v469
      %v1033 = vpack.c.b16 %v1032, %v1032
      %v1034 = vrot.slane %v1033, 2
      %1035 = vrot.lane.b32.xlu0 %v1034, 16
      %v1036 = vpop.permute.xlu0 %1035
      %v1038 = vunpack.c.l.b16 %v470
      %v1039 = vpack.c.b16 %v1038, %v1038
      %1040 = vrot.lane.b32.xlu0 %v1039, 32
      %v1041 = vpop.permute.xlu0 %1040
      %1042 = vrot.lane.b32.xlu0 %v496, 64
      %v1043 = vpop.permute.xlu0 %1042
      %v1044 = vpack.c.b16 %v594, %v594
      %1045 = vrot.lane.b32.xlu0 %v1044, 80
      %v1046 = vpop.permute.xlu0 %1045
      %v1047 = vrot.slane %v857, 2
      %1048 = vrot.lane.b32.xlu0 %v1047, 112
      %v1049 = vpop.permute.xlu0 %1048
      %v1052 = vsel %vm530, %v469, %v1036
      %v1054 = vsel %vm611, %v1052, %v1041
      %v1055 = vsel %vm614, %v1054, %v589
      %v1057 = vsel %vm617, %v1055, %v1043
      %v1059 = vsel %vm620, %v1057, %v1046
      %v1060 = vsel %vm623, %v1059, %v859
      %v1062 = vsel %vm626, %v1060, %v1049
      %v1064 = vld [vmem:[%s5] sm:$0xf]
      %v1065 = vld [vmem:[%s5 + $0x4] sm:$0xf]
      %v1066 = vld [vmem:[%s5 + $0x8] sm:$0xf]
      %v1067 = vld [vmem:[%s5 + $0xc] sm:$0xf]
      %v1068 = vld [vmem:[%s5 + $0x10] sm:$0xf]
      %v1069 = vld [vmem:[%s5 + $0x14] sm:$0xf]
      %v1070 = vld [vmem:[%s5 + $0x18] sm:$0xf]
      %v1071 = vld [vmem:[%s5 + $0x1c] sm:$0xf]
      %v1072 = vld [vmem:[%s5 + $0x20] sm:$0xf]
      %v1073 = vld [vmem:[%s5 + $0x24] sm:$0xf]
      %v1074 = vld [vmem:[%s5 + $0x28] sm:$0xf]
      %v1075 = vld [vmem:[%s5 + $0x2c] sm:$0xf]
      %v1076 = vld [vmem:[%s5 + $0x30] sm:$0xf]
      %v1077 = vld [vmem:[%s5 + $0x34] sm:$0xf]
      %v1078 = vld [vmem:[%s5 + $0x38] sm:$0xf]
      %v1079 = vld [vmem:[%s5 + $0x3c] sm:$0xf]
      %v1080 = vld [vmem:[%s5 + $0x40] sm:$0xf]
      %v1081 = vld [vmem:[%s5 + $0x44] sm:$0xf]
      %v1100 = vunpack.c.l.b16 %v1064
      %v1101 = vunpack.c.l.b16 %v1065
      %v1102 = vunpack.c.l.b16 %v1066
      %v1103 = vunpack.c.l.b16 %v1067
      %v1104 = vunpack.c.l.b16 %v1068
      %v1105 = vunpack.c.l.b16 %v1069
      %v1106 = vunpack.c.l.b16 %v1070
      %v1107 = vunpack.c.l.b16 %v1071
      %v1108 = vunpack.c.l.b16 %v1072
      %v1109 = vunpack.c.l.b16 %v1073
      %v1110 = vunpack.c.l.b16 %v1074
      %v1111 = vunpack.c.l.b16 %v1075
      %v1112 = vunpack.c.l.b16 %v1076
      %v1113 = vunpack.c.l.b16 %v1077
      %v1114 = vunpack.c.l.b16 %v1078
      %v1115 = vunpack.c.l.b16 %v1079
      %v1116 = vunpack.c.l.b16 %v1080
      %v1117 = vunpack.c.l.b16 %v1081
      %v1118 = vpack.c.b16 %v1101, %v1100
      %v1119 = vpack.c.b16 %v1103, %v1102
      %v1120 = vpack.c.b16 %v1105, %v1104
      %v1121 = vpack.c.b16 %v1107, %v1106
      %v1122 = vpack.c.b16 %v1109, %v1108
      %v1123 = vpack.c.b16 %v1111, %v1110
      %v1124 = vpack.c.b16 %v1113, %v1112
      %v1125 = vpack.c.b16 %v1115, %v1114
      %v1126 = vpack.c.b16 %v1117, %v1116
      %v1137 = vsel %vm530, %v486, 0
      %1139 = vmatprep.subr.bf16.mxu0 0
      %1140 = vmatpush1.bf16.msra.mxu0 %v1118
      %1141 = vmatprep.subr.bf16.mxu0 0
      %1142 = vmatpush1.bf16.msra.mxu0 %v1119
      %1143 = vmatprep.subr.bf16.mxu0 0
      %1144 = vmatpush1.bf16.msra.mxu0 %v1120
      %1145 = vmatprep.subr.bf16.mxu0 0
      %1146 = vmatpush1.bf16.msra.mxu0 %v1121
      %1147 = vmatprep.subr.bf16.mxu0 0
      %1148 = vmatpush1.bf16.msra.mxu0 %v1122
      %1149 = vmatprep.subr.bf16.mxu0 0
      %1150 = vmatpush1.bf16.msra.mxu0 %v1123
      %1151 = vmatprep.subr.bf16.mxu0 0
      %1152 = vmatpush1.bf16.msra.mxu0 %v1124
      %1153 = vmatprep.subr.bf16.mxu0 0
      %1154 = vmatpush1.bf16.msra.mxu0 %v1125
      %1155 = vmatprep.subr.bf16.mxu0 0
      %1156 = vmatpush1.bf16.msra.mxu0 %v1126
      %1157 = vmatprep.subr.bf16.mxu0 0
      %1158 = vmatpush1.bf16.msra.mxu0 0
      %1159 = vmatprep.subr.bf16.mxu0 0
      %1160 = vmatpush1.bf16.msra.mxu0 0
      %1161 = vmatprep.subr.bf16.mxu0 0
      %1162 = vmatpush1.bf16.msra.mxu0 0
      %1163 = vmatprep.subr.bf16.mxu0 0
      %1164 = vmatpush1.bf16.msra.mxu0 0
      %1165 = vmatprep.subr.bf16.mxu0 0
      %1166 = vmatpush1.bf16.msra.mxu0 0
      %1167 = vmatprep.subr.bf16.mxu0 0
      %1168 = vmatpush1.bf16.msra.mxu0 0
      %1169 = vmatprep.subr.bf16.mxu0 0
      %1170 = vmatpush1.bf16.msra.mxu0 0
      %1171 = vmatprep.mubr.bf16.mxu0 %v1137
      %1172 = vmatmul.mubr.bf16.gmra.mrb[0].mxu0 %v1062
      %v1173 = vpop.f32.mrb[0].mxu0
      %v1174 = vadd.f32 0.0, %v1173
      %v1175 = vpop.f32.mrb[0].mxu0
      %v1176 = vpop.f32.mrb[0].mxu0
      %v1177 = vpop.f32.mrb[0].mxu0
      %1178 = vdwg.mxu0
      %v1180 = vunpack.c.l.b16 %v471
      %v1181 = vpack.c.b16 %v1180, %v1180
      %v1182 = vrot.slane %v1181, 2
      %1183 = vrot.lane.b32.xlu0 %v1182, 16
      %v1184 = vpop.permute.xlu0 %1183
      %v1186 = vunpack.c.l.b16 %v472
      %v1187 = vpack.c.b16 %v1186, %v1186
      %1188 = vrot.lane.b32.xlu0 %v1187, 32
      %v1189 = vpop.permute.xlu0 %1188
      %v1190 = vrot.slane %v762, 2
      %1191 = vrot.lane.b32.xlu0 %v1190, 64
      %v1192 = vpop.permute.xlu0 %1191
      %v1193 = vpack.c.b16 %v769, %v769
      %1194 = vrot.lane.b32.xlu0 %v1193, 80
      %v1195 = vpop.permute.xlu0 %1194
      %v1196 = vrot.slane %v941, 2
      %1197 = vrot.lane.b32.xlu0 %v1196, 112
      %v1198 = vpop.permute.xlu0 %1197
      %v1201 = vsel %vm530, %v471, %v1184
      %v1203 = vsel %vm611, %v1201, %v1189
      %v1204 = vsel %vm614, %v1203, %v764
      %v1206 = vsel %vm617, %v1204, %v1192
      %v1208 = vsel %vm620, %v1206, %v1195
      %v1209 = vsel %vm623, %v1208, %v943
      %v1211 = vsel %vm626, %v1209, %v1198
      %v1214 = vsel %vm530, %v488, 0
      %1216 = vmatprep.subr.bf16.mxu0 0
      %1217 = vmatpush1.bf16.msra.mxu0 %v1118
      %1218 = vmatprep.subr.bf16.mxu0 0
      %1219 = vmatpush1.bf16.msra.mxu0 %v1119
      %1220 = vmatprep.subr.bf16.mxu0 0
      %1221 = vmatpush1.bf16.msra.mxu0 %v1120
      %1222 = vmatprep.subr.bf16.mxu0 0
      %1223 = vmatpush1.bf16.msra.mxu0 %v1121
      %1224 = vmatprep.subr.bf16.mxu0 0
      %1225 = vmatpush1.bf16.msra.mxu0 %v1122
      %1226 = vmatprep.subr.bf16.mxu0 0
      %1227 = vmatpush1.bf16.msra.mxu0 %v1123
      %1228 = vmatprep.subr.bf16.mxu0 0
      %1229 = vmatpush1.bf16.msra.mxu0 %v1124
      %1230 = vmatprep.subr.bf16.mxu0 0
      %1231 = vmatpush1.bf16.msra.mxu0 %v1125
      %1232 = vmatprep.subr.bf16.mxu0 0
      %1233 = vmatpush1.bf16.msra.mxu0 %v1126
      %1234 = vmatprep.subr.bf16.mxu0 0
      %1235 = vmatpush1.bf16.msra.mxu0 0
      %1236 = vmatprep.subr.bf16.mxu0 0
      %1237 = vmatpush1.bf16.msra.mxu0 0
      %1238 = vmatprep.subr.bf16.mxu0 0
      %1239 = vmatpush1.bf16.msra.mxu0 0
      %1240 = vmatprep.subr.bf16.mxu0 0
      %1241 = vmatpush1.bf16.msra.mxu0 0
      %1242 = vmatprep.subr.bf16.mxu0 0
      %1243 = vmatpush1.bf16.msra.mxu0 0
      %1244 = vmatprep.subr.bf16.mxu0 0
      %1245 = vmatpush1.bf16.msra.mxu0 0
      %1246 = vmatprep.subr.bf16.mxu0 0
      %1247 = vmatpush1.bf16.msra.mxu0 0
      %1248 = vmatprep.mubr.bf16.mxu0 %v1214
      %1249 = vmatmul.mubr.bf16.gmra.mrb[0].mxu0 %v1211
      %v1250 = vpop.f32.mrb[0].mxu0
      %v1251 = vadd.f32 0.0, %v1250
      %v1252 = vpop.f32.mrb[0].mxu0
      %v1253 = vpop.f32.mrb[0].mxu0
      %v1254 = vpop.f32.mrb[0].mxu0
      %1255 = vdwg.mxu0
      %v1256 = vrot.slane %v578, 2
      %1257 = vrot.lane.b32.xlu0 %v1256, 16
      %v1258 = vpop.permute.xlu0 %1257
      %v1259 = vpack.c.b16 %v583, %v583
      %1260 = vrot.lane.b32.xlu0 %v1259, 32
      %v1261 = vpop.permute.xlu0 %1260
      %v1262 = vrot.slane %v499, 2
      %1263 = vrot.lane.b32.xlu0 %v1262, 64
      %v1264 = vpop.permute.xlu0 %1263
      %v1265 = vpack.c.b16 %v605, %v605
      %1266 = vrot.lane.b32.xlu0 %v1265, 80
      %v1267 = vpop.permute.xlu0 %1266
      %v1269 = vunpack.c.l.b16 %v489
      %v1270 = vpack.c.b16 %v1269, %v1269
      %1271 = vrot.lane.b32.xlu0 %v1270, 96
      %v1272 = vpop.permute.xlu0 %1271
      %v1273 = vrot.slane %v1270, 2
      %1274 = vrot.lane.b32.xlu0 %v1273, 112
      %v1275 = vpop.permute.xlu0 %1274
      %v1277 = vsel %vm530, %v473, %v1258
      %v1279 = vsel %vm611, %v1277, %v1261
      %v1280 = vsel %vm614, %v1279, %v850
      %v1282 = vsel %vm617, %v1280, %v1264
      %v1284 = vsel %vm620, %v1282, %v1267
      %v1286 = vsel %vm623, %v1284, %v1272
      %v1288 = vsel %vm626, %v1286, %v1275
      %v1291 = vsel %vm530, %v490, 0
      %1293 = vmatprep.subr.bf16.mxu0 0
      %1294 = vmatpush1.bf16.msra.mxu0 %v1118
      %1295 = vmatprep.subr.bf16.mxu0 0
      %1296 = vmatpush1.bf16.msra.mxu0 %v1119
      %1297 = vmatprep.subr.bf16.mxu0 0
      %1298 = vmatpush1.bf16.msra.mxu0 %v1120
      %1299 = vmatprep.subr.bf16.mxu0 0
      %1300 = vmatpush1.bf16.msra.mxu0 %v1121
      %1301 = vmatprep.subr.bf16.mxu0 0
      %1302 = vmatpush1.bf16.msra.mxu0 %v1122
      %1303 = vmatprep.subr.bf16.mxu0 0
      %1304 = vmatpush1.bf16.msra.mxu0 %v1123
      %1305 = vmatprep.subr.bf16.mxu0 0
      %1306 = vmatpush1.bf16.msra.mxu0 %v1124
      %1307 = vmatprep.subr.bf16.mxu0 0
      %1308 = vmatpush1.bf16.msra.mxu0 %v1125
      %1309 = vmatprep.subr.bf16.mxu0 0
      %1310 = vmatpush1.bf16.msra.mxu0 %v1126
      %1311 = vmatprep.subr.bf16.mxu0 0
      %1312 = vmatpush1.bf16.msra.mxu0 0
      %1313 = vmatprep.subr.bf16.mxu0 0
      %1314 = vmatpush1.bf16.msra.mxu0 0
      %1315 = vmatprep.subr.bf16.mxu0 0
      %1316 = vmatpush1.bf16.msra.mxu0 0
      %1317 = vmatprep.subr.bf16.mxu0 0
      %1318 = vmatpush1.bf16.msra.mxu0 0
      %1319 = vmatprep.subr.bf16.mxu0 0
      %1320 = vmatpush1.bf16.msra.mxu0 0
      %1321 = vmatprep.subr.bf16.mxu0 0
      %1322 = vmatpush1.bf16.msra.mxu0 0
      %1323 = vmatprep.subr.bf16.mxu0 0
      %1324 = vmatpush1.bf16.msra.mxu0 0
      %1325 = vmatprep.mubr.bf16.mxu0 %v1291
      %1326 = vmatmul.mubr.bf16.gmra.mrb[0].mxu0 %v1288
      %v1327 = vpop.f32.mrb[0].mxu0
      %v1328 = vadd.f32 0.0, %v1327
      %v1329 = vpop.f32.mrb[0].mxu0
      %v1330 = vpop.f32.mrb[0].mxu0
      %v1331 = vpop.f32.mrb[0].mxu0
      %1332 = vdwg.mxu0
      %v1333 = vrot.slane %v750, 2
      %1334 = vrot.lane.b32.xlu0 %v1333, 16
      %v1335 = vpop.permute.xlu0 %1334
      %v1336 = vpack.c.b16 %v755, %v755
      %1337 = vrot.lane.b32.xlu0 %v1336, 32
      %v1338 = vpop.permute.xlu0 %1337
      %v1339 = vrot.slane %v503, 2
      %1340 = vrot.lane.b32.xlu0 %v1339, 64
      %v1341 = vpop.permute.xlu0 %1340
      %v1342 = vpack.c.b16 %v780, %v780
      %1343 = vrot.lane.b32.xlu0 %v1342, 80
      %v1344 = vpop.permute.xlu0 %1343
      %v1346 = vunpack.c.l.b16 %v491
      %v1347 = vpack.c.b16 %v1346, %v1346
      %1348 = vrot.lane.b32.xlu0 %v1347, 96
      %v1349 = vpop.permute.xlu0 %1348
      %v1350 = vrot.slane %v1347, 2
      %1351 = vrot.lane.b32.xlu0 %v1350, 112
      %v1352 = vpop.permute.xlu0 %1351
      %v1354 = vsel %vm530, %v475, %v1335
      %v1356 = vsel %vm611, %v1354, %v1338
      %v1357 = vsel %vm614, %v1356, %v934
      %v1359 = vsel %vm617, %v1357, %v1341
      %v1361 = vsel %vm620, %v1359, %v1344
      %v1363 = vsel %vm623, %v1361, %v1349
      %v1365 = vsel %vm626, %v1363, %v1352
      %v1368 = vsel %vm530, %v492, 0
      %1370 = vmatprep.subr.bf16.mxu0 0
      %1371 = vmatpush1.bf16.msra.mxu0 %v1118
      %1372 = vmatprep.subr.bf16.mxu0 0
      %1373 = vmatpush1.bf16.msra.mxu0 %v1119
      %1374 = vmatprep.subr.bf16.mxu0 0
      %1375 = vmatpush1.bf16.msra.mxu0 %v1120
      %1376 = vmatprep.subr.bf16.mxu0 0
      %1377 = vmatpush1.bf16.msra.mxu0 %v1121
      %1378 = vmatprep.subr.bf16.mxu0 0
      %1379 = vmatpush1.bf16.msra.mxu0 %v1122
      %1380 = vmatprep.subr.bf16.mxu0 0
      %1381 = vmatpush1.bf16.msra.mxu0 %v1123
      %1382 = vmatprep.subr.bf16.mxu0 0
      %1383 = vmatpush1.bf16.msra.mxu0 %v1124
      %1384 = vmatprep.subr.bf16.mxu0 0
      %1385 = vmatpush1.bf16.msra.mxu0 %v1125
      %1386 = vmatprep.subr.bf16.mxu0 0
      %1387 = vmatpush1.bf16.msra.mxu0 %v1126
      %1388 = vmatprep.subr.bf16.mxu0 0
      %1389 = vmatpush1.bf16.msra.mxu0 0
      %1390 = vmatprep.subr.bf16.mxu0 0
      %1391 = vmatpush1.bf16.msra.mxu0 0
      %1392 = vmatprep.subr.bf16.mxu0 0
      %1393 = vmatpush1.bf16.msra.mxu0 0
      %1394 = vmatprep.subr.bf16.mxu0 0
      %1395 = vmatpush1.bf16.msra.mxu0 0
      %1396 = vmatprep.subr.bf16.mxu0 0
      %1397 = vmatpush1.bf16.msra.mxu0 0
      %1398 = vmatprep.subr.bf16.mxu0 0
      %1399 = vmatpush1.bf16.msra.mxu0 0
      %1400 = vmatprep.subr.bf16.mxu0 0
      %1401 = vmatpush1.bf16.msra.mxu0 0
      %1402 = vmatprep.mubr.bf16.mxu0 %v1368
      %1403 = vmatmul.mubr.bf16.gmra.mrb[0].mxu0 %v1365
      %v1404 = vpop.f32.mrb[0].mxu0
      %v1405 = vadd.f32 0.0, %v1404
      %v1406 = vpop.f32.mrb[0].mxu0
      %v1407 = vpop.f32.mrb[0].mxu0
      %v1408 = vpop.f32.mrb[0].mxu0
      %1409 = vdwg.mxu0
      %v1411 = vrot.slane %v1251, 4
      %v1414 = vrot.slane %v1405, 4
      %v1416 = vsel %vm508, %v1174, %v1411
      %v1417 = vsel %vm508, %v1328, %v1414
      %v1418 = vld [vmem:[%s6] sm:$0x1]
      %v1420 = vlaneseq
      %v1421 = vshrl.u32 %v1420, 7
      %v1422 = vsub.s32 0, %v1421
      %v1423 = vrot.slane %v1418, %v1422
      %v1425 = vadd.f32 %v1416, %v1423
      %v1426 = vadd.f32 %v1417, %v1423
      %v1427 = vmax.f32 %v1425, 0.0
      %v1428 = vmax.f32 %v1426, 0.0
      %v1429 = vunpack.c.l.bf16 %v513
      %v1430 = vunpack.c.h.bf16 %v513
      %v1431 = vsel %vm530, %v1429, 0.0
      %v1432 = vsel %vm530, %v1430, 0.0
      %v1433 = vadd.f32 %v1431, %v1432
      %v1434 = vrot.slane %v1433, 4
      %v1435 = vadd.f32 %v1433, %v1434
      %v1436 = vrot.slane %v1435, 2
      %v1437 = vadd.f32 %v1435, %v1436
      %v1438 = vrot.slane %v1437, 1
      %v1439 = vadd.f32 %v1437, %v1438
      %v1440 = vrcp.pop 16.0
      %v1441 = vmul.f32 %v1439, %v1440
      %v1442 = vpack.c.bf16 %v1441, %v1441
      %v1443 = vld [vmem:[%s7] sm:$0xf]
      %v1444 = vld [vmem:[%s7 + $0x4] sm:$0xf]
      %v1445 = vld [vmem:[%s8] sm:$0x1]
      %v1448 = vunpack.c.l.b16 %v1443
      %v1449 = vunpack.c.l.b16 %v1444
      %v1450 = vpack.c.b16 %v1449, %v1448
      %v1453 = vsel %vm530, %v1442, 0
      %1455 = vmatprep.subr.bf16.mxu0 0
      %1456 = vmatpush1.bf16.msra.mxu0 %v1450
      %1457 = vmatprep.subr.bf16.mxu0 0
      %1458 = vmatpush1.bf16.msra.mxu0 0
      %1459 = vmatprep.subr.bf16.mxu0 0
      %1460 = vmatpush1.bf16.msra.mxu0 0
      %1461 = vmatprep.subr.bf16.mxu0 0
      %1462 = vmatpush1.bf16.msra.mxu0 0
      %1463 = vmatprep.subr.bf16.mxu0 0
      %1464 = vmatpush1.bf16.msra.mxu0 0
      %1465 = vmatprep.subr.bf16.mxu0 0
      %1466 = vmatpush1.bf16.msra.mxu0 0
      %1467 = vmatprep.subr.bf16.mxu0 0
      %1468 = vmatpush1.bf16.msra.mxu0 0
      %1469 = vmatprep.subr.bf16.mxu0 0
      %1470 = vmatpush1.bf16.msra.mxu0 0
      %1471 = vmatprep.subr.bf16.mxu0 0
      %1472 = vmatpush1.bf16.msra.mxu0 0
      %1473 = vmatprep.subr.bf16.mxu0 0
      %1474 = vmatpush1.bf16.msra.mxu0 0
      %1475 = vmatprep.subr.bf16.mxu0 0
      %1476 = vmatpush1.bf16.msra.mxu0 0
      %1477 = vmatprep.subr.bf16.mxu0 0
      %1478 = vmatpush1.bf16.msra.mxu0 0
      %1479 = vmatprep.subr.bf16.mxu0 0
      %1480 = vmatpush1.bf16.msra.mxu0 0
      %1481 = vmatprep.subr.bf16.mxu0 0
      %1482 = vmatpush1.bf16.msra.mxu0 0
      %1483 = vmatprep.subr.bf16.mxu0 0
      %1484 = vmatpush1.bf16.msra.mxu0 0
      %1485 = vmatprep.subr.bf16.mxu0 0
      %1486 = vmatpush1.bf16.msra.mxu0 0
      %1487 = vmatprep.mubr.bf16.mxu0 0
      %1488 = vmatmul.mubr.bf16.gmra.mrb[0].mxu0 %v1453
      %v1489 = vpop.f32.mrb[0].mxu0
      %v1490 = vadd.f32 %v1445, %v1489
      %v1491 = vpop.f32.mrb[0].mxu0
      %v1492 = vpop.f32.mrb[0].mxu0
      %v1493 = vpop.f32.mrb[0].mxu0
      %1494 = vdwg.mxu0
      %v1495 = vmax.f32 %v1490, 0.0
      %1498 = vrot.lane.b32.xlu0 %v1029, 8
      %v1499 = vpop.permute.xlu0 %1498
      %1500 = vrot.lane.b32.xlu0 %v1030, 8
      %v1501 = vpop.permute.xlu0 %1500
      %1506 = vrot.lane.b32.xlu0 %v1427, 16
      %v1507 = vpop.permute.xlu0 %1506
      %1508 = vrot.lane.b32.xlu0 %v1428, 16
      %v1509 = vpop.permute.xlu0 %1508
      %vm1512 = vcmask 64512
      %v1513 = vsel %vm1512, %v574, %v1499
      %v1514 = vsel %vm1512, %v575, %v1501
      %v1515 = vsel %vm530, %v1513, %v1507
      %v1516 = vsel %vm530, %v1514, %v1509
      %v1517 = vpack.c.bf16 %v1516, %v1515
      %v1518 = vld [vmem:[%s9] sm:$0xf]
      %v1519 = vld [vmem:[%s9 + $0x4] sm:$0xf]
      %v1520 = vld [vmem:[%s9 + $0x8] sm:$0xf]
      %v1521 = vpack.c.bf16 %v1495, %v1495
      %v1522 = vld [vmem:[%s10] sm:$0xf]
      %v1524 = vsel %vm1512, %v1521, 0
      %v1527 = vsel %vm508, %v1522, 0
      %1529 = vmatprep.subr.bf16.mxu0 0
      %1530 = vmatpush1.bf16.msra.mxu0 %v1527
      %1531 = vmatprep.subr.bf16.mxu0 0
      %1532 = vmatpush1.bf16.msra.mxu0 0
      %1533 = vmatprep.subr.bf16.mxu0 0
      %1534 = vmatpush1.bf16.msra.mxu0 0
      %1535 = vmatprep.subr.bf16.mxu0 0
      %1536 = vmatpush1.bf16.msra.mxu0 0
      %1537 = vmatprep.subr.bf16.mxu0 0
      %1538 = vmatpush1.bf16.msra.mxu0 0
      %1539 = vmatprep.subr.bf16.mxu0 0
      %1540 = vmatpush1.bf16.msra.mxu0 0
      %1541 = vmatprep.subr.bf16.mxu0 0
      %1542 = vmatpush1.bf16.msra.mxu0 0
      %1543 = vmatprep.subr.bf16.mxu0 0
      %1544 = vmatpush1.bf16.msra.mxu0 0
      %1545 = vmatprep.subr.bf16.mxu0 0
      %1546 = vmatpush1.bf16.msra.mxu0 0
      %1547 = vmatprep.subr.bf16.mxu0 0
      %1548 = vmatpush1.bf16.msra.mxu0 0
      %1549 = vmatprep.subr.bf16.mxu0 0
      %1550 = vmatpush1.bf16.msra.mxu0 0
      %1551 = vmatprep.subr.bf16.mxu0 0
      %1552 = vmatpush1.bf16.msra.mxu0 0
      %1553 = vmatprep.subr.bf16.mxu0 0
      %1554 = vmatpush1.bf16.msra.mxu0 0
      %1555 = vmatprep.subr.bf16.mxu0 0
      %1556 = vmatpush1.bf16.msra.mxu0 0
      %1557 = vmatprep.subr.bf16.mxu0 0
      %1558 = vmatpush1.bf16.msra.mxu0 0
      %1559 = vmatprep.subr.bf16.mxu0 0
      %1560 = vmatpush1.bf16.msra.mxu0 0
      %1561 = vmatprep.mubr.bf16.mxu0 0
      %1562 = vmatmul.mubr.bf16.gmra.mrb[0].mxu0 %v1524
      %v1563 = vpop.f32.mrb[0].mxu0
      %v1564 = vadd.f32 0.0, %v1563
      %v1565 = vpop.f32.mrb[0].mxu0
      %v1566 = vpop.f32.mrb[0].mxu0
      %v1567 = vpop.f32.mrb[0].mxu0
      %1568 = vdwg.mxu0
      %v1569 = vlaneseq
      %v1570 = vshrl.u32 %v1569, 7
      %v1571 = vsub.s32 0, %v1570
      %v1572 = vrot.slane %v1564, %v1571
      %v1576 = vunpack.c.l.b16 %v1518
      %v1577 = vunpack.c.l.b16 %v1519
      %v1578 = vunpack.c.l.b16 %v1520
      %v1579 = vpack.c.b16 %v1577, %v1576
      %v1580 = vpack.c.b16 %v1578, %v1578
      %vm1582 = vcmask 195584
      %v1584 = vsel %vm1582, %v1517, 0
      %v1587 = vsel %vm508, %v1580, 0
      %1589 = vmatprep.subr.bf16.mxu0 0
      %1590 = vmatpush1.bf16.msra.mxu0 %v1579
      %1591 = vmatprep.subr.bf16.mxu0 0
      %1592 = vmatpush1.bf16.msra.mxu0 %v1587
      %1593 = vmatprep.subr.bf16.mxu0 0
      %1594 = vmatpush1.bf16.msra.mxu0 0
      %1595 = vmatprep.subr.bf16.mxu0 0
      %1596 = vmatpush1.bf16.msra.mxu0 0
      %1597 = vmatprep.subr.bf16.mxu0 0
      %1598 = vmatpush1.bf16.msra.mxu0 0
      %1599 = vmatprep.subr.bf16.mxu0 0
      %1600 = vmatpush1.bf16.msra.mxu0 0
      %1601 = vmatprep.subr.bf16.mxu0 0
      %1602 = vmatpush1.bf16.msra.mxu0 0
      %1603 = vmatprep.subr.bf16.mxu0 0
      %1604 = vmatpush1.bf16.msra.mxu0 0
      %1605 = vmatprep.subr.bf16.mxu0 0
      %1606 = vmatpush1.bf16.msra.mxu0 0
      %1607 = vmatprep.subr.bf16.mxu0 0
      %1608 = vmatpush1.bf16.msra.mxu0 0
      %1609 = vmatprep.subr.bf16.mxu0 0
      %1610 = vmatpush1.bf16.msra.mxu0 0
      %1611 = vmatprep.subr.bf16.mxu0 0
      %1612 = vmatpush1.bf16.msra.mxu0 0
      %1613 = vmatprep.subr.bf16.mxu0 0
      %1614 = vmatpush1.bf16.msra.mxu0 0
      %1615 = vmatprep.subr.bf16.mxu0 0
      %1616 = vmatpush1.bf16.msra.mxu0 0
      %1617 = vmatprep.subr.bf16.mxu0 0
      %1618 = vmatpush1.bf16.msra.mxu0 0
      %1619 = vmatprep.subr.bf16.mxu0 0
      %1620 = vmatpush1.bf16.msra.mxu0 0
      %1621 = vmatprep.mubr.bf16.mxu0 0
      %1622 = vmatmul.mubr.bf16.gmra.mrb[0].mxu0 %v1584
      %v1623 = vpop.f32.mrb[0].mxu0
      %v1624 = vadd.f32 %v1572, %v1623
      %v1625 = vpop.f32.mrb[0].mxu0
      %v1626 = vpop.f32.mrb[0].mxu0
      %v1627 = vadd.f32 %v1572, %v1626
      %v1628 = vpop.f32.mrb[0].mxu0
      %1629 = vdwg.mxu0
      %v1630 = vld [vmem:[%s11] sm:$0x1]
      %v1632 = vlaneseq
      %v1633 = vshrl.u32 %v1632, 7
      %v1634 = vsub.s32 0, %v1633
      %v1635 = vrot.slane %v1630, %v1634
      %v1637 = vadd.f32 %v1624, %v1635
      %v1638 = vadd.f32 %v1627, %v1635
      %v1639 = vmax.f32 %v1637, 0.0
      %v1640 = vmax.f32 %v1638, 0.0
      %v1641 = vpack.c.bf16 %v1640, %v1639
      %v1642 = vld [vmem:[%s12] sm:$0xf]
      %v1643 = vld [vmem:[%s12 + $0x4] sm:$0xf]
      %v1644 = vld [vmem:[%s13] sm:$0x1]
      %v1646 = vlaneseq
      %v1647 = vshrl.u32 %v1646, 7
      %v1648 = vsub.s32 0, %v1647
      %v1649 = vrot.slane %v1644, %v1648
      %v1653 = vunpack.c.l.b16 %v1642
      %v1654 = vunpack.c.l.b16 %v1643
      %v1655 = vpack.c.b16 %v1654, %v1653
      %v1658 = vsel %vm530, %v1641, 0
      %1660 = vmatprep.subr.bf16.mxu0 0
      %1661 = vmatpush1.bf16.msra.mxu0 %v1655
      %1662 = vmatprep.subr.bf16.mxu0 0
      %1663 = vmatpush1.bf16.msra.mxu0 0
      %1664 = vmatprep.subr.bf16.mxu0 0
      %1665 = vmatpush1.bf16.msra.mxu0 0
      %1666 = vmatprep.subr.bf16.mxu0 0
      %1667 = vmatpush1.bf16.msra.mxu0 0
      %1668 = vmatprep.subr.bf16.mxu0 0
      %1669 = vmatpush1.bf16.msra.mxu0 0
      %1670 = vmatprep.subr.bf16.mxu0 0
      %1671 = vmatpush1.bf16.msra.mxu0 0
      %1672 = vmatprep.subr.bf16.mxu0 0
      %1673 = vmatpush1.bf16.msra.mxu0 0
      %1674 = vmatprep.subr.bf16.mxu0 0
      %1675 = vmatpush1.bf16.msra.mxu0 0
      %1676 = vmatprep.subr.bf16.mxu0 0
      %1677 = vmatpush1.bf16.msra.mxu0 0
      %1678 = vmatprep.subr.bf16.mxu0 0
      %1679 = vmatpush1.bf16.msra.mxu0 0
      %1680 = vmatprep.subr.bf16.mxu0 0
      %1681 = vmatpush1.bf16.msra.mxu0 0
      %1682 = vmatprep.subr.bf16.mxu0 0
      %1683 = vmatpush1.bf16.msra.mxu0 0
      %1684 = vmatprep.subr.bf16.mxu0 0
      %1685 = vmatpush1.bf16.msra.mxu0 0
      %1686 = vmatprep.subr.bf16.mxu0 0
      %1687 = vmatpush1.bf16.msra.mxu0 0
      %1688 = vmatprep.subr.bf16.mxu0 0
      %1689 = vmatpush1.bf16.msra.mxu0 0
      %1690 = vmatprep.subr.bf16.mxu0 0
      %1691 = vmatpush1.bf16.msra.mxu0 0
      %1692 = vmatprep.mubr.bf16.mxu0 0
      %1693 = vmatmul.mubr.bf16.gmra.mrb[0].mxu0 %v1658
      %v1694 = vpop.f32.mrb[0].mxu0
      %v1695 = vadd.f32 %v1649, %v1694
      %v1696 = vpop.f32.mrb[0].mxu0
      %v1697 = vpop.f32.mrb[0].mxu0
      %v1698 = vadd.f32 %v1649, %v1697
      %v1699 = vpop.f32.mrb[0].mxu0
      %1700 = vdwg.mxu0
      %v1701 = vpack.c.bf16 %v1698, %v1695
      %v1703 = vunpack.c.l.b16 %v1701
      %v1704 = vunpack.c.h.b16 %v1701
      %v1705 = vpack.c.b16 %v1703, %v1703
      %v1706 = vpack.c.b16 %v1704, %v1704
      %vm1709 = vcmask 166912
      %1710 = vst.msk [vmem:[%s467] sm:$0xf] %vm1709, %v1705
      %1711 = vst.msk [vmem:[%s467 + $0x4] sm:$0xf] %vm1709, %v1706
      %p1712 = scmp.lt.s32.totalorder %s25, 1
      %s1713 = scalar_select %p1712, %s25, 1
      %s1714 = smul.addr %s1713, 2
      %s1715 = smul.addr %s1714, 4
      %s1716 = scalar_lea.vmem %s14, %s1715
      // Predicated region
      $region77: #{wrapped_deeplab_forward.7} parent=75 // pred_check
        %p1717 = pneg %p342
      $region78: #{wrapped_deeplab_forward.7} parent=75 // pred_check_branch
        %1719 = sbr.rel (%p1717) target = $region80
      $region79: #{wrapped_deeplab_forward.7} parent=75 // pred_region
        _
      $region80: #{wrapped_deeplab_forward.7} parent=75 // pred_fallthru
        _
    $region76: #{wrapped_deeplab_forward.7} parent=5 // pred_fallthru
      _
    %p1720 = scmp.le.s32.totalorder 2, %s20
    // Predicated region
    $region81: #{wrapped_deeplab_forward.7} parent=5 // pred_check
      %p1721 = pneg %p1720
    $region82: #{wrapped_deeplab_forward.7} parent=5 // pred_check_branch
      %1723 = sbr.rel (%p1721) target = $region84
    $region83: #{wrapped_deeplab_forward.7} parent=5 // pred_region
      %s1724 = ssub.s32 %s20, 2
      // Predicated region
      $region85: #{wrapped_deeplab_forward.7} parent=83 // pred_check
        %p1725 = pneg %p348
      $region86: #{wrapped_deeplab_forward.7} parent=83 // pred_check_branch
        %1727 = sbr.rel (%p1725) target = $region88
      $region87: #{wrapped_deeplab_forward.7} parent=83 // pred_region
        %p1728 = scmp.lt.s32.totalorder %s26, 1
        %s1729 = scalar_select %p1728, %s26, 1
        %s1730 = smul.addr %s1729, 2
        %s1731 = smul.addr %s1730, 4
        %s1732 = scalar_lea.vmem %s14, %s1731
      $region88: #{wrapped_deeplab_forward.7} parent=83 // pred_fallthru
        _
    $region84: #{wrapped_deeplab_forward.7} parent=5 // pred_fallthru
      _
  $region6: #{wrapped_deeplab_forward.7} parent=0 // loop_footer
    %s24 = sadd.s32 1, %s20
  $region7: #{wrapped_deeplab_forward.7} parent=0 // loop_footer_branch
    %19 = sbr.rel target = $region3
  $region8: #{wrapped_deeplab_forward.7} parent=0 // loop_exit
    _

</llo_original>
